<compile_context>
chip_gen: v7x
topology: tpu7x:2x2x1
jax: 0.10.0
libtpu: 0.0.40
codegen_flags: <defaults>
</compile_context>

<pallas_src>
import math

import numpy as np

import jax
import jax.numpy as jnp
from jax.experimental import pallas as pl
from jax.experimental.pallas import tpu as pltpu

SELU_ALPHA = 1.6732632423543772
SELU_SCALE = 1.0507009873554805
BN_EPS = 1e-5
KH = KW = 7
STRIDE = 2
PAD = 3


# ------------------------- parameter construction -------------------------- #

def _toeplitz_grouped(w_conv, c_in, c_out, h_in, w_in):
    """Dense (S_in*C_in, S_out*C_out) matrix equivalent to
    Conv2d(c_in, c_out, 7, stride=2, padding=3, groups=c_in) acting on an
    activation flattened spatial-major / channel-minor (index = s*C + c)."""
    mult = c_out // c_in
    h_out = (h_in + 2 * PAD - KH) // STRIDE + 1
    w_out = (w_in + 2 * PAD - KW) // STRIDE + 1
    M = np.zeros((h_in * w_in * c_in, h_out * w_out * c_out), dtype=np.float32)
    co_idx = np.arange(c_out)
    ci_idx = co_idx // mult                      # input channel feeding co
    for oh in range(h_out):
        for ow in range(w_out):
            p = oh * w_out + ow
            for kh in range(KH):
                ih = STRIDE * oh + kh - PAD
                if ih < 0 or ih >= h_in:
                    continue
                for kw in range(KW):
                    iw = STRIDE * ow + kw - PAD
                    if iw < 0 or iw >= w_in:
                        continue
                    q = ih * w_in + iw
                    M[q * c_in + ci_idx, p * c_out + co_idx] += \
                        w_conv[co_idx, 0, kh, kw]
    return M, h_out, w_out


def _quantize_int8_per_col(M):
    """Symmetric per-column int8 quantization: M ~= q * scale  (storage only;
    the kernel dequantizes to bf16 before the MXU matmul)."""
    col_max = np.max(np.abs(M), axis=0)
    col_max = np.where(col_max > 0.0, col_max, 1.0)
    scale = (col_max / 127.0).astype(np.float32)
    q = np.clip(np.rint(M / scale[None, :]), -127, 127).astype(np.int8)
    return q, scale[None, :]


def init_hradnet_params(key, size, meta_size, in_channels, hidden_dim):
    depth = int(math.log2(size & -size))
    channels = [2 ** (i + 2) for i in range(depth + 1)]
    nblk = depth + 1
    keys = iter(jax.random.split(key, 8 * nblk + 4))

    D1 = sum(channels) + 1                       # out_features: ones col + all f_i
    D2 = meta_size + 1
    HD2 = hidden_dim * D2

    Mq, Mscale, Madd, GPs, gbs = [], [], [], [], []
    W0_eff = add0 = None
    h = w = size
    c_prev = in_channels
    for i in range(nblk):
        c_out = channels[i]
        if i == 0:
            # Conv2d(in_channels, channels[0], 1): per-pixel channel mix.
            wc = np.asarray(jax.random.normal(next(keys), (c_out, c_prev), jnp.float32))
            wc = wc * math.sqrt(1.0 / (c_out * c_prev))
            h_out, w_out = h, w
        else:
            # Conv2d(c_prev, c_out, 7, 2, 3, groups=c_prev) -> dense Toeplitz.
            wc = np.asarray(jax.random.normal(next(keys), (c_out, 1, KH, KW), jnp.float32))
            wc = wc * math.sqrt(1.0 / (c_out * KH * KW))
            M, h_out, w_out = _toeplitz_grouped(wc, c_prev, c_out, h, w)
        s_out = h_out * w_out

        # Conv bias + eval-mode BatchNorm2d, folded: scale into the matrix
        # columns, bias + shift into one additive row vector.
        b_conv = 0.05 * np.asarray(jax.random.normal(next(keys), (c_out,), jnp.float32))
        gamma = 1.0 + 0.1 * np.asarray(jax.random.normal(next(keys), (c_out,), jnp.float32))
        beta = 0.1 * np.asarray(jax.random.normal(next(keys), (c_out,), jnp.float32))
        mean = 0.1 * np.asarray(jax.random.normal(next(keys), (c_out,), jnp.float32))
        var = 0.9 + 0.2 * np.abs(np.asarray(jax.random.normal(next(keys), (c_out,), jnp.float32)))
        inv = gamma / np.sqrt(var + BN_EPS)
        add = np.tile(b_conv * inv + beta - mean * inv, s_out)[None, :].astype(np.float32)

        if i == 0:
            # Block 0 runs in the wrapper (review #1): (C_in, C0) weight with
            # BN scale folded; bias/shift row applied there too.
            W0_eff = (wc.T * inv[None, :]).astype(np.float32)
            add0 = add
        else:
            M = M * np.tile(inv, s_out)[None, :]
            q, scale = _quantize_int8_per_col(M)             # review #3
            Mq.append(jnp.asarray(q))
            Mscale.append(jnp.asarray(scale))
            Madd.append(jnp.asarray(add))

        # gconv = Linear(s_out, 1): un-padded (S*C, C) placement (review #2).
        gw = np.asarray(jax.random.normal(next(keys), (s_out,), jnp.float32)) \
            * math.sqrt(1.0 / s_out)
        gb = 0.05 * float(np.asarray(jax.random.normal(next(keys), (), jnp.float32)))
        GP = np.zeros((s_out * c_out, c_out), dtype=np.float32)
        rows = np.arange(s_out)[:, None] * c_out + np.arange(c_out)[None, :]
        GP[rows, np.arange(c_out)[None, :]] = gw[:, None]
        GPs.append(jnp.asarray(GP, jnp.bfloat16))
        gbs.append(gb)

        h, w, c_prev = h_out, w_out, c_out

    # nn.Bilinear(D1, D2, hidden_dim, bias=False), decomposed exactly into
    #   out = ((feat @ WR) * ([1, meta] @ TILE)) @ SEL
    # with WR pre-sliced per feature block so the concatenated feature slab is
    # never materialized: s = const_row + sum_i (z_i @ GP_i) @ WR_slice_i.
    Wb = np.asarray(jax.random.normal(next(keys), (hidden_dim, D1, D2), jnp.float32))
    Wb = Wb * math.sqrt(1.0 / (D1 * D2))
    WR = np.transpose(Wb, (1, 0, 2)).reshape(D1, HD2)        # WR[i, k*D2+j] = W[k,i,j]
    const_row = WR[0:1, :].copy()                            # torch.ones column
    WRS = []
    off = 1
    for i, c in enumerate(channels):
        sl = WR[off:off + c, :]
        WRS.append(jnp.asarray(sl, jnp.bfloat16))
        const_row = const_row + gbs[i] * sl.sum(axis=0, keepdims=True)  # gconv biases folded
        off += c
    TILE = np.tile(np.eye(D2, dtype=np.float32), (1, hidden_dim))       # (D2, HD2)
    mtc = TILE[0:1, :]                   # contribution of the prepended 1 in m
    TILE2 = TILE[1:, :]                  # (meta_size, HD2) for raw meta
    SEL = np.repeat(np.eye(hidden_dim, dtype=np.float32), D2, axis=0)   # (HD2, hidden)

    return {
        "W0_eff": jnp.asarray(W0_eff), "add0": jnp.asarray(add0),
        "Mq": Mq, "Mscale": Mscale, "Madd": Madd,
        "GPs": GPs, "WRS": WRS,
        "const_row": jnp.asarray(const_row.astype(np.float32)),
        "TILE2": jnp.asarray(TILE2, jnp.bfloat16),
        "mtc": jnp.asarray(mtc.astype(np.float32)),
        "SEL": jnp.asarray(SEL, jnp.bfloat16),
    }


# --------------------------------- forward ---------------------------------- #

def _selu(z):
    # exp argument clamped so the unselected branch never produces inf.
    return SELU_SCALE * jnp.where(
        z > 0.0, z, SELU_ALPHA * (jnp.exp(jnp.minimum(z, 0.0)) - 1.0))


def _block0_prepass(x_nchw, params):
    """Block-0 1x1 conv with BN scale/shift folded, computed as a tiny XLA
    einsum (B*S x C_in x C0 MACs) so the ~2 MB dense Kron(I, W) matrix never
    touches HBM/VMEM (review #1).  Output is the pre-SELU (B, S0*C0) activation
    in spatial-major / channel-minor layout."""
    B = x_nchw.shape[0]
    z0 = jnp.einsum("bchw,cd->bhwd", x_nchw.astype(jnp.float32), params["W0_eff"],
                    precision=jax.lax.Precision.HIGHEST)
    return z0.reshape(B, -1) + params["add0"]


@jax.jit
def hradnet_forward(x_nchw, meta, params):
    B = x_nchw.shape[0]
    z0 = _block0_prepass(x_nchw, params)                     # (B, S0*C0) pre-SELU
    mf = meta.reshape(B, -1).astype(jnp.float32)

    Mq, Mscale, Madd = params["Mq"], params["Mscale"], params["Madd"]
    GPs, WRS = params["GPs"], params["WRS"]
    nconv, nblk = len(Mq), len(GPs)
    HD2, hidden = params["SEL"].shape

    operands = ([z0, mf] + list(Mq) + list(Mscale) + list(Madd)
                + list(GPs) + list(WRS)
                + [params["const_row"], params["TILE2"], params["mtc"], params["SEL"]])

    def kernel(*refs):
        z0_ref, m_ref = refs[0], refs[1]
        p = 2
        mq = refs[p:p + nconv]; p += nconv          # int8 conv(+BN scale) matrices
        msc = refs[p:p + nconv]; p += nconv         # per-column dequant scales
        mad = refs[p:p + nconv]; p += nconv         # conv bias + BN shift rows
        gp = refs[p:p + nblk]; p += nblk            # un-padded gconv placement (S*C, C)
        wrs = refs[p:p + nblk]; p += nblk           # per-block bilinear WR slices (C, HD2)
        crow_ref, tile2_ref, mtc_ref, sel_ref, out_ref = refs[p:]

        def gfuse(zb, i):
            # gconv (Linear(S,1) per channel) fused with the feature concat and
            # the feature side of nn.Bilinear: two small MXU matmuls.
            part = jnp.dot(zb, gp[i][...], preferred_element_type=jnp.float32)
            return jnp.dot(part.astype(jnp.bfloat16), wrs[i][...],
                           preferred_element_type=jnp.float32)

        # Block 0: conv + BN already folded in the wrapper; SELU + gconv here.
        zb = _selu(z0_ref[...]).astype(jnp.bfloat16)
        s = crow_ref[...] + gfuse(zb, 0)            # (B, HD2) bilinear lhs accumulator
        a = zb
        for i in range(nconv):                      # blocks 1..nblk-1, static unroll
            w = mq[i][...].astype(jnp.bfloat16)     # int8 -> bf16 (exact); storage-only quant
            z = jnp.dot(a, w, preferred_element_type=jnp.float32)
            z = z * msc[i][...] + mad[i][...]       # dequant scale + conv bias + BN shift
            zb = _selu(z).astype(jnp.bfloat16)      # cast once, reused twice (review #9)
            s = s + gfuse(zb, i + 1)
            a = zb                                  # Dropout(p=0) = identity

        # Meta side of nn.Bilinear(features, [1, meta]) with bias=False.
        mt = mtc_ref[...] + jnp.dot(m_ref[...].astype(jnp.bfloat16), tile2_ref[...],
                                    preferred_element_type=jnp.float32)
        out_ref[...] = jnp.dot((s * mt).astype(jnp.bfloat16), sel_ref[...],
                               preferred_element_type=jnp.float32)

    # Batch-tile grid axis marked "parallel": large batches shard across the
    # two v7x TensorCores; weights stay VMEM-resident (single-buffered,
    # memory_space-only specs) across all grid steps.  Demo batch -> grid=(1,).
    bt = B if B <= 256 else 256
    assert B % bt == 0, "batch must be a multiple of the 256-row batch tile"
    grid = (B // bt,)

    resident = pl.BlockSpec(memory_space=pltpu.MemorySpace.VMEM)   # single-buffered
    in_specs = ([pl.BlockSpec((bt, z0.shape[1]), lambda i: (i, 0)),
                 pl.BlockSpec((bt, mf.shape[1]), lambda i: (i, 0))]
                + [resident] * (len(operands) - 2))
    out_specs = pl.BlockSpec((bt, hidden), lambda i: (i, 0))

    return pl.pallas_call(
        kernel,
        out_shape=jax.ShapeDtypeStruct((B, hidden), jnp.float32),
        grid=grid,
        in_specs=in_specs,
        out_specs=out_specs,
        compiler_params=pltpu.CompilerParams(
            dimension_semantics=("parallel",),
            vmem_limit_bytes=32 * 1024 * 1024),
    )(*operands)


# ------------------------- pure-jnp reference mirror ------------------------ #

def reference_forward(x_nchw, meta, params):
    """Pure-jnp mirror of the exact kernel math (same quantized weights and
    bf16 casts); used as a tolerance-asserted check of the Pallas lowering."""
    B = x_nchw.shape[0]
    z0 = _block0_prepass(x_nchw, params)
    mf = meta.reshape(B, -1).astype(jnp.float32)

    def gfuse(zb, i):
        part = jnp.dot(zb, params["GPs"][i], preferred_element_type=jnp.float32)
        return jnp.dot(part.astype(jnp.bfloat16), params["WRS"][i],
                       preferred_element_type=jnp.float32)

    zb = _selu(z0).astype(jnp.bfloat16)
    s = params["const_row"] + gfuse(zb, 0)
    a = zb
    for i in range(len(params["Mq"])):
        w = params["Mq"][i].astype(jnp.bfloat16)
        z = jnp.dot(a, w, preferred_element_type=jnp.float32)
        z = z * params["Mscale"][i] + params["Madd"][i]
        zb = _selu(z).astype(jnp.bfloat16)
        s = s + gfuse(zb, i + 1)
        a = zb
    mt = params["mtc"] + jnp.dot(mf.astype(jnp.bfloat16), params["TILE2"],
                                 preferred_element_type=jnp.float32)
    return jnp.dot((s * mt).astype(jnp.bfloat16), params["SEL"],
                   preferred_element_type=jnp.float32)


# ----------------------------------- main ------------------------------------ #

if __name__ == "__main__":
    key = jax.random.PRNGKey(0)
    k_param, k_x, k_m = jax.random.split(key, 3)

    B, IN_CH, SIZE, META, HIDDEN = 2, 4, 16, 6, 32
    params = init_hradnet_params(k_param, size=SIZE, meta_size=META,
                                 in_channels=IN_CH, hidden_dim=HIDDEN)

    x = jax.random.normal(k_x, (B, IN_CH, SIZE, SIZE), jnp.float32)   # NCHW like PyTorch
    meta = jax.random.normal(k_m, (B, META), jnp.float32)

    out = hradnet_forward(x, meta, params)
    jax.block_until_ready(out)
    assert out.shape == (B, HIDDEN) and out.dtype == jnp.float32
    assert bool(jnp.all(jnp.isfinite(out)))

    # Tolerance-asserted correctness check vs. the pure-jnp mirror of the same
    # (quantized / bf16) math — validates the Pallas lowering end-to-end.
    ref = reference_forward(x, meta, params)
    err = float(jnp.max(jnp.abs(out - ref)))
    scale = max(1.0, float(jnp.max(jnp.abs(ref))))
    assert err <= 2e-2 * scale, f"kernel/reference mismatch: {err} (scale {scale})"

    print("KERNEL_OK")
</pallas_src>

<mosaic_0001>
module attributes {stable_mosaic.version = 11 : i64} {
  func.func @kernel(%arg0: i32, %arg1: memref<2x1024xf32, #tpu.memory_space<vmem>>, %arg2: memref<2x6xf32, #tpu.memory_space<vmem>>, %arg3: memref<1024x512xi8, #tpu.memory_space<vmem>>, %arg4: memref<512x256xi8, #tpu.memory_space<vmem>>, %arg5: memref<256x128xi8, #tpu.memory_space<vmem>>, %arg6: memref<128x64xi8, #tpu.memory_space<vmem>>, %arg7: memref<1x512xf32, #tpu.memory_space<vmem>>, %arg8: memref<1x256xf32, #tpu.memory_space<vmem>>, %arg9: memref<1x128xf32, #tpu.memory_space<vmem>>, %arg10: memref<1x64xf32, #tpu.memory_space<vmem>>, %arg11: memref<1x512xf32, #tpu.memory_space<vmem>>, %arg12: memref<1x256xf32, #tpu.memory_space<vmem>>, %arg13: memref<1x128xf32, #tpu.memory_space<vmem>>, %arg14: memref<1x64xf32, #tpu.memory_space<vmem>>, %arg15: memref<1024x4xbf16, #tpu.memory_space<vmem>>, %arg16: memref<512x8xbf16, #tpu.memory_space<vmem>>, %arg17: memref<256x16xbf16, #tpu.memory_space<vmem>>, %arg18: memref<128x32xbf16, #tpu.memory_space<vmem>>, %arg19: memref<64x64xbf16, #tpu.memory_space<vmem>>, %arg20: memref<4x224xbf16, #tpu.memory_space<vmem>>, %arg21: memref<8x224xbf16, #tpu.memory_space<vmem>>, %arg22: memref<16x224xbf16, #tpu.memory_space<vmem>>, %arg23: memref<32x224xbf16, #tpu.memory_space<vmem>>, %arg24: memref<64x224xbf16, #tpu.memory_space<vmem>>, %arg25: memref<1x224xf32, #tpu.memory_space<vmem>>, %arg26: memref<6x224xbf16, #tpu.memory_space<vmem>>, %arg27: memref<1x224xf32, #tpu.memory_space<vmem>>, %arg28: memref<224x32xbf16, #tpu.memory_space<vmem>>, %arg29: memref<2x32xf32, #tpu.memory_space<vmem>>) attributes {dimension_semantics = [#tpu.dimension_semantics<parallel>], iteration_bounds = array<i64: 1>, scalar_prefetch = 0 : i64, scratch_operands = 0 : i64, tpu.core_type = #tpu.core_type<tc>, window_params = [{transform_indices = @transform_0, window_bounds = array<i64: 2, 1024>}, {transform_indices = @transform_1, window_bounds = array<i64: 2, 6>}, {pipeline_mode = #tpu.pipeline_mode<synchronous>, transform_indices = @transform_2, window_bounds = array<i64: 1024, 512>}, {pipeline_mode = #tpu.pipeline_mode<synchronous>, transform_indices = @transform_3, window_bounds = array<i64: 512, 256>}, {pipeline_mode = #tpu.pipeline_mode<synchronous>, transform_indices = @transform_4, window_bounds = array<i64: 256, 128>}, {pipeline_mode = #tpu.pipeline_mode<synchronous>, transform_indices = @transform_5, window_bounds = array<i64: 128, 64>}, {pipeline_mode = #tpu.pipeline_mode<synchronous>, transform_indices = @transform_6, window_bounds = array<i64: 1, 512>}, {pipeline_mode = #tpu.pipeline_mode<synchronous>, transform_indices = @transform_7, window_bounds = array<i64: 1, 256>}, {pipeline_mode = #tpu.pipeline_mode<synchronous>, transform_indices = @transform_8, window_bounds = array<i64: 1, 128>}, {pipeline_mode = #tpu.pipeline_mode<synchronous>, transform_indices = @transform_9, window_bounds = array<i64: 1, 64>}, {pipeline_mode = #tpu.pipeline_mode<synchronous>, transform_indices = @transform_10, window_bounds = array<i64: 1, 512>}, {pipeline_mode = #tpu.pipeline_mode<synchronous>, transform_indices = @transform_11, window_bounds = array<i64: 1, 256>}, {pipeline_mode = #tpu.pipeline_mode<synchronous>, transform_indices = @transform_12, window_bounds = array<i64: 1, 128>}, {pipeline_mode = #tpu.pipeline_mode<synchronous>, transform_indices = @transform_13, window_bounds = array<i64: 1, 64>}, {pipeline_mode = #tpu.pipeline_mode<synchronous>, transform_indices = @transform_14, window_bounds = array<i64: 1024, 4>}, {pipeline_mode = #tpu.pipeline_mode<synchronous>, transform_indices = @transform_15, window_bounds = array<i64: 512, 8>}, {pipeline_mode = #tpu.pipeline_mode<synchronous>, transform_indices = @transform_16, window_bounds = array<i64: 256, 16>}, {pipeline_mode = #tpu.pipeline_mode<synchronous>, transform_indices = @transform_17, window_bounds = array<i64: 128, 32>}, {pipeline_mode = #tpu.pipeline_mode<synchronous>, transform_indices = @transform_18, window_bounds = array<i64: 64, 64>}, {pipeline_mode = #tpu.pipeline_mode<synchronous>, transform_indices = @transform_19, window_bounds = array<i64: 4, 224>}, {pipeline_mode = #tpu.pipeline_mode<synchronous>, transform_indices = @transform_20, window_bounds = array<i64: 8, 224>}, {pipeline_mode = #tpu.pipeline_mode<synchronous>, transform_indices = @transform_21, window_bounds = array<i64: 16, 224>}, {pipeline_mode = #tpu.pipeline_mode<synchronous>, transform_indices = @transform_22, window_bounds = array<i64: 32, 224>}, {pipeline_mode = #tpu.pipeline_mode<synchronous>, transform_indices = @transform_23, window_bounds = array<i64: 64, 224>}, {pipeline_mode = #tpu.pipeline_mode<synchronous>, transform_indices = @transform_24, window_bounds = array<i64: 1, 224>}, {pipeline_mode = #tpu.pipeline_mode<synchronous>, transform_indices = @transform_25, window_bounds = array<i64: 6, 224>}, {pipeline_mode = #tpu.pipeline_mode<synchronous>, transform_indices = @transform_26, window_bounds = array<i64: 1, 224>}, {pipeline_mode = #tpu.pipeline_mode<synchronous>, transform_indices = @transform_27, window_bounds = array<i64: 224, 32>}, {transform_indices = @transform_28, window_bounds = array<i64: 2, 32>}]} {
    %c0 = arith.constant 0 : index
    %c0_0 = arith.constant 0 : index
    %0 = vector.load %arg1[%c0, %c0_0] : memref<2x1024xf32, #tpu.memory_space<vmem>>, vector<2x1024xf32>
    %cst = arith.constant 0.000000e+00 : f32
    %1 = vector.broadcast %cst : f32 to vector<2x1024xf32>
    %2 = arith.cmpf ogt, %0, %1 : vector<2x1024xf32>
    %cst_1 = arith.constant 0.000000e+00 : f32
    %3 = vector.broadcast %cst_1 : f32 to vector<2x1024xf32>
    %4 = arith.minimumf %0, %3 : vector<2x1024xf32>
    %5 = math.exp %4 : vector<2x1024xf32>
    %cst_2 = arith.constant 1.000000e+00 : f32
    %6 = vector.broadcast %cst_2 : f32 to vector<2x1024xf32>
    %7 = arith.subf %5, %6 : vector<2x1024xf32>
    %cst_3 = arith.constant 1.67326319 : f32
    %8 = vector.broadcast %cst_3 : f32 to vector<2x1024xf32>
    %9 = arith.mulf %8, %7 : vector<2x1024xf32>
    %10 = arith.select %2, %0, %9 : vector<2x1024xi1>, vector<2x1024xf32>
    %cst_4 = arith.constant 1.05070102 : f32
    %11 = vector.broadcast %cst_4 : f32 to vector<2x1024xf32>
    %12 = arith.mulf %11, %10 : vector<2x1024xf32>
    %13 = arith.truncf %12 : vector<2x1024xf32> to vector<2x1024xbf16>
    %c0_5 = arith.constant 0 : index
    %c0_6 = arith.constant 0 : index
    %14 = vector.load %arg25[%c0_5, %c0_6] : memref<1x224xf32, #tpu.memory_space<vmem>>, vector<1x224xf32>
    %c0_7 = arith.constant 0 : index
    %c0_8 = arith.constant 0 : index
    %15 = vector.load %arg15[%c0_7, %c0_8] : memref<1024x4xbf16, #tpu.memory_space<vmem>>, vector<1024x4xbf16>
    %cst_9 = arith.constant dense<0.000000e+00> : vector<2x4xf32>
    %16 = tpu.matmul %13, %15, %cst_9 {dimension_numbers = #tpu.dot_dimension_numbers<[1], [0], [0], [1], [0, 0, 1, 1], [], []>} : vector<2x1024xbf16>, vector<1024x4xbf16>, vector<2x4xf32> -> vector<2x4xf32>
    %17 = arith.truncf %16 : vector<2x4xf32> to vector<2x4xbf16>
    %c0_10 = arith.constant 0 : index
    %c0_11 = arith.constant 0 : index
    %18 = vector.load %arg20[%c0_10, %c0_11] : memref<4x224xbf16, #tpu.memory_space<vmem>>, vector<4x224xbf16>
    %cst_12 = arith.constant dense<0.000000e+00> : vector<2x224xf32>
    %19 = tpu.matmul %17, %18, %cst_12 {dimension_numbers = #tpu.dot_dimension_numbers<[1], [0], [0], [1], [0, 0, 1, 1], [], []>} : vector<2x4xbf16>, vector<4x224xbf16>, vector<2x224xf32> -> vector<2x224xf32>
    %20 = vector.broadcast %14 : vector<1x224xf32> to vector<2x224xf32>
    %21 = arith.addf %20, %19 : vector<2x224xf32>
    %c0_13 = arith.constant 0 : index
    %c0_14 = arith.constant 0 : index
    %22 = vector.load %arg3[%c0_13, %c0_14] : memref<1024x512xi8, #tpu.memory_space<vmem>>, vector<1024x512xi8>
    %23 = arith.sitofp %22 : vector<1024x512xi8> to vector<1024x512xbf16>
    %cst_15 = arith.constant dense<0.000000e+00> : vector<2x512xf32>
    %24 = tpu.matmul %13, %23, %cst_15 {dimension_numbers = #tpu.dot_dimension_numbers<[1], [0], [0], [1], [0, 0, 1, 1], [], []>} : vector<2x1024xbf16>, vector<1024x512xbf16>, vector<2x512xf32> -> vector<2x512xf32>
    %c0_16 = arith.constant 0 : index
    %c0_17 = arith.constant 0 : index
    %25 = vector.load %arg7[%c0_16, %c0_17] : memref<1x512xf32, #tpu.memory_space<vmem>>, vector<1x512xf32>
    %26 = vector.broadcast %25 : vector<1x512xf32> to vector<2x512xf32>
    %27 = arith.mulf %24, %26 : vector<2x512xf32>
    %c0_18 = arith.constant 0 : index
    %c0_19 = arith.constant 0 : index
    %28 = vector.load %arg11[%c0_18, %c0_19] : memref<1x512xf32, #tpu.memory_space<vmem>>, vector<1x512xf32>
    %29 = vector.broadcast %28 : vector<1x512xf32> to vector<2x512xf32>
    %30 = arith.addf %27, %29 : vector<2x512xf32>
    %cst_20 = arith.constant 0.000000e+00 : f32
    %31 = vector.broadcast %cst_20 : f32 to vector<2x512xf32>
    %32 = arith.cmpf ogt, %30, %31 : vector<2x512xf32>
    %cst_21 = arith.constant 0.000000e+00 : f32
    %33 = vector.broadcast %cst_21 : f32 to vector<2x512xf32>
    %34 = arith.minimumf %30, %33 : vector<2x512xf32>
    %35 = math.exp %34 : vector<2x512xf32>
    %cst_22 = arith.constant 1.000000e+00 : f32
    %36 = vector.broadcast %cst_22 : f32 to vector<2x512xf32>
    %37 = arith.subf %35, %36 : vector<2x512xf32>
    %cst_23 = arith.constant 1.67326319 : f32
    %38 = vector.broadcast %cst_23 : f32 to vector<2x512xf32>
    %39 = arith.mulf %38, %37 : vector<2x512xf32>
    %40 = arith.select %32, %30, %39 : vector<2x512xi1>, vector<2x512xf32>
    %cst_24 = arith.constant 1.05070102 : f32
    %41 = vector.broadcast %cst_24 : f32 to vector<2x512xf32>
    %42 = arith.mulf %41, %40 : vector<2x512xf32>
    %43 = arith.truncf %42 : vector<2x512xf32> to vector<2x512xbf16>
    %c0_25 = arith.constant 0 : index
    %c0_26 = arith.constant 0 : index
    %44 = vector.load %arg16[%c0_25, %c0_26] : memref<512x8xbf16, #tpu.memory_space<vmem>>, vector<512x8xbf16>
    %cst_27 = arith.constant dense<0.000000e+00> : vector<2x8xf32>
    %45 = tpu.matmul %43, %44, %cst_27 {dimension_numbers = #tpu.dot_dimension_numbers<[1], [0], [0], [1], [0, 0, 1, 1], [], []>} : vector<2x512xbf16>, vector<512x8xbf16>, vector<2x8xf32> -> vector<2x8xf32>
    %46 = arith.truncf %45 : vector<2x8xf32> to vector<2x8xbf16>
    %c0_28 = arith.constant 0 : index
    %c0_29 = arith.constant 0 : index
    %47 = vector.load %arg21[%c0_28, %c0_29] : memref<8x224xbf16, #tpu.memory_space<vmem>>, vector<8x224xbf16>
    %cst_30 = arith.constant dense<0.000000e+00> : vector<2x224xf32>
    %48 = tpu.matmul %46, %47, %cst_30 {dimension_numbers = #tpu.dot_dimension_numbers<[1], [0], [0], [1], [0, 0, 1, 1], [], []>} : vector<2x8xbf16>, vector<8x224xbf16>, vector<2x224xf32> -> vector<2x224xf32>
    %49 = arith.addf %21, %48 : vector<2x224xf32>
    %c0_31 = arith.constant 0 : index
    %c0_32 = arith.constant 0 : index
    %50 = vector.load %arg4[%c0_31, %c0_32] : memref<512x256xi8, #tpu.memory_space<vmem>>, vector<512x256xi8>
    %51 = arith.sitofp %50 : vector<512x256xi8> to vector<512x256xbf16>
    %cst_33 = arith.constant dense<0.000000e+00> : vector<2x256xf32>
    %52 = tpu.matmul %43, %51, %cst_33 {dimension_numbers = #tpu.dot_dimension_numbers<[1], [0], [0], [1], [0, 0, 1, 1], [], []>} : vector<2x512xbf16>, vector<512x256xbf16>, vector<2x256xf32> -> vector<2x256xf32>
    %c0_34 = arith.constant 0 : index
    %c0_35 = arith.constant 0 : index
    %53 = vector.load %arg8[%c0_34, %c0_35] : memref<1x256xf32, #tpu.memory_space<vmem>>, vector<1x256xf32>
    %54 = vector.broadcast %53 : vector<1x256xf32> to vector<2x256xf32>
    %55 = arith.mulf %52, %54 : vector<2x256xf32>
    %c0_36 = arith.constant 0 : index
    %c0_37 = arith.constant 0 : index
    %56 = vector.load %arg12[%c0_36, %c0_37] : memref<1x256xf32, #tpu.memory_space<vmem>>, vector<1x256xf32>
    %57 = vector.broadcast %56 : vector<1x256xf32> to vector<2x256xf32>
    %58 = arith.addf %55, %57 : vector<2x256xf32>
    %cst_38 = arith.constant 0.000000e+00 : f32
    %59 = vector.broadcast %cst_38 : f32 to vector<2x256xf32>
    %60 = arith.cmpf ogt, %58, %59 : vector<2x256xf32>
    %cst_39 = arith.constant 0.000000e+00 : f32
    %61 = vector.broadcast %cst_39 : f32 to vector<2x256xf32>
    %62 = arith.minimumf %58, %61 : vector<2x256xf32>
    %63 = math.exp %62 : vector<2x256xf32>
    %cst_40 = arith.constant 1.000000e+00 : f32
    %64 = vector.broadcast %cst_40 : f32 to vector<2x256xf32>
    %65 = arith.subf %63, %64 : vector<2x256xf32>
    %cst_41 = arith.constant 1.67326319 : f32
    %66 = vector.broadcast %cst_41 : f32 to vector<2x256xf32>
    %67 = arith.mulf %66, %65 : vector<2x256xf32>
    %68 = arith.select %60, %58, %67 : vector<2x256xi1>, vector<2x256xf32>
    %cst_42 = arith.constant 1.05070102 : f32
    %69 = vector.broadcast %cst_42 : f32 to vector<2x256xf32>
    %70 = arith.mulf %69, %68 : vector<2x256xf32>
    %71 = arith.truncf %70 : vector<2x256xf32> to vector<2x256xbf16>
    %c0_43 = arith.constant 0 : index
    %c0_44 = arith.constant 0 : index
    %72 = vector.load %arg17[%c0_43, %c0_44] : memref<256x16xbf16, #tpu.memory_space<vmem>>, vector<256x16xbf16>
    %cst_45 = arith.constant dense<0.000000e+00> : vector<2x16xf32>
    %73 = tpu.matmul %71, %72, %cst_45 {dimension_numbers = #tpu.dot_dimension_numbers<[1], [0], [0], [1], [0, 0, 1, 1], [], []>} : vector<2x256xbf16>, vector<256x16xbf16>, vector<2x16xf32> -> vector<2x16xf32>
    %74 = arith.truncf %73 : vector<2x16xf32> to vector<2x16xbf16>
    %c0_46 = arith.constant 0 : index
    %c0_47 = arith.constant 0 : index
    %75 = vector.load %arg22[%c0_46, %c0_47] : memref<16x224xbf16, #tpu.memory_space<vmem>>, vector<16x224xbf16>
    %cst_48 = arith.constant dense<0.000000e+00> : vector<2x224xf32>
    %76 = tpu.matmul %74, %75, %cst_48 {dimension_numbers = #tpu.dot_dimension_numbers<[1], [0], [0], [1], [0, 0, 1, 1], [], []>} : vector<2x16xbf16>, vector<16x224xbf16>, vector<2x224xf32> -> vector<2x224xf32>
    %77 = arith.addf %49, %76 : vector<2x224xf32>
    %c0_49 = arith.constant 0 : index
    %c0_50 = arith.constant 0 : index
    %78 = vector.load %arg5[%c0_49, %c0_50] : memref<256x128xi8, #tpu.memory_space<vmem>>, vector<256x128xi8>
    %79 = arith.sitofp %78 : vector<256x128xi8> to vector<256x128xbf16>
    %cst_51 = arith.constant dense<0.000000e+00> : vector<2x128xf32>
    %80 = tpu.matmul %71, %79, %cst_51 {dimension_numbers = #tpu.dot_dimension_numbers<[1], [0], [0], [1], [0, 0, 1, 1], [], []>} : vector<2x256xbf16>, vector<256x128xbf16>, vector<2x128xf32> -> vector<2x128xf32>
    %c0_52 = arith.constant 0 : index
    %c0_53 = arith.constant 0 : index
    %81 = vector.load %arg9[%c0_52, %c0_53] : memref<1x128xf32, #tpu.memory_space<vmem>>, vector<1x128xf32>
    %82 = vector.broadcast %81 : vector<1x128xf32> to vector<2x128xf32>
    %83 = arith.mulf %80, %82 : vector<2x128xf32>
    %c0_54 = arith.constant 0 : index
    %c0_55 = arith.constant 0 : index
    %84 = vector.load %arg13[%c0_54, %c0_55] : memref<1x128xf32, #tpu.memory_space<vmem>>, vector<1x128xf32>
    %85 = vector.broadcast %84 : vector<1x128xf32> to vector<2x128xf32>
    %86 = arith.addf %83, %85 : vector<2x128xf32>
    %cst_56 = arith.constant 0.000000e+00 : f32
    %87 = vector.broadcast %cst_56 : f32 to vector<2x128xf32>
    %88 = arith.cmpf ogt, %86, %87 : vector<2x128xf32>
    %cst_57 = arith.constant 0.000000e+00 : f32
    %89 = vector.broadcast %cst_57 : f32 to vector<2x128xf32>
    %90 = arith.minimumf %86, %89 : vector<2x128xf32>
    %91 = math.exp %90 : vector<2x128xf32>
    %cst_58 = arith.constant 1.000000e+00 : f32
    %92 = vector.broadcast %cst_58 : f32 to vector<2x128xf32>
    %93 = arith.subf %91, %92 : vector<2x128xf32>
    %cst_59 = arith.constant 1.67326319 : f32
    %94 = vector.broadcast %cst_59 : f32 to vector<2x128xf32>
    %95 = arith.mulf %94, %93 : vector<2x128xf32>
    %96 = arith.select %88, %86, %95 : vector<2x128xi1>, vector<2x128xf32>
    %cst_60 = arith.constant 1.05070102 : f32
    %97 = vector.broadcast %cst_60 : f32 to vector<2x128xf32>
    %98 = arith.mulf %97, %96 : vector<2x128xf32>
    %99 = arith.truncf %98 : vector<2x128xf32> to vector<2x128xbf16>
    %c0_61 = arith.constant 0 : index
    %c0_62 = arith.constant 0 : index
    %100 = vector.load %arg18[%c0_61, %c0_62] : memref<128x32xbf16, #tpu.memory_space<vmem>>, vector<128x32xbf16>
    %cst_63 = arith.constant dense<0.000000e+00> : vector<2x32xf32>
    %101 = tpu.matmul %99, %100, %cst_63 {dimension_numbers = #tpu.dot_dimension_numbers<[1], [0], [0], [1], [0, 0, 1, 1], [], []>} : vector<2x128xbf16>, vector<128x32xbf16>, vector<2x32xf32> -> vector<2x32xf32>
    %102 = arith.truncf %101 : vector<2x32xf32> to vector<2x32xbf16>
    %c0_64 = arith.constant 0 : index
    %c0_65 = arith.constant 0 : index
    %103 = vector.load %arg23[%c0_64, %c0_65] : memref<32x224xbf16, #tpu.memory_space<vmem>>, vector<32x224xbf16>
    %cst_66 = arith.constant dense<0.000000e+00> : vector<2x224xf32>
    %104 = tpu.matmul %102, %103, %cst_66 {dimension_numbers = #tpu.dot_dimension_numbers<[1], [0], [0], [1], [0, 0, 1, 1], [], []>} : vector<2x32xbf16>, vector<32x224xbf16>, vector<2x224xf32> -> vector<2x224xf32>
    %105 = arith.addf %77, %104 : vector<2x224xf32>
    %c0_67 = arith.constant 0 : index
    %c0_68 = arith.constant 0 : index
    %106 = vector.load %arg6[%c0_67, %c0_68] : memref<128x64xi8, #tpu.memory_space<vmem>>, vector<128x64xi8>
    %107 = arith.sitofp %106 : vector<128x64xi8> to vector<128x64xbf16>
    %cst_69 = arith.constant dense<0.000000e+00> : vector<2x64xf32>
    %108 = tpu.matmul %99, %107, %cst_69 {dimension_numbers = #tpu.dot_dimension_numbers<[1], [0], [0], [1], [0, 0, 1, 1], [], []>} : vector<2x128xbf16>, vector<128x64xbf16>, vector<2x64xf32> -> vector<2x64xf32>
    %c0_70 = arith.constant 0 : index
    %c0_71 = arith.constant 0 : index
    %109 = vector.load %arg10[%c0_70, %c0_71] : memref<1x64xf32, #tpu.memory_space<vmem>>, vector<1x64xf32>
    %110 = vector.broadcast %109 : vector<1x64xf32> to vector<2x64xf32>
    %111 = arith.mulf %108, %110 : vector<2x64xf32>
    %c0_72 = arith.constant 0 : index
    %c0_73 = arith.constant 0 : index
    %112 = vector.load %arg14[%c0_72, %c0_73] : memref<1x64xf32, #tpu.memory_space<vmem>>, vector<1x64xf32>
    %113 = vector.broadcast %112 : vector<1x64xf32> to vector<2x64xf32>
    %114 = arith.addf %111, %113 : vector<2x64xf32>
    %cst_74 = arith.constant 0.000000e+00 : f32
    %115 = vector.broadcast %cst_74 : f32 to vector<2x64xf32>
    %116 = arith.cmpf ogt, %114, %115 : vector<2x64xf32>
    %cst_75 = arith.constant 0.000000e+00 : f32
    %117 = vector.broadcast %cst_75 : f32 to vector<2x64xf32>
    %118 = arith.minimumf %114, %117 : vector<2x64xf32>
    %119 = math.exp %118 : vector<2x64xf32>
    %cst_76 = arith.constant 1.000000e+00 : f32
    %120 = vector.broadcast %cst_76 : f32 to vector<2x64xf32>
    %121 = arith.subf %119, %120 : vector<2x64xf32>
    %cst_77 = arith.constant 1.67326319 : f32
    %122 = vector.broadcast %cst_77 : f32 to vector<2x64xf32>
    %123 = arith.mulf %122, %121 : vector<2x64xf32>
    %124 = arith.select %116, %114, %123 : vector<2x64xi1>, vector<2x64xf32>
    %cst_78 = arith.constant 1.05070102 : f32
    %125 = vector.broadcast %cst_78 : f32 to vector<2x64xf32>
    %126 = arith.mulf %125, %124 : vector<2x64xf32>
    %127 = arith.truncf %126 : vector<2x64xf32> to vector<2x64xbf16>
    %c0_79 = arith.constant 0 : index
    %c0_80 = arith.constant 0 : index
    %128 = vector.load %arg19[%c0_79, %c0_80] : memref<64x64xbf16, #tpu.memory_space<vmem>>, vector<64x64xbf16>
    %cst_81 = arith.constant dense<0.000000e+00> : vector<2x64xf32>
    %129 = tpu.matmul %127, %128, %cst_81 {dimension_numbers = #tpu.dot_dimension_numbers<[1], [0], [0], [1], [0, 0, 1, 1], [], []>} : vector<2x64xbf16>, vector<64x64xbf16>, vector<2x64xf32> -> vector<2x64xf32>
    %130 = arith.truncf %129 : vector<2x64xf32> to vector<2x64xbf16>
    %c0_82 = arith.constant 0 : index
    %c0_83 = arith.constant 0 : index
    %131 = vector.load %arg24[%c0_82, %c0_83] : memref<64x224xbf16, #tpu.memory_space<vmem>>, vector<64x224xbf16>
    %cst_84 = arith.constant dense<0.000000e+00> : vector<2x224xf32>
    %132 = tpu.matmul %130, %131, %cst_84 {dimension_numbers = #tpu.dot_dimension_numbers<[1], [0], [0], [1], [0, 0, 1, 1], [], []>} : vector<2x64xbf16>, vector<64x224xbf16>, vector<2x224xf32> -> vector<2x224xf32>
    %133 = arith.addf %105, %132 : vector<2x224xf32>
    %c0_85 = arith.constant 0 : index
    %c0_86 = arith.constant 0 : index
    %134 = vector.load %arg27[%c0_85, %c0_86] : memref<1x224xf32, #tpu.memory_space<vmem>>, vector<1x224xf32>
    %c0_87 = arith.constant 0 : index
    %c0_88 = arith.constant 0 : index
    %135 = vector.load %arg2[%c0_87, %c0_88] : memref<2x6xf32, #tpu.memory_space<vmem>>, vector<2x6xf32>
    %136 = arith.truncf %135 : vector<2x6xf32> to vector<2x6xbf16>
    %c0_89 = arith.constant 0 : index
    %c0_90 = arith.constant 0 : index
    %137 = vector.load %arg26[%c0_89, %c0_90] : memref<6x224xbf16, #tpu.memory_space<vmem>>, vector<6x224xbf16>
    %cst_91 = arith.constant dense<0.000000e+00> : vector<2x224xf32>
    %138 = tpu.matmul %136, %137, %cst_91 {dimension_numbers = #tpu.dot_dimension_numbers<[1], [0], [0], [1], [0, 0, 1, 1], [], []>} : vector<2x6xbf16>, vector<6x224xbf16>, vector<2x224xf32> -> vector<2x224xf32>
    %139 = vector.broadcast %134 : vector<1x224xf32> to vector<2x224xf32>
    %140 = arith.addf %139, %138 : vector<2x224xf32>
    %141 = arith.mulf %133, %140 : vector<2x224xf32>
    %142 = arith.truncf %141 : vector<2x224xf32> to vector<2x224xbf16>
    %c0_92 = arith.constant 0 : index
    %c0_93 = arith.constant 0 : index
    %143 = vector.load %arg28[%c0_92, %c0_93] : memref<224x32xbf16, #tpu.memory_space<vmem>>, vector<224x32xbf16>
    %cst_94 = arith.constant dense<0.000000e+00> : vector<2x32xf32>
    %144 = tpu.matmul %142, %143, %cst_94 {dimension_numbers = #tpu.dot_dimension_numbers<[1], [0], [0], [1], [0, 0, 1, 1], [], []>} : vector<2x224xbf16>, vector<224x32xbf16>, vector<2x32xf32> -> vector<2x32xf32>
    %c0_95 = arith.constant 0 : index
    %c0_96 = arith.constant 0 : index
    %145 = vector.load %arg29[%c0_95, %c0_96] : memref<2x32xf32, #tpu.memory_space<vmem>>, vector<2x32xf32>
    tpu.vector_store %arg29[%c0_95, %c0_96], %144 {strides = array<i32>} : memref<2x32xf32, #tpu.memory_space<vmem>>, vector<2x32xf32>,
    return
  }
  func.func @transform_0(%arg0: i32) -> (i32, i32) {
    %c0_i32 = arith.constant 0 : i32
    %c0_i32_0 = arith.constant 0 : i32
    return %arg0, %c0_i32 : i32, i32
  }
  func.func @transform_1(%arg0: i32) -> (i32, i32) {
    %c0_i32 = arith.constant 0 : i32
    %c0_i32_0 = arith.constant 0 : i32
    return %arg0, %c0_i32 : i32, i32
  }
  func.func @transform_2(%arg0: i32) -> (i32, i32) {
    %c0_i32 = arith.constant 0 : i32
    %c0_i32_0 = arith.constant 0 : i32
    %c0_i32_1 = arith.constant 0 : i32
    return %c0_i32, %c0_i32_0 : i32, i32
  }
  func.func @transform_3(%arg0: i32) -> (i32, i32) {
    %c0_i32 = arith.constant 0 : i32
    %c0_i32_0 = arith.constant 0 : i32
    %c0_i32_1 = arith.constant 0 : i32
    return %c0_i32, %c0_i32_0 : i32, i32
  }
  func.func @transform_4(%arg0: i32) -> (i32, i32) {
    %c0_i32 = arith.constant 0 : i32
    %c0_i32_0 = arith.constant 0 : i32
    %c0_i32_1 = arith.constant 0 : i32
    return %c0_i32, %c0_i32_0 : i32, i32
  }
  func.func @transform_5(%arg0: i32) -> (i32, i32) {
    %c0_i32 = arith.constant 0 : i32
    %c0_i32_0 = arith.constant 0 : i32
    %c0_i32_1 = arith.constant 0 : i32
    return %c0_i32, %c0_i32_0 : i32, i32
  }
  func.func @transform_6(%arg0: i32) -> (i32, i32) {
    %c0_i32 = arith.constant 0 : i32
    %c0_i32_0 = arith.constant 0 : i32
    %c0_i32_1 = arith.constant 0 : i32
    return %c0_i32, %c0_i32_0 : i32, i32
  }
  func.func @transform_7(%arg0: i32) -> (i32, i32) {
    %c0_i32 = arith.constant 0 : i32
    %c0_i32_0 = arith.constant 0 : i32
    %c0_i32_1 = arith.constant 0 : i32
    return %c0_i32, %c0_i32_0 : i32, i32
  }
  func.func @transform_8(%arg0: i32) -> (i32, i32) {
    %c0_i32 = arith.constant 0 : i32
    %c0_i32_0 = arith.constant 0 : i32
    %c0_i32_1 = arith.constant 0 : i32
    return %c0_i32, %c0_i32_0 : i32, i32
  }
  func.func @transform_9(%arg0: i32) -> (i32, i32) {
    %c0_i32 = arith.constant 0 : i32
    %c0_i32_0 = arith.constant 0 : i32
    %c0_i32_1 = arith.constant 0 : i32
    return %c0_i32, %c0_i32_0 : i32, i32
  }
  func.func @transform_10(%arg0: i32) -> (i32, i32) {
    %c0_i32 = arith.constant 0 : i32
    %c0_i32_0 = arith.constant 0 : i32
    %c0_i32_1 = arith.constant 0 : i32
    return %c0_i32, %c0_i32_0 : i32, i32
  }
  func.func @transform_11(%arg0: i32) -> (i32, i32) {
    %c0_i32 = arith.constant 0 : i32
    %c0_i32_0 = arith.constant 0 : i32
    %c0_i32_1 = arith.constant 0 : i32
    return %c0_i32, %c0_i32_0 : i32, i32
  }
  func.func @transform_12(%arg0: i32) -> (i32, i32) {
    %c0_i32 = arith.constant 0 : i32
    %c0_i32_0 = arith.constant 0 : i32
    %c0_i32_1 = arith.constant 0 : i32
    return %c0_i32, %c0_i32_0 : i32, i32
  }
  func.func @transform_13(%arg0: i32) -> (i32, i32) {
    %c0_i32 = arith.constant 0 : i32
    %c0_i32_0 = arith.constant 0 : i32
    %c0_i32_1 = arith.constant 0 : i32
    return %c0_i32, %c0_i32_0 : i32, i32
  }
  func.func @transform_14(%arg0: i32) -> (i32, i32) {
    %c0_i32 = arith.constant 0 : i32
    %c0_i32_0 = arith.constant 0 : i32
    %c0_i32_1 = arith.constant 0 : i32
    return %c0_i32, %c0_i32_0 : i32, i32
  }
  func.func @transform_15(%arg0: i32) -> (i32, i32) {
    %c0_i32 = arith.constant 0 : i32
    %c0_i32_0 = arith.constant 0 : i32
    %c0_i32_1 = arith.constant 0 : i32
    return %c0_i32, %c0_i32_0 : i32, i32
  }
  func.func @transform_16(%arg0: i32) -> (i32, i32) {
    %c0_i32 = arith.constant 0 : i32
    %c0_i32_0 = arith.constant 0 : i32
    %c0_i32_1 = arith.constant 0 : i32
    return %c0_i32, %c0_i32_0 : i32, i32
  }
  func.func @transform_17(%arg0: i32) -> (i32, i32) {
    %c0_i32 = arith.constant 0 : i32
    %c0_i32_0 = arith.constant 0 : i32
    %c0_i32_1 = arith.constant 0 : i32
    return %c0_i32, %c0_i32_0 : i32, i32
  }
  func.func @transform_18(%arg0: i32) -> (i32, i32) {
    %c0_i32 = arith.constant 0 : i32
    %c0_i32_0 = arith.constant 0 : i32
    %c0_i32_1 = arith.constant 0 : i32
    return %c0_i32, %c0_i32_0 : i32, i32
  }
  func.func @transform_19(%arg0: i32) -> (i32, i32) {
    %c0_i32 = arith.constant 0 : i32
    %c0_i32_0 = arith.constant 0 : i32
    %c0_i32_1 = arith.constant 0 : i32
    return %c0_i32, %c0_i32_0 : i32, i32
  }
  func.func @transform_20(%arg0: i32) -> (i32, i32) {
    %c0_i32 = arith.constant 0 : i32
    %c0_i32_0 = arith.constant 0 : i32
    %c0_i32_1 = arith.constant 0 : i32
    return %c0_i32, %c0_i32_0 : i32, i32
  }
  func.func @transform_21(%arg0: i32) -> (i32, i32) {
    %c0_i32 = arith.constant 0 : i32
    %c0_i32_0 = arith.constant 0 : i32
    %c0_i32_1 = arith.constant 0 : i32
    return %c0_i32, %c0_i32_0 : i32, i32
  }
  func.func @transform_22(%arg0: i32) -> (i32, i32) {
    %c0_i32 = arith.constant 0 : i32
    %c0_i32_0 = arith.constant 0 : i32
    %c0_i32_1 = arith.constant 0 : i32
    return %c0_i32, %c0_i32_0 : i32, i32
  }
  func.func @transform_23(%arg0: i32) -> (i32, i32) {
    %c0_i32 = arith.constant 0 : i32
    %c0_i32_0 = arith.constant 0 : i32
    %c0_i32_1 = arith.constant 0 : i32
    return %c0_i32, %c0_i32_0 : i32, i32
  }
  func.func @transform_24(%arg0: i32) -> (i32, i32) {
    %c0_i32 = arith.constant 0 : i32
    %c0_i32_0 = arith.constant 0 : i32
    %c0_i32_1 = arith.constant 0 : i32
    return %c0_i32, %c0_i32_0 : i32, i32
  }
  func.func @transform_25(%arg0: i32) -> (i32, i32) {
    %c0_i32 = arith.constant 0 : i32
    %c0_i32_0 = arith.constant 0 : i32
    %c0_i32_1 = arith.constant 0 : i32
    return %c0_i32, %c0_i32_0 : i32, i32
  }
  func.func @transform_26(%arg0: i32) -> (i32, i32) {
    %c0_i32 = arith.constant 0 : i32
    %c0_i32_0 = arith.constant 0 : i32
    %c0_i32_1 = arith.constant 0 : i32
    return %c0_i32, %c0_i32_0 : i32, i32
  }
  func.func @transform_27(%arg0: i32) -> (i32, i32) {
    %c0_i32 = arith.constant 0 : i32
    %c0_i32_0 = arith.constant 0 : i32
    %c0_i32_1 = arith.constant 0 : i32
    return %c0_i32, %c0_i32_0 : i32, i32
  }
  func.func @transform_28(%arg0: i32) -> (i32, i32) {
    %c0_i32 = arith.constant 0 : i32
    %c0_i32_0 = arith.constant 0 : i32
    return %arg0, %c0_i32 : i32, i32
  }
}

</mosaic_0001>

<llo_original>
// kernel: hradnet_forward.1
$region0: #{hradnet_forward.1}
  #allocation0 [shape = 'u32[]', space=smem, size = 0x4, offset = 0x4, fixed_abs, tag = 'smem constant byte address 0x4 - core index']
  #allocation1 [shape = 'u32[144,128]{1,0:T(1,128)}', space=vmem, size = 0x12000, scoped, tag = 'internal scratch']
  %s0 = inlined_call_operand.vmem [shape: f32[2,1024], index: 0, kind: input, shape index: {}]
  %s1 = inlined_call_operand.vmem [shape: f32[2,6], index: 1, kind: input, shape index: {}]
  %s2 = inlined_call_operand.vmem [shape: s8[1024,512], index: 2, kind: input, shape index: {}]
  %s3 = inlined_call_operand.vmem [shape: s8[512,256], index: 3, kind: input, shape index: {}]
  %s4 = inlined_call_operand.vmem [shape: s8[256,128], index: 4, kind: input, shape index: {}]
  %s5 = inlined_call_operand.vmem [shape: s8[128,64], index: 5, kind: input, shape index: {}]
  %s6 = inlined_call_operand.vmem [shape: f32[1,512], index: 6, kind: input, shape index: {}]
  %s7 = inlined_call_operand.vmem [shape: f32[1,256], index: 7, kind: input, shape index: {}]
  %s8 = inlined_call_operand.vmem [shape: f32[1,128], index: 8, kind: input, shape index: {}]
  %s9 = inlined_call_operand.vmem [shape: f32[1,64], index: 9, kind: input, shape index: {}]
  %s10 = inlined_call_operand.vmem [shape: f32[1,512], index: 10, kind: input, shape index: {}]
  %s11 = inlined_call_operand.vmem [shape: f32[1,256], index: 11, kind: input, shape index: {}]
  %s12 = inlined_call_operand.vmem [shape: f32[1,128], index: 12, kind: input, shape index: {}]
  %s13 = inlined_call_operand.vmem [shape: f32[1,64], index: 13, kind: input, shape index: {}]
  %s14 = inlined_call_operand.vmem [shape: bf16[1024,4], index: 14, kind: input, shape index: {}]
  %s15 = inlined_call_operand.vmem [shape: bf16[512,8], index: 15, kind: input, shape index: {}]
  %s16 = inlined_call_operand.vmem [shape: bf16[256,16], index: 16, kind: input, shape index: {}]
  %s17 = inlined_call_operand.vmem [shape: bf16[128,32], index: 17, kind: input, shape index: {}]
  %s18 = inlined_call_operand.vmem [shape: bf16[64,64], index: 18, kind: input, shape index: {}]
  %s19 = inlined_call_operand.vmem [shape: bf16[4,224], index: 19, kind: input, shape index: {}]
  %s20 = inlined_call_operand.vmem [shape: bf16[8,224], index: 20, kind: input, shape index: {}]
  %s21 = inlined_call_operand.vmem [shape: bf16[16,224], index: 21, kind: input, shape index: {}]
  %s22 = inlined_call_operand.vmem [shape: bf16[32,224], index: 22, kind: input, shape index: {}]
  %s23 = inlined_call_operand.vmem [shape: bf16[64,224], index: 23, kind: input, shape index: {}]
  %s24 = inlined_call_operand.vmem [shape: f32[1,224], index: 24, kind: input, shape index: {}]
  %s25 = inlined_call_operand.vmem [shape: bf16[6,224], index: 25, kind: input, shape index: {}]
  %s26 = inlined_call_operand.vmem [shape: f32[1,224], index: 26, kind: input, shape index: {}]
  %s27 = inlined_call_operand.vmem [shape: bf16[224,32], index: 27, kind: input, shape index: {}]
  %s28 = inlined_call_operand.hbm [shape: f32[2,32], index: 28, kind: output, shape index: {}]
  %s29 = sld [smem:[#allocation0]]
  $region122: #{hradnet_forward.1} parent=0
    _
  %s31 = ssub.s32 1, %s29
  %s32 = scalar_select 0, %s31, %s29
  $region1: #{hradnet_forward.1} parent=0
    #allocation2 [shape = 'u8[1024]{0}', space=vmem, size = 0x400, scoped, tag = 'output window, operand 0, single buffered']
    #allocation3 [shape = 's32[1]{0}', space=sflag, size = 0x4, scoped, tag = 'scoped memory for hradnet_forward.1']
    %33 = vsyncpa [#allocation3], 0
    // Predicated region
    $region2: #{hradnet_forward.1} parent=1 // pred_check
      _
    $region3: #{hradnet_forward.1} parent=1 // pred_check_branch
      %35 = sbr.rel (0) target = $region5
    $region4: #{hradnet_forward.1} parent=1 // pred_region
      _
    $region5: #{hradnet_forward.1} parent=1 // pred_fallthru
      _
    // Predicated region
    $region6: #{hradnet_forward.1} parent=1 // pred_check
      _
    $region7: #{hradnet_forward.1} parent=1 // pred_check_branch
      %37 = sbr.rel (0) target = $region9
    $region8: #{hradnet_forward.1} parent=1 // pred_region
      _
    $region9: #{hradnet_forward.1} parent=1 // pred_fallthru
      _
    // Predicated region
    $region10: #{hradnet_forward.1} parent=1 // pred_check
      _
    $region11: #{hradnet_forward.1} parent=1 // pred_check_branch
      %39 = sbr.rel (0) target = $region13
    $region12: #{hradnet_forward.1} parent=1 // pred_region
      _
    $region13: #{hradnet_forward.1} parent=1 // pred_fallthru
      _
    // Predicated region
    $region14: #{hradnet_forward.1} parent=1 // pred_check
      _
    $region15: #{hradnet_forward.1} parent=1 // pred_check_branch
      %41 = sbr.rel (0) target = $region17
    $region16: #{hradnet_forward.1} parent=1 // pred_region
      _
    $region17: #{hradnet_forward.1} parent=1 // pred_fallthru
      _
    // Predicated region
    $region18: #{hradnet_forward.1} parent=1 // pred_check
      _
    $region19: #{hradnet_forward.1} parent=1 // pred_check_branch
      %43 = sbr.rel (0) target = $region21
    $region20: #{hradnet_forward.1} parent=1 // pred_region
      _
    $region21: #{hradnet_forward.1} parent=1 // pred_fallthru
      _
    // Predicated region
    $region22: #{hradnet_forward.1} parent=1 // pred_check
      _
    $region23: #{hradnet_forward.1} parent=1 // pred_check_branch
      %45 = sbr.rel (0) target = $region25
    $region24: #{hradnet_forward.1} parent=1 // pred_region
      _
    $region25: #{hradnet_forward.1} parent=1 // pred_fallthru
      _
    // Predicated region
    $region26: #{hradnet_forward.1} parent=1 // pred_check
      _
    $region27: #{hradnet_forward.1} parent=1 // pred_check_branch
      %47 = sbr.rel (0) target = $region29
    $region28: #{hradnet_forward.1} parent=1 // pred_region
      _
    $region29: #{hradnet_forward.1} parent=1 // pred_fallthru
      _
    // Predicated region
    $region30: #{hradnet_forward.1} parent=1 // pred_check
      _
    $region31: #{hradnet_forward.1} parent=1 // pred_check_branch
      %49 = sbr.rel (0) target = $region33
    $region32: #{hradnet_forward.1} parent=1 // pred_region
      _
    $region33: #{hradnet_forward.1} parent=1 // pred_fallthru
      _
    // Predicated region
    $region34: #{hradnet_forward.1} parent=1 // pred_check
      _
    $region35: #{hradnet_forward.1} parent=1 // pred_check_branch
      %51 = sbr.rel (0) target = $region37
    $region36: #{hradnet_forward.1} parent=1 // pred_region
      _
    $region37: #{hradnet_forward.1} parent=1 // pred_fallthru
      _
    // Predicated region
    $region38: #{hradnet_forward.1} parent=1 // pred_check
      _
    $region39: #{hradnet_forward.1} parent=1 // pred_check_branch
      %53 = sbr.rel (0) target = $region41
    $region40: #{hradnet_forward.1} parent=1 // pred_region
      _
    $region41: #{hradnet_forward.1} parent=1 // pred_fallthru
      _
    // Predicated region
    $region42: #{hradnet_forward.1} parent=1 // pred_check
      _
    $region43: #{hradnet_forward.1} parent=1 // pred_check_branch
      %55 = sbr.rel (0) target = $region45
    $region44: #{hradnet_forward.1} parent=1 // pred_region
      _
    $region45: #{hradnet_forward.1} parent=1 // pred_fallthru
      _
    // Predicated region
    $region46: #{hradnet_forward.1} parent=1 // pred_check
      _
    $region47: #{hradnet_forward.1} parent=1 // pred_check_branch
      %57 = sbr.rel (0) target = $region49
    $region48: #{hradnet_forward.1} parent=1 // pred_region
      _
    $region49: #{hradnet_forward.1} parent=1 // pred_fallthru
      _
    // Predicated region
    $region50: #{hradnet_forward.1} parent=1 // pred_check
      _
    $region51: #{hradnet_forward.1} parent=1 // pred_check_branch
      %59 = sbr.rel (0) target = $region53
    $region52: #{hradnet_forward.1} parent=1 // pred_region
      _
    $region53: #{hradnet_forward.1} parent=1 // pred_fallthru
      _
    // Predicated region
    $region54: #{hradnet_forward.1} parent=1 // pred_check
      _
    $region55: #{hradnet_forward.1} parent=1 // pred_check_branch
      %61 = sbr.rel (0) target = $region57
    $region56: #{hradnet_forward.1} parent=1 // pred_region
      _
    $region57: #{hradnet_forward.1} parent=1 // pred_fallthru
      _
    // Predicated region
    $region58: #{hradnet_forward.1} parent=1 // pred_check
      _
    $region59: #{hradnet_forward.1} parent=1 // pred_check_branch
      %63 = sbr.rel (0) target = $region61
    $region60: #{hradnet_forward.1} parent=1 // pred_region
      _
    $region61: #{hradnet_forward.1} parent=1 // pred_fallthru
      _
    // Predicated region
    $region62: #{hradnet_forward.1} parent=1 // pred_check
      _
    $region63: #{hradnet_forward.1} parent=1 // pred_check_branch
      %65 = sbr.rel (0) target = $region65
    $region64: #{hradnet_forward.1} parent=1 // pred_region
      _
    $region65: #{hradnet_forward.1} parent=1 // pred_fallthru
      _
    // Predicated region
    $region66: #{hradnet_forward.1} parent=1 // pred_check
      _
    $region67: #{hradnet_forward.1} parent=1 // pred_check_branch
      %67 = sbr.rel (0) target = $region69
    $region68: #{hradnet_forward.1} parent=1 // pred_region
      _
    $region69: #{hradnet_forward.1} parent=1 // pred_fallthru
      _
    // Predicated region
    $region70: #{hradnet_forward.1} parent=1 // pred_check
      _
    $region71: #{hradnet_forward.1} parent=1 // pred_check_branch
      %69 = sbr.rel (0) target = $region73
    $region72: #{hradnet_forward.1} parent=1 // pred_region
      _
    $region73: #{hradnet_forward.1} parent=1 // pred_fallthru
      _
    // Predicated region
    $region74: #{hradnet_forward.1} parent=1 // pred_check
      _
    $region75: #{hradnet_forward.1} parent=1 // pred_check_branch
      %71 = sbr.rel (0) target = $region77
    $region76: #{hradnet_forward.1} parent=1 // pred_region
      _
    $region77: #{hradnet_forward.1} parent=1 // pred_fallthru
      _
    // Predicated region
    $region78: #{hradnet_forward.1} parent=1 // pred_check
      _
    $region79: #{hradnet_forward.1} parent=1 // pred_check_branch
      %73 = sbr.rel (0) target = $region81
    $region80: #{hradnet_forward.1} parent=1 // pred_region
      _
    $region81: #{hradnet_forward.1} parent=1 // pred_fallthru
      _
    // Predicated region
    $region82: #{hradnet_forward.1} parent=1 // pred_check
      _
    $region83: #{hradnet_forward.1} parent=1 // pred_check_branch
      %75 = sbr.rel (0) target = $region85
    $region84: #{hradnet_forward.1} parent=1 // pred_region
      _
    $region85: #{hradnet_forward.1} parent=1 // pred_fallthru
      _
    // Predicated region
    $region86: #{hradnet_forward.1} parent=1 // pred_check
      _
    $region87: #{hradnet_forward.1} parent=1 // pred_check_branch
      %77 = sbr.rel (0) target = $region89
    $region88: #{hradnet_forward.1} parent=1 // pred_region
      _
    $region89: #{hradnet_forward.1} parent=1 // pred_fallthru
      _
    // Predicated region
    $region90: #{hradnet_forward.1} parent=1 // pred_check
      _
    $region91: #{hradnet_forward.1} parent=1 // pred_check_branch
      %79 = sbr.rel (0) target = $region93
    $region92: #{hradnet_forward.1} parent=1 // pred_region
      _
    $region93: #{hradnet_forward.1} parent=1 // pred_fallthru
      _
    // Predicated region
    $region94: #{hradnet_forward.1} parent=1 // pred_check
      _
    $region95: #{hradnet_forward.1} parent=1 // pred_check_branch
      %81 = sbr.rel (0) target = $region97
    $region96: #{hradnet_forward.1} parent=1 // pred_region
      _
    $region97: #{hradnet_forward.1} parent=1 // pred_fallthru
      _
    // Predicated region
    $region98: #{hradnet_forward.1} parent=1 // pred_check
      _
    $region99: #{hradnet_forward.1} parent=1 // pred_check_branch
      %83 = sbr.rel (0) target = $region101
    $region100: #{hradnet_forward.1} parent=1 // pred_region
      _
    $region101: #{hradnet_forward.1} parent=1 // pred_fallthru
      _
    // Predicated region
    $region102: #{hradnet_forward.1} parent=1 // pred_check
      _
    $region103: #{hradnet_forward.1} parent=1 // pred_check_branch
      %85 = sbr.rel (0) target = $region105
    $region104: #{hradnet_forward.1} parent=1 // pred_region
      _
    $region105: #{hradnet_forward.1} parent=1 // pred_fallthru
      _
    // Predicated region
    $region106: #{hradnet_forward.1} parent=1 // pred_check
      _
    $region107: #{hradnet_forward.1} parent=1 // pred_check_branch
      %87 = sbr.rel (0) target = $region109
    $region108: #{hradnet_forward.1} parent=1 // pred_region
      _
    $region109: #{hradnet_forward.1} parent=1 // pred_fallthru
      _
    // Predicated region
    $region110: #{hradnet_forward.1} parent=1 // pred_check
      _
    $region111: #{hradnet_forward.1} parent=1 // pred_check_branch
      %89 = sbr.rel (0) target = $region113
    $region112: #{hradnet_forward.1} parent=1 // pred_region
      _
    $region113: #{hradnet_forward.1} parent=1 // pred_fallthru
      _
    %v91 = vld [vmem:[%s0] sm:$0xff]
    %v92 = vld [vmem:[%s0 + $0x8] sm:$0xff]
    %vm93 = vcmp.gt.f32.partialorder %v91, 0.0
    %vm94 = vcmp.gt.f32.partialorder %v92, 0.0
    %v95 = vmin.f32 %v91, 0.0
    %v96 = vmin.f32 %v92, 0.0
    %v97 = vmul.f32 %v95, 1.442695
    %v98 = vpow.pop %v97
    %v99 = vmul.f32 %v96, 1.442695
    %v100 = vpow.pop %v99
    %v101 = vsub.f32 %v98, 1.0
    %v102 = vsub.f32 %v100, 1.0
    %v103 = vmul.f32 %v101, 1.6732632
    %v104 = vmul.f32 %v102, 1.6732632
    %v105 = vsel %vm93, %v91, %v103
    %v106 = vsel %vm94, %v92, %v104
    %v107 = vmul.f32 %v105, 1.050701
    %v108 = vmul.f32 %v106, 1.050701
    %v111 = vcombine.high %v107, %v107
    %v113 = vunpack.c.l.s4 1983009808
    %v114 = vunpack.c.0.s8 %v113
    %v115 = vlaneseq
    %v116 = vshrl.u32 %v115, 7
    %v117 = vsub.s32 %v114, %v116
    %v118 = vrot.slane %v107, %v117
    %v120 = vunpack.c.l.s4 1983009808
    %v121 = vunpack.c.0.s8 %v120
    %v122 = vlaneseq
    %v123 = vshrl.u32 %v122, 7
    %v124 = vsub.s32 %v121, %v123
    %v125 = vrot.slane %v111, %v124
    %v126 = vcombine.high %v118, %v118
    %v127 = vcombine.high %v125, %v125
    %v128 = vcombine.high %v108, %v108
    %v130 = vunpack.c.l.s4 1983009808
    %v131 = vunpack.c.0.s8 %v130
    %v132 = vlaneseq
    %v133 = vshrl.u32 %v132, 7
    %v134 = vsub.s32 %v131, %v133
    %v135 = vrot.slane %v108, %v134
    %v137 = vunpack.c.l.s4 1983009808
    %v138 = vunpack.c.0.s8 %v137
    %v139 = vlaneseq
    %v140 = vshrl.u32 %v139, 7
    %v141 = vsub.s32 %v138, %v140
    %v142 = vrot.slane %v128, %v141
    %v143 = vcombine.high %v135, %v135
    %v144 = vcombine.high %v142, %v142
    %v153 = vpack.c.bf16 %v118, %v118
    %v154 = vpack.c.bf16 %v126, %v126
    %v155 = vpack.c.bf16 %v125, %v125
    %v156 = vpack.c.bf16 %v127, %v127
    %v157 = vpack.c.bf16 %v135, %v135
    %v158 = vpack.c.bf16 %v143, %v143
    %v159 = vpack.c.bf16 %v142, %v142
    %v160 = vpack.c.bf16 %v144, %v144
    %v161 = vld [vmem:[%s24] sm:$0x3]
    %v162 = vld [vmem:[%s14] sm:$0xf]
    %v163 = vld [vmem:[%s14 + $0x4] sm:$0xf]
    %v164 = vld [vmem:[%s14 + $0x8] sm:$0xf]
    %v165 = vld [vmem:[%s14 + $0xc] sm:$0xf]
    %v166 = vld [vmem:[%s14 + $0x10] sm:$0xf]
    %v167 = vld [vmem:[%s14 + $0x14] sm:$0xf]
    %v168 = vld [vmem:[%s14 + $0x18] sm:$0xf]
    %v169 = vld [vmem:[%s14 + $0x1c] sm:$0xf]
    %v170 = vld [vmem:[%s14 + $0x20] sm:$0xf]
    %v171 = vld [vmem:[%s14 + $0x24] sm:$0xf]
    %v172 = vld [vmem:[%s14 + $0x28] sm:$0xf]
    %v173 = vld [vmem:[%s14 + $0x2c] sm:$0xf]
    %v174 = vld [vmem:[%s14 + $0x30] sm:$0xf]
    %v175 = vld [vmem:[%s14 + $0x34] sm:$0xf]
    %v176 = vld [vmem:[%s14 + $0x38] sm:$0xf]
    %v177 = vld [vmem:[%s14 + $0x3c] sm:$0xf]
    %v178 = vld [vmem:[%s14 + $0x40] sm:$0xf]
    %v179 = vld [vmem:[%s14 + $0x44] sm:$0xf]
    %v180 = vld [vmem:[%s14 + $0x48] sm:$0xf]
    %v181 = vld [vmem:[%s14 + $0x4c] sm:$0xf]
    %v182 = vld [vmem:[%s14 + $0x50] sm:$0xf]
    %v183 = vld [vmem:[%s14 + $0x54] sm:$0xf]
    %v184 = vld [vmem:[%s14 + $0x58] sm:$0xf]
    %v185 = vld [vmem:[%s14 + $0x5c] sm:$0xf]
    %v186 = vld [vmem:[%s14 + $0x60] sm:$0xf]
    %v187 = vld [vmem:[%s14 + $0x64] sm:$0xf]
    %v188 = vld [vmem:[%s14 + $0x68] sm:$0xf]
    %v189 = vld [vmem:[%s14 + $0x6c] sm:$0xf]
    %v190 = vld [vmem:[%s14 + $0x70] sm:$0xf]
    %v191 = vld [vmem:[%s14 + $0x74] sm:$0xf]
    %v192 = vld [vmem:[%s14 + $0x78] sm:$0xf]
    %v193 = vld [vmem:[%s14 + $0x7c] sm:$0xf]
    %v194 = vld [vmem:[%s14 + $0x80] sm:$0xf]
    %v195 = vld [vmem:[%s14 + $0x84] sm:$0xf]
    %v196 = vld [vmem:[%s14 + $0x88] sm:$0xf]
    %v197 = vld [vmem:[%s14 + $0x8c] sm:$0xf]
    %v198 = vld [vmem:[%s14 + $0x90] sm:$0xf]
    %v199 = vld [vmem:[%s14 + $0x94] sm:$0xf]
    %v200 = vld [vmem:[%s14 + $0x98] sm:$0xf]
    %v201 = vld [vmem:[%s14 + $0x9c] sm:$0xf]
    %v202 = vld [vmem:[%s14 + $0xa0] sm:$0xf]
    %v203 = vld [vmem:[%s14 + $0xa4] sm:$0xf]
    %v204 = vld [vmem:[%s14 + $0xa8] sm:$0xf]
    %v205 = vld [vmem:[%s14 + $0xac] sm:$0xf]
    %v206 = vld [vmem:[%s14 + $0xb0] sm:$0xf]
    %v207 = vld [vmem:[%s14 + $0xb4] sm:$0xf]
    %v208 = vld [vmem:[%s14 + $0xb8] sm:$0xf]
    %v209 = vld [vmem:[%s14 + $0xbc] sm:$0xf]
    %v210 = vld [vmem:[%s14 + $0xc0] sm:$0xf]
    %v211 = vld [vmem:[%s14 + $0xc4] sm:$0xf]
    %v212 = vld [vmem:[%s14 + $0xc8] sm:$0xf]
    %v213 = vld [vmem:[%s14 + $0xcc] sm:$0xf]
    %v214 = vld [vmem:[%s14 + $0xd0] sm:$0xf]
    %v215 = vld [vmem:[%s14 + $0xd4] sm:$0xf]
    %v216 = vld [vmem:[%s14 + $0xd8] sm:$0xf]
    %v217 = vld [vmem:[%s14 + $0xdc] sm:$0xf]
    %v218 = vld [vmem:[%s14 + $0xe0] sm:$0xf]
    %v219 = vld [vmem:[%s14 + $0xe4] sm:$0xf]
    %v220 = vld [vmem:[%s14 + $0xe8] sm:$0xf]
    %v221 = vld [vmem:[%s14 + $0xec] sm:$0xf]
    %v222 = vld [vmem:[%s14 + $0xf0] sm:$0xf]
    %v223 = vld [vmem:[%s14 + $0xf4] sm:$0xf]
    %v224 = vld [vmem:[%s14 + $0xf8] sm:$0xf]
    %v225 = vld [vmem:[%s14 + $0xfc] sm:$0xf]
    %v226 = vld [vmem:[%s14 + $0x100] sm:$0xf]
    %v227 = vld [vmem:[%s14 + $0x104] sm:$0xf]
    %v228 = vld [vmem:[%s14 + $0x108] sm:$0xf]
    %v229 = vld [vmem:[%s14 + $0x10c] sm:$0xf]
    %v230 = vld [vmem:[%s14 + $0x110] sm:$0xf]
    %v231 = vld [vmem:[%s14 + $0x114] sm:$0xf]
    %v232 = vld [vmem:[%s14 + $0x118] sm:$0xf]
    %v233 = vld [vmem:[%s14 + $0x11c] sm:$0xf]
    %v234 = vld [vmem:[%s14 + $0x120] sm:$0xf]
    %v235 = vld [vmem:[%s14 + $0x124] sm:$0xf]
    %v236 = vld [vmem:[%s14 + $0x128] sm:$0xf]
    %v237 = vld [vmem:[%s14 + $0x12c] sm:$0xf]
    %v238 = vld [vmem:[%s14 + $0x130] sm:$0xf]
    %v239 = vld [vmem:[%s14 + $0x134] sm:$0xf]
    %v240 = vld [vmem:[%s14 + $0x138] sm:$0xf]
    %v241 = vld [vmem:[%s14 + $0x13c] sm:$0xf]
    %v242 = vld [vmem:[%s14 + $0x140] sm:$0xf]
    %v243 = vld [vmem:[%s14 + $0x144] sm:$0xf]
    %v244 = vld [vmem:[%s14 + $0x148] sm:$0xf]
    %v245 = vld [vmem:[%s14 + $0x14c] sm:$0xf]
    %v246 = vld [vmem:[%s14 + $0x150] sm:$0xf]
    %v247 = vld [vmem:[%s14 + $0x154] sm:$0xf]
    %v248 = vld [vmem:[%s14 + $0x158] sm:$0xf]
    %v249 = vld [vmem:[%s14 + $0x15c] sm:$0xf]
    %v250 = vld [vmem:[%s14 + $0x160] sm:$0xf]
    %v251 = vld [vmem:[%s14 + $0x164] sm:$0xf]
    %v252 = vld [vmem:[%s14 + $0x168] sm:$0xf]
    %v253 = vld [vmem:[%s14 + $0x16c] sm:$0xf]
    %v254 = vld [vmem:[%s14 + $0x170] sm:$0xf]
    %v255 = vld [vmem:[%s14 + $0x174] sm:$0xf]
    %v256 = vld [vmem:[%s14 + $0x178] sm:$0xf]
    %v257 = vld [vmem:[%s14 + $0x17c] sm:$0xf]
    %v258 = vld [vmem:[%s14 + $0x180] sm:$0xf]
    %v259 = vld [vmem:[%s14 + $0x184] sm:$0xf]
    %v260 = vld [vmem:[%s14 + $0x188] sm:$0xf]
    %v261 = vld [vmem:[%s14 + $0x18c] sm:$0xf]
    %v262 = vld [vmem:[%s14 + $0x190] sm:$0xf]
    %v263 = vld [vmem:[%s14 + $0x194] sm:$0xf]
    %v264 = vld [vmem:[%s14 + $0x198] sm:$0xf]
    %v265 = vld [vmem:[%s14 + $0x19c] sm:$0xf]
    %v266 = vld [vmem:[%s14 + $0x1a0] sm:$0xf]
    %v267 = vld [vmem:[%s14 + $0x1a4] sm:$0xf]
    %v268 = vld [vmem:[%s14 + $0x1a8] sm:$0xf]
    %v269 = vld [vmem:[%s14 + $0x1ac] sm:$0xf]
    %v270 = vld [vmem:[%s14 + $0x1b0] sm:$0xf]
    %v271 = vld [vmem:[%s14 + $0x1b4] sm:$0xf]
    %v272 = vld [vmem:[%s14 + $0x1b8] sm:$0xf]
    %v273 = vld [vmem:[%s14 + $0x1bc] sm:$0xf]
    %v274 = vld [vmem:[%s14 + $0x1c0] sm:$0xf]
    %v275 = vld [vmem:[%s14 + $0x1c4] sm:$0xf]
    %v276 = vld [vmem:[%s14 + $0x1c8] sm:$0xf]
    %v277 = vld [vmem:[%s14 + $0x1cc] sm:$0xf]
    %v278 = vld [vmem:[%s14 + $0x1d0] sm:$0xf]
    %v279 = vld [vmem:[%s14 + $0x1d4] sm:$0xf]
    %v280 = vld [vmem:[%s14 + $0x1d8] sm:$0xf]
    %v281 = vld [vmem:[%s14 + $0x1dc] sm:$0xf]
    %v282 = vld [vmem:[%s14 + $0x1e0] sm:$0xf]
    %v283 = vld [vmem:[%s14 + $0x1e4] sm:$0xf]
    %v284 = vld [vmem:[%s14 + $0x1e8] sm:$0xf]
    %v285 = vld [vmem:[%s14 + $0x1ec] sm:$0xf]
    %v286 = vld [vmem:[%s14 + $0x1f0] sm:$0xf]
    %v287 = vld [vmem:[%s14 + $0x1f4] sm:$0xf]
    %v288 = vld [vmem:[%s14 + $0x1f8] sm:$0xf]
    %v289 = vld [vmem:[%s14 + $0x1fc] sm:$0xf]
    %v418 = vunpack.c.l.b16 %v162
    %v419 = vunpack.c.l.b16 %v163
    %v420 = vunpack.c.l.b16 %v164
    %v421 = vunpack.c.l.b16 %v165
    %v422 = vunpack.c.l.b16 %v166
    %v423 = vunpack.c.l.b16 %v167
    %v424 = vunpack.c.l.b16 %v168
    %v425 = vunpack.c.l.b16 %v169
    %v426 = vunpack.c.l.b16 %v170
    %v427 = vunpack.c.l.b16 %v171
    %v428 = vunpack.c.l.b16 %v172
    %v429 = vunpack.c.l.b16 %v173
    %v430 = vunpack.c.l.b16 %v174
    %v431 = vunpack.c.l.b16 %v175
    %v432 = vunpack.c.l.b16 %v176
    %v433 = vunpack.c.l.b16 %v177
    %v434 = vunpack.c.l.b16 %v178
    %v435 = vunpack.c.l.b16 %v179
    %v436 = vunpack.c.l.b16 %v180
    %v437 = vunpack.c.l.b16 %v181
    %v438 = vunpack.c.l.b16 %v182
    %v439 = vunpack.c.l.b16 %v183
    %v440 = vunpack.c.l.b16 %v184
    %v441 = vunpack.c.l.b16 %v185
    %v442 = vunpack.c.l.b16 %v186
    %v443 = vunpack.c.l.b16 %v187
    %v444 = vunpack.c.l.b16 %v188
    %v445 = vunpack.c.l.b16 %v189
    %v446 = vunpack.c.l.b16 %v190
    %v447 = vunpack.c.l.b16 %v191
    %v448 = vunpack.c.l.b16 %v192
    %v449 = vunpack.c.l.b16 %v193
    %v450 = vunpack.c.l.b16 %v194
    %v451 = vunpack.c.l.b16 %v195
    %v452 = vunpack.c.l.b16 %v196
    %v453 = vunpack.c.l.b16 %v197
    %v454 = vunpack.c.l.b16 %v198
    %v455 = vunpack.c.l.b16 %v199
    %v456 = vunpack.c.l.b16 %v200
    %v457 = vunpack.c.l.b16 %v201
    %v458 = vunpack.c.l.b16 %v202
    %v459 = vunpack.c.l.b16 %v203
    %v460 = vunpack.c.l.b16 %v204
    %v461 = vunpack.c.l.b16 %v205
    %v462 = vunpack.c.l.b16 %v206
    %v463 = vunpack.c.l.b16 %v207
    %v464 = vunpack.c.l.b16 %v208
    %v465 = vunpack.c.l.b16 %v209
    %v466 = vunpack.c.l.b16 %v210
    %v467 = vunpack.c.l.b16 %v211
    %v468 = vunpack.c.l.b16 %v212
    %v469 = vunpack.c.l.b16 %v213
    %v470 = vunpack.c.l.b16 %v214
    %v471 = vunpack.c.l.b16 %v215
    %v472 = vunpack.c.l.b16 %v216
    %v473 = vunpack.c.l.b16 %v217
    %v474 = vunpack.c.l.b16 %v218
    %v475 = vunpack.c.l.b16 %v219
    %v476 = vunpack.c.l.b16 %v220
    %v477 = vunpack.c.l.b16 %v221
    %v478 = vunpack.c.l.b16 %v222
    %v479 = vunpack.c.l.b16 %v223
    %v480 = vunpack.c.l.b16 %v224
    %v481 = vunpack.c.l.b16 %v225
    %v482 = vunpack.c.l.b16 %v226
    %v483 = vunpack.c.l.b16 %v227
    %v484 = vunpack.c.l.b16 %v228
    %v485 = vunpack.c.l.b16 %v229
    %v486 = vunpack.c.l.b16 %v230
    %v487 = vunpack.c.l.b16 %v231
    %v488 = vunpack.c.l.b16 %v232
    %v489 = vunpack.c.l.b16 %v233
    %v490 = vunpack.c.l.b16 %v234
    %v491 = vunpack.c.l.b16 %v235
    %v492 = vunpack.c.l.b16 %v236
    %v493 = vunpack.c.l.b16 %v237
    %v494 = vunpack.c.l.b16 %v238
    %v495 = vunpack.c.l.b16 %v239
    %v496 = vunpack.c.l.b16 %v240
    %v497 = vunpack.c.l.b16 %v241
    %v498 = vunpack.c.l.b16 %v242
    %v499 = vunpack.c.l.b16 %v243
    %v500 = vunpack.c.l.b16 %v244
    %v501 = vunpack.c.l.b16 %v245
    %v502 = vunpack.c.l.b16 %v246
    %v503 = vunpack.c.l.b16 %v247
    %v504 = vunpack.c.l.b16 %v248
    %v505 = vunpack.c.l.b16 %v249
    %v506 = vunpack.c.l.b16 %v250
    %v507 = vunpack.c.l.b16 %v251
    %v508 = vunpack.c.l.b16 %v252
    %v509 = vunpack.c.l.b16 %v253
    %v510 = vunpack.c.l.b16 %v254
    %v511 = vunpack.c.l.b16 %v255
    %v512 = vunpack.c.l.b16 %v256
    %v513 = vunpack.c.l.b16 %v257
    %v514 = vunpack.c.l.b16 %v258
    %v515 = vunpack.c.l.b16 %v259
    %v516 = vunpack.c.l.b16 %v260
    %v517 = vunpack.c.l.b16 %v261
    %v518 = vunpack.c.l.b16 %v262
    %v519 = vunpack.c.l.b16 %v263
    %v520 = vunpack.c.l.b16 %v264
    %v521 = vunpack.c.l.b16 %v265
    %v522 = vunpack.c.l.b16 %v266
    %v523 = vunpack.c.l.b16 %v267
    %v524 = vunpack.c.l.b16 %v268
    %v525 = vunpack.c.l.b16 %v269
    %v526 = vunpack.c.l.b16 %v270
    %v527 = vunpack.c.l.b16 %v271
    %v528 = vunpack.c.l.b16 %v272
    %v529 = vunpack.c.l.b16 %v273
    %v530 = vunpack.c.l.b16 %v274
    %v531 = vunpack.c.l.b16 %v275
    %v532 = vunpack.c.l.b16 %v276
    %v533 = vunpack.c.l.b16 %v277
    %v534 = vunpack.c.l.b16 %v278
    %v535 = vunpack.c.l.b16 %v279
    %v536 = vunpack.c.l.b16 %v280
    %v537 = vunpack.c.l.b16 %v281
    %v538 = vunpack.c.l.b16 %v282
    %v539 = vunpack.c.l.b16 %v283
    %v540 = vunpack.c.l.b16 %v284
    %v541 = vunpack.c.l.b16 %v285
    %v542 = vunpack.c.l.b16 %v286
    %v543 = vunpack.c.l.b16 %v287
    %v544 = vunpack.c.l.b16 %v288
    %v545 = vunpack.c.l.b16 %v289
    %v546 = vpack.c.b16 %v419, %v418
    %v547 = vpack.c.b16 %v421, %v420
    %v548 = vpack.c.b16 %v423, %v422
    %v549 = vpack.c.b16 %v425, %v424
    %v550 = vpack.c.b16 %v427, %v426
    %v551 = vpack.c.b16 %v429, %v428
    %v552 = vpack.c.b16 %v431, %v430
    %v553 = vpack.c.b16 %v433, %v432
    %v554 = vpack.c.b16 %v435, %v434
    %v555 = vpack.c.b16 %v437, %v436
    %v556 = vpack.c.b16 %v439, %v438
    %v557 = vpack.c.b16 %v441, %v440
    %v558 = vpack.c.b16 %v443, %v442
    %v559 = vpack.c.b16 %v445, %v444
    %v560 = vpack.c.b16 %v447, %v446
    %v561 = vpack.c.b16 %v449, %v448
    %v562 = vpack.c.b16 %v451, %v450
    %v563 = vpack.c.b16 %v453, %v452
    %v564 = vpack.c.b16 %v455, %v454
    %v565 = vpack.c.b16 %v457, %v456
    %v566 = vpack.c.b16 %v459, %v458
    %v567 = vpack.c.b16 %v461, %v460
    %v568 = vpack.c.b16 %v463, %v462
    %v569 = vpack.c.b16 %v465, %v464
    %v570 = vpack.c.b16 %v467, %v466
    %v571 = vpack.c.b16 %v469, %v468
    %v572 = vpack.c.b16 %v471, %v470
    %v573 = vpack.c.b16 %v473, %v472
    %v574 = vpack.c.b16 %v475, %v474
    %v575 = vpack.c.b16 %v477, %v476
    %v576 = vpack.c.b16 %v479, %v478
    %v577 = vpack.c.b16 %v481, %v480
    %v578 = vpack.c.b16 %v483, %v482
    %v579 = vpack.c.b16 %v485, %v484
    %v580 = vpack.c.b16 %v487, %v486
    %v581 = vpack.c.b16 %v489, %v488
    %v582 = vpack.c.b16 %v491, %v490
    %v583 = vpack.c.b16 %v493, %v492
    %v584 = vpack.c.b16 %v495, %v494
    %v585 = vpack.c.b16 %v497, %v496
    %v586 = vpack.c.b16 %v499, %v498
    %v587 = vpack.c.b16 %v501, %v500
    %v588 = vpack.c.b16 %v503, %v502
    %v589 = vpack.c.b16 %v505, %v504
    %v590 = vpack.c.b16 %v507, %v506
    %v591 = vpack.c.b16 %v509, %v508
    %v592 = vpack.c.b16 %v511, %v510
    %v593 = vpack.c.b16 %v513, %v512
    %v594 = vpack.c.b16 %v515, %v514
    %v595 = vpack.c.b16 %v517, %v516
    %v596 = vpack.c.b16 %v519, %v518
    %v597 = vpack.c.b16 %v521, %v520
    %v598 = vpack.c.b16 %v523, %v522
    %v599 = vpack.c.b16 %v525, %v524
    %v600 = vpack.c.b16 %v527, %v526
    %v601 = vpack.c.b16 %v529, %v528
    %v602 = vpack.c.b16 %v531, %v530
    %v603 = vpack.c.b16 %v533, %v532
    %v604 = vpack.c.b16 %v535, %v534
    %v605 = vpack.c.b16 %v537, %v536
    %v606 = vpack.c.b16 %v539, %v538
    %v607 = vpack.c.b16 %v541, %v540
    %v608 = vpack.c.b16 %v543, %v542
    %v609 = vpack.c.b16 %v545, %v544
    %674 = vmatprep.subr.bf16.mxu0 0
    %675 = vmatpush1.bf16.msra.mxu0 %v546
    %676 = vmatprep.subr.bf16.mxu0 0
    %677 = vmatpush1.bf16.msra.mxu0 %v547
    %678 = vmatprep.subr.bf16.mxu0 0
    %679 = vmatpush1.bf16.msra.mxu0 %v548
    %680 = vmatprep.subr.bf16.mxu0 0
    %681 = vmatpush1.bf16.msra.mxu0 %v549
    %682 = vmatprep.subr.bf16.mxu0 0
    %683 = vmatpush1.bf16.msra.mxu0 %v550
    %684 = vmatprep.subr.bf16.mxu0 0
    %685 = vmatpush1.bf16.msra.mxu0 %v551
    %686 = vmatprep.subr.bf16.mxu0 0
    %687 = vmatpush1.bf16.msra.mxu0 %v552
    %688 = vmatprep.subr.bf16.mxu0 0
    %689 = vmatpush1.bf16.msra.mxu0 %v553
    %690 = vmatprep.subr.bf16.mxu0 0
    %691 = vmatpush1.bf16.msra.mxu0 %v554
    %692 = vmatprep.subr.bf16.mxu0 0
    %693 = vmatpush1.bf16.msra.mxu0 %v555
    %694 = vmatprep.subr.bf16.mxu0 0
    %695 = vmatpush1.bf16.msra.mxu0 %v556
    %696 = vmatprep.subr.bf16.mxu0 0
    %697 = vmatpush1.bf16.msra.mxu0 %v557
    %698 = vmatprep.subr.bf16.mxu0 0
    %699 = vmatpush1.bf16.msra.mxu0 %v558
    %700 = vmatprep.subr.bf16.mxu0 0
    %701 = vmatpush1.bf16.msra.mxu0 %v559
    %702 = vmatprep.subr.bf16.mxu0 0
    %703 = vmatpush1.bf16.msra.mxu0 %v560
    %704 = vmatprep.subr.bf16.mxu0 0
    %705 = vmatpush1.bf16.msra.mxu0 %v561
    %706 = vmatprep.mubr.bf16.mxu0 %v154
    %707 = vmatmul.mubr.bf16.gmra.mrb[0].mxu0 %v153
    %v708 = vpop.f32.mrb[0].mxu0
    %v709 = vadd.f32 0.0, %v708
    %v710 = vpop.f32.mrb[0].mxu0
    %v711 = vpop.f32.mrb[0].mxu0
    %v712 = vpop.f32.mrb[0].mxu0
    %713 = vdwg.mxu0
    %714 = vmatprep.subr.bf16.mxu0 0
    %715 = vmatpush1.bf16.msra.mxu0 %v562
    %716 = vmatprep.subr.bf16.mxu0 0
    %717 = vmatpush1.bf16.msra.mxu0 %v563
    %718 = vmatprep.subr.bf16.mxu0 0
    %719 = vmatpush1.bf16.msra.mxu0 %v564
    %720 = vmatprep.subr.bf16.mxu0 0
    %721 = vmatpush1.bf16.msra.mxu0 %v565
    %722 = vmatprep.subr.bf16.mxu0 0
    %723 = vmatpush1.bf16.msra.mxu0 %v566
    %724 = vmatprep.subr.bf16.mxu0 0
    %725 = vmatpush1.bf16.msra.mxu0 %v567
    %726 = vmatprep.subr.bf16.mxu0 0
    %727 = vmatpush1.bf16.msra.mxu0 %v568
    %728 = vmatprep.subr.bf16.mxu0 0
    %729 = vmatpush1.bf16.msra.mxu0 %v569
    %730 = vmatprep.subr.bf16.mxu0 0
    %731 = vmatpush1.bf16.msra.mxu0 %v570
    %732 = vmatprep.subr.bf16.mxu0 0
    %733 = vmatpush1.bf16.msra.mxu0 %v571
    %734 = vmatprep.subr.bf16.mxu0 0
    %735 = vmatpush1.bf16.msra.mxu0 %v572
    %736 = vmatprep.subr.bf16.mxu0 0
    %737 = vmatpush1.bf16.msra.mxu0 %v573
    %738 = vmatprep.subr.bf16.mxu0 0
    %739 = vmatpush1.bf16.msra.mxu0 %v574
    %740 = vmatprep.subr.bf16.mxu0 0
    %741 = vmatpush1.bf16.msra.mxu0 %v575
    %742 = vmatprep.subr.bf16.mxu0 0
    %743 = vmatpush1.bf16.msra.mxu0 %v576
    %744 = vmatprep.subr.bf16.mxu0 0
    %745 = vmatpush1.bf16.msra.mxu0 %v577
    %746 = vmatprep.mubr.bf16.mxu0 %v156
    %747 = vmatmul.mubr.bf16.gmra.mrb[0].mxu0 %v155
    %v748 = vpop.f32.mrb[0].mxu0
    %v749 = vadd.f32 %v709, %v748
    %v750 = vpop.f32.mrb[0].mxu0
    %v751 = vpop.f32.mrb[0].mxu0
    %v752 = vpop.f32.mrb[0].mxu0
    %753 = vdwg.mxu0
    %754 = vmatprep.subr.bf16.mxu0 0
    %755 = vmatpush1.bf16.msra.mxu0 %v578
    %756 = vmatprep.subr.bf16.mxu0 0
    %757 = vmatpush1.bf16.msra.mxu0 %v579
    %758 = vmatprep.subr.bf16.mxu0 0
    %759 = vmatpush1.bf16.msra.mxu0 %v580
    %760 = vmatprep.subr.bf16.mxu0 0
    %761 = vmatpush1.bf16.msra.mxu0 %v581
    %762 = vmatprep.subr.bf16.mxu0 0
    %763 = vmatpush1.bf16.msra.mxu0 %v582
    %764 = vmatprep.subr.bf16.mxu0 0
    %765 = vmatpush1.bf16.msra.mxu0 %v583
    %766 = vmatprep.subr.bf16.mxu0 0
    %767 = vmatpush1.bf16.msra.mxu0 %v584
    %768 = vmatprep.subr.bf16.mxu0 0
    %769 = vmatpush1.bf16.msra.mxu0 %v585
    %770 = vmatprep.subr.bf16.mxu0 0
    %771 = vmatpush1.bf16.msra.mxu0 %v586
    %772 = vmatprep.subr.bf16.mxu0 0
    %773 = vmatpush1.bf16.msra.mxu0 %v587
    %774 = vmatprep.subr.bf16.mxu0 0
    %775 = vmatpush1.bf16.msra.mxu0 %v588
    %776 = vmatprep.subr.bf16.mxu0 0
    %777 = vmatpush1.bf16.msra.mxu0 %v589
    %778 = vmatprep.subr.bf16.mxu0 0
    %779 = vmatpush1.bf16.msra.mxu0 %v590
    %780 = vmatprep.subr.bf16.mxu0 0
    %781 = vmatpush1.bf16.msra.mxu0 %v591
    %782 = vmatprep.subr.bf16.mxu0 0
    %783 = vmatpush1.bf16.msra.mxu0 %v592
    %784 = vmatprep.subr.bf16.mxu0 0
    %785 = vmatpush1.bf16.msra.mxu0 %v593
    %786 = vmatprep.mubr.bf16.mxu0 %v158
    %787 = vmatmul.mubr.bf16.gmra.mrb[0].mxu0 %v157
    %v788 = vpop.f32.mrb[0].mxu0
    %v789 = vadd.f32 %v749, %v788
    %v790 = vpop.f32.mrb[0].mxu0
    %v791 = vpop.f32.mrb[0].mxu0
    %v792 = vpop.f32.mrb[0].mxu0
    %793 = vdwg.mxu0
    %794 = vmatprep.subr.bf16.mxu0 0
    %795 = vmatpush1.bf16.msra.mxu0 %v594
    %796 = vmatprep.subr.bf16.mxu0 0
    %797 = vmatpush1.bf16.msra.mxu0 %v595
    %798 = vmatprep.subr.bf16.mxu0 0
    %799 = vmatpush1.bf16.msra.mxu0 %v596
    %800 = vmatprep.subr.bf16.mxu0 0
    %801 = vmatpush1.bf16.msra.mxu0 %v597
    %802 = vmatprep.subr.bf16.mxu0 0
    %803 = vmatpush1.bf16.msra.mxu0 %v598
    %804 = vmatprep.subr.bf16.mxu0 0
    %805 = vmatpush1.bf16.msra.mxu0 %v599
    %806 = vmatprep.subr.bf16.mxu0 0
    %807 = vmatpush1.bf16.msra.mxu0 %v600
    %808 = vmatprep.subr.bf16.mxu0 0
    %809 = vmatpush1.bf16.msra.mxu0 %v601
    %810 = vmatprep.subr.bf16.mxu0 0
    %811 = vmatpush1.bf16.msra.mxu0 %v602
    %812 = vmatprep.subr.bf16.mxu0 0
    %813 = vmatpush1.bf16.msra.mxu0 %v603
    %814 = vmatprep.subr.bf16.mxu0 0
    %815 = vmatpush1.bf16.msra.mxu0 %v604
    %816 = vmatprep.subr.bf16.mxu0 0
    %817 = vmatpush1.bf16.msra.mxu0 %v605
    %818 = vmatprep.subr.bf16.mxu0 0
    %819 = vmatpush1.bf16.msra.mxu0 %v606
    %820 = vmatprep.subr.bf16.mxu0 0
    %821 = vmatpush1.bf16.msra.mxu0 %v607
    %822 = vmatprep.subr.bf16.mxu0 0
    %823 = vmatpush1.bf16.msra.mxu0 %v608
    %824 = vmatprep.subr.bf16.mxu0 0
    %825 = vmatpush1.bf16.msra.mxu0 %v609
    %826 = vmatprep.mubr.bf16.mxu0 %v160
    %827 = vmatmul.mubr.bf16.gmra.mrb[0].mxu0 %v159
    %v828 = vpop.f32.mrb[0].mxu0
    %v829 = vadd.f32 %v789, %v828
    %v830 = vpop.f32.mrb[0].mxu0
    %v831 = vpop.f32.mrb[0].mxu0
    %v832 = vpop.f32.mrb[0].mxu0
    %833 = vdwg.mxu0
    %v834 = vpack.c.bf16 %v829, %v829
    %v835 = vld [vmem:[%s19] sm:$0xf]
    %v838 = vunpack.c.l.s4 1983009808
    %v839 = vunpack.c.0.s8 %v838
    %v840 = vlaneseq
    %v841 = vshrl.u32 %v840, 7
    %v842 = vsub.s32 %v839, %v841
    %v843 = vrot.slane %v835, %v842
    %v844 = vcombine.high %v843, %v843
    %vm845 = vcmask 31744
    %v847 = vsel %vm845, %v834, 0
    %vm849 = vcmask 1041408
    %v851 = vsel %vm849, %v843, 0
    %v854 = vsel %vm849, %v844, 0
    %856 = vmatprep.subr.bf16.mxu0 %v854
    %857 = vmatpush1.bf16.msra.mxu0 %v851
    %858 = vmatprep.subr.bf16.mxu0 0
    %859 = vmatpush1.bf16.msra.mxu0 0
    %860 = vmatprep.subr.bf16.mxu0 0
    %861 = vmatpush1.bf16.msra.mxu0 0
    %862 = vmatprep.subr.bf16.mxu0 0
    %863 = vmatpush1.bf16.msra.mxu0 0
    %864 = vmatprep.subr.bf16.mxu0 0
    %865 = vmatpush1.bf16.msra.mxu0 0
    %866 = vmatprep.subr.bf16.mxu0 0
    %867 = vmatpush1.bf16.msra.mxu0 0
    %868 = vmatprep.subr.bf16.mxu0 0
    %869 = vmatpush1.bf16.msra.mxu0 0
    %870 = vmatprep.subr.bf16.mxu0 0
    %871 = vmatpush1.bf16.msra.mxu0 0
    %872 = vmatprep.subr.bf16.mxu0 0
    %873 = vmatpush1.bf16.msra.mxu0 0
    %874 = vmatprep.subr.bf16.mxu0 0
    %875 = vmatpush1.bf16.msra.mxu0 0
    %876 = vmatprep.subr.bf16.mxu0 0
    %877 = vmatpush1.bf16.msra.mxu0 0
    %878 = vmatprep.subr.bf16.mxu0 0
    %879 = vmatpush1.bf16.msra.mxu0 0
    %880 = vmatprep.subr.bf16.mxu0 0
    %881 = vmatpush1.bf16.msra.mxu0 0
    %882 = vmatprep.subr.bf16.mxu0 0
    %883 = vmatpush1.bf16.msra.mxu0 0
    %884 = vmatprep.subr.bf16.mxu0 0
    %885 = vmatpush1.bf16.msra.mxu0 0
    %886 = vmatprep.subr.bf16.mxu0 0
    %887 = vmatpush1.bf16.msra.mxu0 0
    %888 = vmatprep.mubr.bf16.mxu0 0
    %889 = vmatmul.mubr.bf16.gmra.mrb[0].mxu0 %v847
    %v890 = vpop.f32.mrb[0].mxu0
    %v891 = vadd.f32 0.0, %v890
    %v892 = vpop.f32.mrb[0].mxu0
    %v893 = vadd.f32 0.0, %v892
    %v894 = vpop.f32.mrb[0].mxu0
    %v895 = vpop.f32.mrb[0].mxu0
    %896 = vdwg.mxu0
    %v898 = vlaneseq
    %v899 = vshrl.u32 %v898, 7
    %v900 = vsub.s32 0, %v899
    %v901 = vrot.slane %v161, %v900
    %v902 = vlaneseq
    %v903 = vshrl.u32 %v902, 7
    %v904 = vsub.s32 1, %v903
    %v905 = vrot.slane %v161, %v904
    %v908 = vadd.f32 %v901, %v891
    %v909 = vadd.f32 %v905, %v893
    %v910 = vld [vmem:[%s2] sm:$0xff]
    %v911 = vld [vmem:[%s2 + $0x8] sm:$0xff]
    %v912 = vld [vmem:[%s2 + $0x10] sm:$0xff]
    %v913 = vld [vmem:[%s2 + $0x18] sm:$0xff]
    %v914 = vld [vmem:[%s2 + $0x20] sm:$0xff]
    %v915 = vld [vmem:[%s2 + $0x28] sm:$0xff]
    %v916 = vld [vmem:[%s2 + $0x30] sm:$0xff]
    %v917 = vld [vmem:[%s2 + $0x38] sm:$0xff]
    %v918 = vld [vmem:[%s2 + $0x40] sm:$0xff]
    %v919 = vld [vmem:[%s2 + $0x48] sm:$0xff]
    %v920 = vld [vmem:[%s2 + $0x50] sm:$0xff]
    %v921 = vld [vmem:[%s2 + $0x58] sm:$0xff]
    %v922 = vld [vmem:[%s2 + $0x60] sm:$0xff]
    %v923 = vld [vmem:[%s2 + $0x68] sm:$0xff]
    %v924 = vld [vmem:[%s2 + $0x70] sm:$0xff]
    %v925 = vld [vmem:[%s2 + $0x78] sm:$0xff]
    %v926 = vld [vmem:[%s2 + $0x80] sm:$0xff]
    %v927 = vld [vmem:[%s2 + $0x88] sm:$0xff]
    %v928 = vld [vmem:[%s2 + $0x90] sm:$0xff]
    %v929 = vld [vmem:[%s2 + $0x98] sm:$0xff]
    %v930 = vld [vmem:[%s2 + $0xa0] sm:$0xff]
    %v931 = vld [vmem:[%s2 + $0xa8] sm:$0xff]
    %v932 = vld [vmem:[%s2 + $0xb0] sm:$0xff]
    %v933 = vld [vmem:[%s2 + $0xb8] sm:$0xff]
    %v934 = vld [vmem:[%s2 + $0xc0] sm:$0xff]
    %v935 = vld [vmem:[%s2 + $0xc8] sm:$0xff]
    %v936 = vld [vmem:[%s2 + $0xd0] sm:$0xff]
    %v937 = vld [vmem:[%s2 + $0xd8] sm:$0xff]
    %v938 = vld [vmem:[%s2 + $0xe0] sm:$0xff]
    %v939 = vld [vmem:[%s2 + $0xe8] sm:$0xff]
    %v940 = vld [vmem:[%s2 + $0xf0] sm:$0xff]
    %v941 = vld [vmem:[%s2 + $0xf8] sm:$0xff]
    %v942 = vld [vmem:[%s2 + $0x100] sm:$0xff]
    %v943 = vld [vmem:[%s2 + $0x108] sm:$0xff]
    %v944 = vld [vmem:[%s2 + $0x110] sm:$0xff]
    %v945 = vld [vmem:[%s2 + $0x118] sm:$0xff]
    %v946 = vld [vmem:[%s2 + $0x120] sm:$0xff]
    %v947 = vld [vmem:[%s2 + $0x128] sm:$0xff]
    %v948 = vld [vmem:[%s2 + $0x130] sm:$0xff]
    %v949 = vld [vmem:[%s2 + $0x138] sm:$0xff]
    %v950 = vld [vmem:[%s2 + $0x140] sm:$0xff]
    %v951 = vld [vmem:[%s2 + $0x148] sm:$0xff]
    %v952 = vld [vmem:[%s2 + $0x150] sm:$0xff]
    %v953 = vld [vmem:[%s2 + $0x158] sm:$0xff]
    %v954 = vld [vmem:[%s2 + $0x160] sm:$0xff]
    %v955 = vld [vmem:[%s2 + $0x168] sm:$0xff]
    %v956 = vld [vmem:[%s2 + $0x170] sm:$0xff]
    %v957 = vld [vmem:[%s2 + $0x178] sm:$0xff]
    %v958 = vld [vmem:[%s2 + $0x180] sm:$0xff]
    %v959 = vld [vmem:[%s2 + $0x188] sm:$0xff]
    %v960 = vld [vmem:[%s2 + $0x190] sm:$0xff]
    %v961 = vld [vmem:[%s2 + $0x198] sm:$0xff]
    %v962 = vld [vmem:[%s2 + $0x1a0] sm:$0xff]
    %v963 = vld [vmem:[%s2 + $0x1a8] sm:$0xff]
    %v964 = vld [vmem:[%s2 + $0x1b0] sm:$0xff]
    %v965 = vld [vmem:[%s2 + $0x1b8] sm:$0xff]
    %v966 = vld [vmem:[%s2 + $0x1c0] sm:$0xff]
    %v967 = vld [vmem:[%s2 + $0x1c8] sm:$0xff]
    %v968 = vld [vmem:[%s2 + $0x1d0] sm:$0xff]
    %v969 = vld [vmem:[%s2 + $0x1d8] sm:$0xff]
    %v970 = vld [vmem:[%s2 + $0x1e0] sm:$0xff]
    %v971 = vld [vmem:[%s2 + $0x1e8] sm:$0xff]
    %v972 = vld [vmem:[%s2 + $0x1f0] sm:$0xff]
    %v973 = vld [vmem:[%s2 + $0x1f8] sm:$0xff]
    %v974 = vld [vmem:[%s2 + $0x200] sm:$0xff]
    %v975 = vld [vmem:[%s2 + $0x208] sm:$0xff]
    %v976 = vld [vmem:[%s2 + $0x210] sm:$0xff]
    %v977 = vld [vmem:[%s2 + $0x218] sm:$0xff]
    %v978 = vld [vmem:[%s2 + $0x220] sm:$0xff]
    %v979 = vld [vmem:[%s2 + $0x228] sm:$0xff]
    %v980 = vld [vmem:[%s2 + $0x230] sm:$0xff]
    %v981 = vld [vmem:[%s2 + $0x238] sm:$0xff]
    %v982 = vld [vmem:[%s2 + $0x240] sm:$0xff]
    %v983 = vld [vmem:[%s2 + $0x248] sm:$0xff]
    %v984 = vld [vmem:[%s2 + $0x250] sm:$0xff]
    %v985 = vld [vmem:[%s2 + $0x258] sm:$0xff]
    %v986 = vld [vmem:[%s2 + $0x260] sm:$0xff]
    %v987 = vld [vmem:[%s2 + $0x268] sm:$0xff]
    %v988 = vld [vmem:[%s2 + $0x270] sm:$0xff]
    %v989 = vld [vmem:[%s2 + $0x278] sm:$0xff]
    %v990 = vld [vmem:[%s2 + $0x280] sm:$0xff]
    %v991 = vld [vmem:[%s2 + $0x288] sm:$0xff]
    %v992 = vld [vmem:[%s2 + $0x290] sm:$0xff]
    %v993 = vld [vmem:[%s2 + $0x298] sm:$0xff]
    %v994 = vld [vmem:[%s2 + $0x2a0] sm:$0xff]
    %v995 = vld [vmem:[%s2 + $0x2a8] sm:$0xff]
    %v996 = vld [vmem:[%s2 + $0x2b0] sm:$0xff]
    %v997 = vld [vmem:[%s2 + $0x2b8] sm:$0xff]
    %v998 = vld [vmem:[%s2 + $0x2c0] sm:$0xff]
    %v999 = vld [vmem:[%s2 + $0x2c8] sm:$0xff]
    %v1000 = vld [vmem:[%s2 + $0x2d0] sm:$0xff]
    %v1001 = vld [vmem:[%s2 + $0x2d8] sm:$0xff]
    %v1002 = vld [vmem:[%s2 + $0x2e0] sm:$0xff]
    %v1003 = vld [vmem:[%s2 + $0x2e8] sm:$0xff]
    %v1004 = vld [vmem:[%s2 + $0x2f0] sm:$0xff]
    %v1005 = vld [vmem:[%s2 + $0x2f8] sm:$0xff]
    %v1006 = vld [vmem:[%s2 + $0x300] sm:$0xff]
    %v1007 = vld [vmem:[%s2 + $0x308] sm:$0xff]
    %v1008 = vld [vmem:[%s2 + $0x310] sm:$0xff]
    %v1009 = vld [vmem:[%s2 + $0x318] sm:$0xff]
    %v1010 = vld [vmem:[%s2 + $0x320] sm:$0xff]
    %v1011 = vld [vmem:[%s2 + $0x328] sm:$0xff]
    %v1012 = vld [vmem:[%s2 + $0x330] sm:$0xff]
    %v1013 = vld [vmem:[%s2 + $0x338] sm:$0xff]
    %v1014 = vld [vmem:[%s2 + $0x340] sm:$0xff]
    %v1015 = vld [vmem:[%s2 + $0x348] sm:$0xff]
    %v1016 = vld [vmem:[%s2 + $0x350] sm:$0xff]
    %v1017 = vld [vmem:[%s2 + $0x358] sm:$0xff]
    %v1018 = vld [vmem:[%s2 + $0x360] sm:$0xff]
    %v1019 = vld [vmem:[%s2 + $0x368] sm:$0xff]
    %v1020 = vld [vmem:[%s2 + $0x370] sm:$0xff]
    %v1021 = vld [vmem:[%s2 + $0x378] sm:$0xff]
    %v1022 = vld [vmem:[%s2 + $0x380] sm:$0xff]
    %v1023 = vld [vmem:[%s2 + $0x388] sm:$0xff]
    %v1024 = vld [vmem:[%s2 + $0x390] sm:$0xff]
    %v1025 = vld [vmem:[%s2 + $0x398] sm:$0xff]
    %v1026 = vld [vmem:[%s2 + $0x3a0] sm:$0xff]
    %v1027 = vld [vmem:[%s2 + $0x3a8] sm:$0xff]
    %v1028 = vld [vmem:[%s2 + $0x3b0] sm:$0xff]
    %v1029 = vld [vmem:[%s2 + $0x3b8] sm:$0xff]
    %v1030 = vld [vmem:[%s2 + $0x3c0] sm:$0xff]
    %v1031 = vld [vmem:[%s2 + $0x3c8] sm:$0xff]
    %v1032 = vld [vmem:[%s2 + $0x3d0] sm:$0xff]
    %v1033 = vld [vmem:[%s2 + $0x3d8] sm:$0xff]
    %v1034 = vld [vmem:[%s2 + $0x3e0] sm:$0xff]
    %v1035 = vld [vmem:[%s2 + $0x3e8] sm:$0xff]
    %v1036 = vld [vmem:[%s2 + $0x3f0] sm:$0xff]
    %v1037 = vld [vmem:[%s2 + $0x3f8] sm:$0xff]
    %v1038 = vunpack.c.l.s8.bf16 %v910
    %v1039 = vunpack.c.l.s8.bf16 %v911
    %v1040 = vunpack.c.l.s8.bf16 %v912
    %v1041 = vunpack.c.l.s8.bf16 %v913
    %v1042 = vunpack.c.h.s8.bf16 %v910
    %v1043 = vunpack.c.h.s8.bf16 %v911
    %v1044 = vunpack.c.h.s8.bf16 %v912
    %v1045 = vunpack.c.h.s8.bf16 %v913
    %v1046 = vunpack.c.l.s8.bf16 %v914
    %v1047 = vunpack.c.l.s8.bf16 %v915
    %v1048 = vunpack.c.l.s8.bf16 %v916
    %v1049 = vunpack.c.l.s8.bf16 %v917
    %v1050 = vunpack.c.h.s8.bf16 %v914
    %v1051 = vunpack.c.h.s8.bf16 %v915
    %v1052 = vunpack.c.h.s8.bf16 %v916
    %v1053 = vunpack.c.h.s8.bf16 %v917
    %v1054 = vunpack.c.l.s8.bf16 %v918
    %v1055 = vunpack.c.l.s8.bf16 %v919
    %v1056 = vunpack.c.l.s8.bf16 %v920
    %v1057 = vunpack.c.l.s8.bf16 %v921
    %v1058 = vunpack.c.h.s8.bf16 %v918
    %v1059 = vunpack.c.h.s8.bf16 %v919
    %v1060 = vunpack.c.h.s8.bf16 %v920
    %v1061 = vunpack.c.h.s8.bf16 %v921
    %v1062 = vunpack.c.l.s8.bf16 %v922
    %v1063 = vunpack.c.l.s8.bf16 %v923
    %v1064 = vunpack.c.l.s8.bf16 %v924
    %v1065 = vunpack.c.l.s8.bf16 %v925
    %v1066 = vunpack.c.h.s8.bf16 %v922
    %v1067 = vunpack.c.h.s8.bf16 %v923
    %v1068 = vunpack.c.h.s8.bf16 %v924
    %v1069 = vunpack.c.h.s8.bf16 %v925
    %v1070 = vunpack.c.l.s8.bf16 %v926
    %v1071 = vunpack.c.l.s8.bf16 %v927
    %v1072 = vunpack.c.l.s8.bf16 %v928
    %v1073 = vunpack.c.l.s8.bf16 %v929
    %v1074 = vunpack.c.h.s8.bf16 %v926
    %v1075 = vunpack.c.h.s8.bf16 %v927
    %v1076 = vunpack.c.h.s8.bf16 %v928
    %v1077 = vunpack.c.h.s8.bf16 %v929
    %v1078 = vunpack.c.l.s8.bf16 %v930
    %v1079 = vunpack.c.l.s8.bf16 %v931
    %v1080 = vunpack.c.l.s8.bf16 %v932
    %v1081 = vunpack.c.l.s8.bf16 %v933
    %v1082 = vunpack.c.h.s8.bf16 %v930
    %v1083 = vunpack.c.h.s8.bf16 %v931
    %v1084 = vunpack.c.h.s8.bf16 %v932
    %v1085 = vunpack.c.h.s8.bf16 %v933
    %v1086 = vunpack.c.l.s8.bf16 %v934
    %v1087 = vunpack.c.l.s8.bf16 %v935
    %v1088 = vunpack.c.l.s8.bf16 %v936
    %v1089 = vunpack.c.l.s8.bf16 %v937
    %v1090 = vunpack.c.h.s8.bf16 %v934
    %v1091 = vunpack.c.h.s8.bf16 %v935
    %v1092 = vunpack.c.h.s8.bf16 %v936
    %v1093 = vunpack.c.h.s8.bf16 %v937
    %v1094 = vunpack.c.l.s8.bf16 %v938
    %v1095 = vunpack.c.l.s8.bf16 %v939
    %v1096 = vunpack.c.l.s8.bf16 %v940
    %v1097 = vunpack.c.l.s8.bf16 %v941
    %v1098 = vunpack.c.h.s8.bf16 %v938
    %v1099 = vunpack.c.h.s8.bf16 %v939
    %v1100 = vunpack.c.h.s8.bf16 %v940
    %v1101 = vunpack.c.h.s8.bf16 %v941
    %v1102 = vunpack.c.l.s8.bf16 %v942
    %v1103 = vunpack.c.l.s8.bf16 %v943
    %v1104 = vunpack.c.l.s8.bf16 %v944
    %v1105 = vunpack.c.l.s8.bf16 %v945
    %v1106 = vunpack.c.h.s8.bf16 %v942
    %v1107 = vunpack.c.h.s8.bf16 %v943
    %v1108 = vunpack.c.h.s8.bf16 %v944
    %v1109 = vunpack.c.h.s8.bf16 %v945
    %v1110 = vunpack.c.l.s8.bf16 %v946
    %v1111 = vunpack.c.l.s8.bf16 %v947
    %v1112 = vunpack.c.l.s8.bf16 %v948
    %v1113 = vunpack.c.l.s8.bf16 %v949
    %v1114 = vunpack.c.h.s8.bf16 %v946
    %v1115 = vunpack.c.h.s8.bf16 %v947
    %v1116 = vunpack.c.h.s8.bf16 %v948
    %v1117 = vunpack.c.h.s8.bf16 %v949
    %v1118 = vunpack.c.l.s8.bf16 %v950
    %v1119 = vunpack.c.l.s8.bf16 %v951
    %v1120 = vunpack.c.l.s8.bf16 %v952
    %v1121 = vunpack.c.l.s8.bf16 %v953
    %v1122 = vunpack.c.h.s8.bf16 %v950
    %v1123 = vunpack.c.h.s8.bf16 %v951
    %v1124 = vunpack.c.h.s8.bf16 %v952
    %v1125 = vunpack.c.h.s8.bf16 %v953
    %v1126 = vunpack.c.l.s8.bf16 %v954
    %v1127 = vunpack.c.l.s8.bf16 %v955
    %v1128 = vunpack.c.l.s8.bf16 %v956
    %v1129 = vunpack.c.l.s8.bf16 %v957
    %v1130 = vunpack.c.h.s8.bf16 %v954
    %v1131 = vunpack.c.h.s8.bf16 %v955
    %v1132 = vunpack.c.h.s8.bf16 %v956
    %v1133 = vunpack.c.h.s8.bf16 %v957
    %v1134 = vunpack.c.l.s8.bf16 %v958
    %v1135 = vunpack.c.l.s8.bf16 %v959
    %v1136 = vunpack.c.l.s8.bf16 %v960
    %v1137 = vunpack.c.l.s8.bf16 %v961
    %v1138 = vunpack.c.h.s8.bf16 %v958
    %v1139 = vunpack.c.h.s8.bf16 %v959
    %v1140 = vunpack.c.h.s8.bf16 %v960
    %v1141 = vunpack.c.h.s8.bf16 %v961
    %v1142 = vunpack.c.l.s8.bf16 %v962
    %v1143 = vunpack.c.l.s8.bf16 %v963
    %v1144 = vunpack.c.l.s8.bf16 %v964
    %v1145 = vunpack.c.l.s8.bf16 %v965
    %v1146 = vunpack.c.h.s8.bf16 %v962
    %v1147 = vunpack.c.h.s8.bf16 %v963
    %v1148 = vunpack.c.h.s8.bf16 %v964
    %v1149 = vunpack.c.h.s8.bf16 %v965
    %v1150 = vunpack.c.l.s8.bf16 %v966
    %v1151 = vunpack.c.l.s8.bf16 %v967
    %v1152 = vunpack.c.l.s8.bf16 %v968
    %v1153 = vunpack.c.l.s8.bf16 %v969
    %v1154 = vunpack.c.h.s8.bf16 %v966
    %v1155 = vunpack.c.h.s8.bf16 %v967
    %v1156 = vunpack.c.h.s8.bf16 %v968
    %v1157 = vunpack.c.h.s8.bf16 %v969
    %v1158 = vunpack.c.l.s8.bf16 %v970
    %v1159 = vunpack.c.l.s8.bf16 %v971
    %v1160 = vunpack.c.l.s8.bf16 %v972
    %v1161 = vunpack.c.l.s8.bf16 %v973
    %v1162 = vunpack.c.h.s8.bf16 %v970
    %v1163 = vunpack.c.h.s8.bf16 %v971
    %v1164 = vunpack.c.h.s8.bf16 %v972
    %v1165 = vunpack.c.h.s8.bf16 %v973
    %v1166 = vunpack.c.l.s8.bf16 %v974
    %v1167 = vunpack.c.l.s8.bf16 %v975
    %v1168 = vunpack.c.l.s8.bf16 %v976
    %v1169 = vunpack.c.l.s8.bf16 %v977
    %v1170 = vunpack.c.h.s8.bf16 %v974
    %v1171 = vunpack.c.h.s8.bf16 %v975
    %v1172 = vunpack.c.h.s8.bf16 %v976
    %v1173 = vunpack.c.h.s8.bf16 %v977
    %v1174 = vunpack.c.l.s8.bf16 %v978
    %v1175 = vunpack.c.l.s8.bf16 %v979
    %v1176 = vunpack.c.l.s8.bf16 %v980
    %v1177 = vunpack.c.l.s8.bf16 %v981
    %v1178 = vunpack.c.h.s8.bf16 %v978
    %v1179 = vunpack.c.h.s8.bf16 %v979
    %v1180 = vunpack.c.h.s8.bf16 %v980
    %v1181 = vunpack.c.h.s8.bf16 %v981
    %v1182 = vunpack.c.l.s8.bf16 %v982
    %v1183 = vunpack.c.l.s8.bf16 %v983
    %v1184 = vunpack.c.l.s8.bf16 %v984
    %v1185 = vunpack.c.l.s8.bf16 %v985
    %v1186 = vunpack.c.h.s8.bf16 %v982
    %v1187 = vunpack.c.h.s8.bf16 %v983
    %v1188 = vunpack.c.h.s8.bf16 %v984
    %v1189 = vunpack.c.h.s8.bf16 %v985
    %v1190 = vunpack.c.l.s8.bf16 %v986
    %v1191 = vunpack.c.l.s8.bf16 %v987
    %v1192 = vunpack.c.l.s8.bf16 %v988
    %v1193 = vunpack.c.l.s8.bf16 %v989
    %v1194 = vunpack.c.h.s8.bf16 %v986
    %v1195 = vunpack.c.h.s8.bf16 %v987
    %v1196 = vunpack.c.h.s8.bf16 %v988
    %v1197 = vunpack.c.h.s8.bf16 %v989
    %v1198 = vunpack.c.l.s8.bf16 %v990
    %v1199 = vunpack.c.l.s8.bf16 %v991
    %v1200 = vunpack.c.l.s8.bf16 %v992
    %v1201 = vunpack.c.l.s8.bf16 %v993
    %v1202 = vunpack.c.h.s8.bf16 %v990
    %v1203 = vunpack.c.h.s8.bf16 %v991
    %v1204 = vunpack.c.h.s8.bf16 %v992
    %v1205 = vunpack.c.h.s8.bf16 %v993
    %v1206 = vunpack.c.l.s8.bf16 %v994
    %v1207 = vunpack.c.l.s8.bf16 %v995
    %v1208 = vunpack.c.l.s8.bf16 %v996
    %v1209 = vunpack.c.l.s8.bf16 %v997
    %v1210 = vunpack.c.h.s8.bf16 %v994
    %v1211 = vunpack.c.h.s8.bf16 %v995
    %v1212 = vunpack.c.h.s8.bf16 %v996
    %v1213 = vunpack.c.h.s8.bf16 %v997
    %v1214 = vunpack.c.l.s8.bf16 %v998
    %v1215 = vunpack.c.l.s8.bf16 %v999
    %v1216 = vunpack.c.l.s8.bf16 %v1000
    %v1217 = vunpack.c.l.s8.bf16 %v1001
    %v1218 = vunpack.c.h.s8.bf16 %v998
    %v1219 = vunpack.c.h.s8.bf16 %v999
    %v1220 = vunpack.c.h.s8.bf16 %v1000
    %v1221 = vunpack.c.h.s8.bf16 %v1001
    %v1222 = vunpack.c.l.s8.bf16 %v1002
    %v1223 = vunpack.c.l.s8.bf16 %v1003
    %v1224 = vunpack.c.l.s8.bf16 %v1004
    %v1225 = vunpack.c.l.s8.bf16 %v1005
    %v1226 = vunpack.c.h.s8.bf16 %v1002
    %v1227 = vunpack.c.h.s8.bf16 %v1003
    %v1228 = vunpack.c.h.s8.bf16 %v1004
    %v1229 = vunpack.c.h.s8.bf16 %v1005
    %v1230 = vunpack.c.l.s8.bf16 %v1006
    %v1231 = vunpack.c.l.s8.bf16 %v1007
    %v1232 = vunpack.c.l.s8.bf16 %v1008
    %v1233 = vunpack.c.l.s8.bf16 %v1009
    %v1234 = vunpack.c.h.s8.bf16 %v1006
    %v1235 = vunpack.c.h.s8.bf16 %v1007
    %v1236 = vunpack.c.h.s8.bf16 %v1008
    %v1237 = vunpack.c.h.s8.bf16 %v1009
    %v1238 = vunpack.c.l.s8.bf16 %v1010
    %v1239 = vunpack.c.l.s8.bf16 %v1011
    %v1240 = vunpack.c.l.s8.bf16 %v1012
    %v1241 = vunpack.c.l.s8.bf16 %v1013
    %v1242 = vunpack.c.h.s8.bf16 %v1010
    %v1243 = vunpack.c.h.s8.bf16 %v1011
    %v1244 = vunpack.c.h.s8.bf16 %v1012
    %v1245 = vunpack.c.h.s8.bf16 %v1013
    %v1246 = vunpack.c.l.s8.bf16 %v1014
    %v1247 = vunpack.c.l.s8.bf16 %v1015
    %v1248 = vunpack.c.l.s8.bf16 %v1016
    %v1249 = vunpack.c.l.s8.bf16 %v1017
    %v1250 = vunpack.c.h.s8.bf16 %v1014
    %v1251 = vunpack.c.h.s8.bf16 %v1015
    %v1252 = vunpack.c.h.s8.bf16 %v1016
    %v1253 = vunpack.c.h.s8.bf16 %v1017
    %v1254 = vunpack.c.l.s8.bf16 %v1018
    %v1255 = vunpack.c.l.s8.bf16 %v1019
    %v1256 = vunpack.c.l.s8.bf16 %v1020
    %v1257 = vunpack.c.l.s8.bf16 %v1021
    %v1258 = vunpack.c.h.s8.bf16 %v1018
    %v1259 = vunpack.c.h.s8.bf16 %v1019
    %v1260 = vunpack.c.h.s8.bf16 %v1020
    %v1261 = vunpack.c.h.s8.bf16 %v1021
    %v1262 = vunpack.c.l.s8.bf16 %v1022
    %v1263 = vunpack.c.l.s8.bf16 %v1023
    %v1264 = vunpack.c.l.s8.bf16 %v1024
    %v1265 = vunpack.c.l.s8.bf16 %v1025
    %v1266 = vunpack.c.h.s8.bf16 %v1022
    %v1267 = vunpack.c.h.s8.bf16 %v1023
    %v1268 = vunpack.c.h.s8.bf16 %v1024
    %v1269 = vunpack.c.h.s8.bf16 %v1025
    %v1270 = vunpack.c.l.s8.bf16 %v1026
    %v1271 = vunpack.c.l.s8.bf16 %v1027
    %v1272 = vunpack.c.l.s8.bf16 %v1028
    %v1273 = vunpack.c.l.s8.bf16 %v1029
    %v1274 = vunpack.c.h.s8.bf16 %v1026
    %v1275 = vunpack.c.h.s8.bf16 %v1027
    %v1276 = vunpack.c.h.s8.bf16 %v1028
    %v1277 = vunpack.c.h.s8.bf16 %v1029
    %v1278 = vunpack.c.l.s8.bf16 %v1030
    %v1279 = vunpack.c.l.s8.bf16 %v1031
    %v1280 = vunpack.c.l.s8.bf16 %v1032
    %v1281 = vunpack.c.l.s8.bf16 %v1033
    %v1282 = vunpack.c.h.s8.bf16 %v1030
    %v1283 = vunpack.c.h.s8.bf16 %v1031
    %v1284 = vunpack.c.h.s8.bf16 %v1032
    %v1285 = vunpack.c.h.s8.bf16 %v1033
    %v1286 = vunpack.c.l.s8.bf16 %v1034
    %v1287 = vunpack.c.l.s8.bf16 %v1035
    %v1288 = vunpack.c.l.s8.bf16 %v1036
    %v1289 = vunpack.c.l.s8.bf16 %v1037
    %v1290 = vunpack.c.h.s8.bf16 %v1034
    %v1291 = vunpack.c.h.s8.bf16 %v1035
    %v1292 = vunpack.c.h.s8.bf16 %v1036
    %v1293 = vunpack.c.h.s8.bf16 %v1037
    %1294 = vmatprep.subr.bf16.mxu0 %v1039
    %1295 = vmatpush1.bf16.msra.mxu0 %v1038
    %1296 = vmatprep.subr.bf16.mxu0 %v1043
    %1297 = vmatpush1.bf16.msra.mxu0 %v1042
    %1298 = vmatprep.subr.bf16.mxu0 %v1047
    %1299 = vmatpush1.bf16.msra.mxu0 %v1046
    %1300 = vmatprep.subr.bf16.mxu0 %v1051
    %1301 = vmatpush1.bf16.msra.mxu0 %v1050
    %1302 = vmatprep.subr.bf16.mxu0 %v1055
    %1303 = vmatpush1.bf16.msra.mxu0 %v1054
    %1304 = vmatprep.subr.bf16.mxu0 %v1059
    %1305 = vmatpush1.bf16.msra.mxu0 %v1058
    %1306 = vmatprep.subr.bf16.mxu0 %v1063
    %1307 = vmatpush1.bf16.msra.mxu0 %v1062
    %1308 = vmatprep.subr.bf16.mxu0 %v1067
    %1309 = vmatpush1.bf16.msra.mxu0 %v1066
    %1310 = vmatprep.subr.bf16.mxu0 %v1071
    %1311 = vmatpush1.bf16.msra.mxu0 %v1070
    %1312 = vmatprep.subr.bf16.mxu0 %v1075
    %1313 = vmatpush1.bf16.msra.mxu0 %v1074
    %1314 = vmatprep.subr.bf16.mxu0 %v1079
    %1315 = vmatpush1.bf16.msra.mxu0 %v1078
    %1316 = vmatprep.subr.bf16.mxu0 %v1083
    %1317 = vmatpush1.bf16.msra.mxu0 %v1082
    %1318 = vmatprep.subr.bf16.mxu0 %v1087
    %1319 = vmatpush1.bf16.msra.mxu0 %v1086
    %1320 = vmatprep.subr.bf16.mxu0 %v1091
    %1321 = vmatpush1.bf16.msra.mxu0 %v1090
    %1322 = vmatprep.subr.bf16.mxu0 %v1095
    %1323 = vmatpush1.bf16.msra.mxu0 %v1094
    %1324 = vmatprep.subr.bf16.mxu0 %v1099
    %1325 = vmatpush1.bf16.msra.mxu0 %v1098
    %1326 = vmatprep.mubr.bf16.mxu0 %v154
    %1327 = vmatmul.mubr.bf16.gmra.mrb[0].mxu0 %v153
    %v1328 = vpop.f32.mrb[0].mxu0
    %v1329 = vadd.f32 0.0, %v1328
    %v1330 = vpop.f32.mrb[0].mxu0
    %v1331 = vadd.f32 0.0, %v1330
    %v1332 = vpop.f32.mrb[0].mxu0
    %v1333 = vpop.f32.mrb[0].mxu0
    %1334 = vdwg.mxu0
    %1335 = vmatprep.subr.bf16.mxu0 %v1103
    %1336 = vmatpush1.bf16.msra.mxu0 %v1102
    %1337 = vmatprep.subr.bf16.mxu0 %v1107
    %1338 = vmatpush1.bf16.msra.mxu0 %v1106
    %1339 = vmatprep.subr.bf16.mxu0 %v1111
    %1340 = vmatpush1.bf16.msra.mxu0 %v1110
    %1341 = vmatprep.subr.bf16.mxu0 %v1115
    %1342 = vmatpush1.bf16.msra.mxu0 %v1114
    %1343 = vmatprep.subr.bf16.mxu0 %v1119
    %1344 = vmatpush1.bf16.msra.mxu0 %v1118
    %1345 = vmatprep.subr.bf16.mxu0 %v1123
    %1346 = vmatpush1.bf16.msra.mxu0 %v1122
    %1347 = vmatprep.subr.bf16.mxu0 %v1127
    %1348 = vmatpush1.bf16.msra.mxu0 %v1126
    %1349 = vmatprep.subr.bf16.mxu0 %v1131
    %1350 = vmatpush1.bf16.msra.mxu0 %v1130
    %1351 = vmatprep.subr.bf16.mxu0 %v1135
    %1352 = vmatpush1.bf16.msra.mxu0 %v1134
    %1353 = vmatprep.subr.bf16.mxu0 %v1139
    %1354 = vmatpush1.bf16.msra.mxu0 %v1138
    %1355 = vmatprep.subr.bf16.mxu0 %v1143
    %1356 = vmatpush1.bf16.msra.mxu0 %v1142
    %1357 = vmatprep.subr.bf16.mxu0 %v1147
    %1358 = vmatpush1.bf16.msra.mxu0 %v1146
    %1359 = vmatprep.subr.bf16.mxu0 %v1151
    %1360 = vmatpush1.bf16.msra.mxu0 %v1150
    %1361 = vmatprep.subr.bf16.mxu0 %v1155
    %1362 = vmatpush1.bf16.msra.mxu0 %v1154
    %1363 = vmatprep.subr.bf16.mxu0 %v1159
    %1364 = vmatpush1.bf16.msra.mxu0 %v1158
    %1365 = vmatprep.subr.bf16.mxu0 %v1163
    %1366 = vmatpush1.bf16.msra.mxu0 %v1162
    %1367 = vmatprep.mubr.bf16.mxu0 %v156
    %1368 = vmatmul.mubr.bf16.gmra.mrb[0].mxu0 %v155
    %v1369 = vpop.f32.mrb[0].mxu0
    %v1370 = vadd.f32 %v1329, %v1369
    %v1371 = vpop.f32.mrb[0].mxu0
    %v1372 = vadd.f32 %v1331, %v1371
    %v1373 = vpop.f32.mrb[0].mxu0
    %v1374 = vpop.f32.mrb[0].mxu0
    %1375 = vdwg.mxu0
    %1376 = vmatprep.subr.bf16.mxu0 %v1167
    %1377 = vmatpush1.bf16.msra.mxu0 %v1166
    %1378 = vmatprep.subr.bf16.mxu0 %v1171
    %1379 = vmatpush1.bf16.msra.mxu0 %v1170
    %1380 = vmatprep.subr.bf16.mxu0 %v1175
    %1381 = vmatpush1.bf16.msra.mxu0 %v1174
    %1382 = vmatprep.subr.bf16.mxu0 %v1179
    %1383 = vmatpush1.bf16.msra.mxu0 %v1178
    %1384 = vmatprep.subr.bf16.mxu0 %v1183
    %1385 = vmatpush1.bf16.msra.mxu0 %v1182
    %1386 = vmatprep.subr.bf16.mxu0 %v1187
    %1387 = vmatpush1.bf16.msra.mxu0 %v1186
    %1388 = vmatprep.subr.bf16.mxu0 %v1191
    %1389 = vmatpush1.bf16.msra.mxu0 %v1190
    %1390 = vmatprep.subr.bf16.mxu0 %v1195
    %1391 = vmatpush1.bf16.msra.mxu0 %v1194
    %1392 = vmatprep.subr.bf16.mxu0 %v1199
    %1393 = vmatpush1.bf16.msra.mxu0 %v1198
    %1394 = vmatprep.subr.bf16.mxu0 %v1203
    %1395 = vmatpush1.bf16.msra.mxu0 %v1202
    %1396 = vmatprep.subr.bf16.mxu0 %v1207
    %1397 = vmatpush1.bf16.msra.mxu0 %v1206
    %1398 = vmatprep.subr.bf16.mxu0 %v1211
    %1399 = vmatpush1.bf16.msra.mxu0 %v1210
    %1400 = vmatprep.subr.bf16.mxu0 %v1215
    %1401 = vmatpush1.bf16.msra.mxu0 %v1214
    %1402 = vmatprep.subr.bf16.mxu0 %v1219
    %1403 = vmatpush1.bf16.msra.mxu0 %v1218
    %1404 = vmatprep.subr.bf16.mxu0 %v1223
    %1405 = vmatpush1.bf16.msra.mxu0 %v1222
    %1406 = vmatprep.subr.bf16.mxu0 %v1227
    %1407 = vmatpush1.bf16.msra.mxu0 %v1226
    %1408 = vmatprep.mubr.bf16.mxu0 %v158
    %1409 = vmatmul.mubr.bf16.gmra.mrb[0].mxu0 %v157
    %v1410 = vpop.f32.mrb[0].mxu0
    %v1411 = vadd.f32 %v1370, %v1410
    %v1412 = vpop.f32.mrb[0].mxu0
    %v1413 = vadd.f32 %v1372, %v1412
    %v1414 = vpop.f32.mrb[0].mxu0
    %v1415 = vpop.f32.mrb[0].mxu0
    %1416 = vdwg.mxu0
    %1417 = vmatprep.subr.bf16.mxu0 %v1231
    %1418 = vmatpush1.bf16.msra.mxu0 %v1230
    %1419 = vmatprep.subr.bf16.mxu0 %v1235
    %1420 = vmatpush1.bf16.msra.mxu0 %v1234
    %1421 = vmatprep.subr.bf16.mxu0 %v1239
    %1422 = vmatpush1.bf16.msra.mxu0 %v1238
    %1423 = vmatprep.subr.bf16.mxu0 %v1243
    %1424 = vmatpush1.bf16.msra.mxu0 %v1242
    %1425 = vmatprep.subr.bf16.mxu0 %v1247
    %1426 = vmatpush1.bf16.msra.mxu0 %v1246
    %1427 = vmatprep.subr.bf16.mxu0 %v1251
    %1428 = vmatpush1.bf16.msra.mxu0 %v1250
    %1429 = vmatprep.subr.bf16.mxu0 %v1255
    %1430 = vmatpush1.bf16.msra.mxu0 %v1254
    %1431 = vmatprep.subr.bf16.mxu0 %v1259
    %1432 = vmatpush1.bf16.msra.mxu0 %v1258
    %1433 = vmatprep.subr.bf16.mxu0 %v1263
    %1434 = vmatpush1.bf16.msra.mxu0 %v1262
    %1435 = vmatprep.subr.bf16.mxu0 %v1267
    %1436 = vmatpush1.bf16.msra.mxu0 %v1266
    %1437 = vmatprep.subr.bf16.mxu0 %v1271
    %1438 = vmatpush1.bf16.msra.mxu0 %v1270
    %1439 = vmatprep.subr.bf16.mxu0 %v1275
    %1440 = vmatpush1.bf16.msra.mxu0 %v1274
    %1441 = vmatprep.subr.bf16.mxu0 %v1279
    %1442 = vmatpush1.bf16.msra.mxu0 %v1278
    %1443 = vmatprep.subr.bf16.mxu0 %v1283
    %1444 = vmatpush1.bf16.msra.mxu0 %v1282
    %1445 = vmatprep.subr.bf16.mxu0 %v1287
    %1446 = vmatpush1.bf16.msra.mxu0 %v1286
    %1447 = vmatprep.subr.bf16.mxu0 %v1291
    %1448 = vmatpush1.bf16.msra.mxu0 %v1290
    %1449 = vmatprep.mubr.bf16.mxu0 %v160
    %1450 = vmatmul.mubr.bf16.gmra.mrb[0].mxu0 %v159
    %v1451 = vpop.f32.mrb[0].mxu0
    %v1452 = vadd.f32 %v1411, %v1451
    %v1453 = vpop.f32.mrb[0].mxu0
    %v1454 = vadd.f32 %v1413, %v1453
    %v1455 = vpop.f32.mrb[0].mxu0
    %v1456 = vpop.f32.mrb[0].mxu0
    %1457 = vdwg.mxu0
    %1458 = vmatprep.subr.bf16.mxu0 %v1041
    %1459 = vmatpush1.bf16.msra.mxu0 %v1040
    %1460 = vmatprep.subr.bf16.mxu0 %v1045
    %1461 = vmatpush1.bf16.msra.mxu0 %v1044
    %1462 = vmatprep.subr.bf16.mxu0 %v1049
    %1463 = vmatpush1.bf16.msra.mxu0 %v1048
    %1464 = vmatprep.subr.bf16.mxu0 %v1053
    %1465 = vmatpush1.bf16.msra.mxu0 %v1052
    %1466 = vmatprep.subr.bf16.mxu0 %v1057
    %1467 = vmatpush1.bf16.msra.mxu0 %v1056
    %1468 = vmatprep.subr.bf16.mxu0 %v1061
    %1469 = vmatpush1.bf16.msra.mxu0 %v1060
    %1470 = vmatprep.subr.bf16.mxu0 %v1065
    %1471 = vmatpush1.bf16.msra.mxu0 %v1064
    %1472 = vmatprep.subr.bf16.mxu0 %v1069
    %1473 = vmatpush1.bf16.msra.mxu0 %v1068
    %1474 = vmatprep.subr.bf16.mxu0 %v1073
    %1475 = vmatpush1.bf16.msra.mxu0 %v1072
    %1476 = vmatprep.subr.bf16.mxu0 %v1077
    %1477 = vmatpush1.bf16.msra.mxu0 %v1076
    %1478 = vmatprep.subr.bf16.mxu0 %v1081
    %1479 = vmatpush1.bf16.msra.mxu0 %v1080
    %1480 = vmatprep.subr.bf16.mxu0 %v1085
    %1481 = vmatpush1.bf16.msra.mxu0 %v1084
    %1482 = vmatprep.subr.bf16.mxu0 %v1089
    %1483 = vmatpush1.bf16.msra.mxu0 %v1088
    %1484 = vmatprep.subr.bf16.mxu0 %v1093
    %1485 = vmatpush1.bf16.msra.mxu0 %v1092
    %1486 = vmatprep.subr.bf16.mxu0 %v1097
    %1487 = vmatpush1.bf16.msra.mxu0 %v1096
    %1488 = vmatprep.subr.bf16.mxu0 %v1101
    %1489 = vmatpush1.bf16.msra.mxu0 %v1100
    %1490 = vmatprep.mubr.bf16.mxu0 %v154
    %1491 = vmatmul.mubr.bf16.gmra.mrb[0].mxu0 %v153
    %v1492 = vpop.f32.mrb[0].mxu0
    %v1493 = vadd.f32 0.0, %v1492
    %v1494 = vpop.f32.mrb[0].mxu0
    %v1495 = vadd.f32 0.0, %v1494
    %v1496 = vpop.f32.mrb[0].mxu0
    %v1497 = vpop.f32.mrb[0].mxu0
    %1498 = vdwg.mxu0
    %1499 = vmatprep.subr.bf16.mxu0 %v1105
    %1500 = vmatpush1.bf16.msra.mxu0 %v1104
    %1501 = vmatprep.subr.bf16.mxu0 %v1109
    %1502 = vmatpush1.bf16.msra.mxu0 %v1108
    %1503 = vmatprep.subr.bf16.mxu0 %v1113
    %1504 = vmatpush1.bf16.msra.mxu0 %v1112
    %1505 = vmatprep.subr.bf16.mxu0 %v1117
    %1506 = vmatpush1.bf16.msra.mxu0 %v1116
    %1507 = vmatprep.subr.bf16.mxu0 %v1121
    %1508 = vmatpush1.bf16.msra.mxu0 %v1120
    %1509 = vmatprep.subr.bf16.mxu0 %v1125
    %1510 = vmatpush1.bf16.msra.mxu0 %v1124
    %1511 = vmatprep.subr.bf16.mxu0 %v1129
    %1512 = vmatpush1.bf16.msra.mxu0 %v1128
    %1513 = vmatprep.subr.bf16.mxu0 %v1133
    %1514 = vmatpush1.bf16.msra.mxu0 %v1132
    %1515 = vmatprep.subr.bf16.mxu0 %v1137
    %1516 = vmatpush1.bf16.msra.mxu0 %v1136
    %1517 = vmatprep.subr.bf16.mxu0 %v1141
    %1518 = vmatpush1.bf16.msra.mxu0 %v1140
    %1519 = vmatprep.subr.bf16.mxu0 %v1145
    %1520 = vmatpush1.bf16.msra.mxu0 %v1144
    %1521 = vmatprep.subr.bf16.mxu0 %v1149
    %1522 = vmatpush1.bf16.msra.mxu0 %v1148
    %1523 = vmatprep.subr.bf16.mxu0 %v1153
    %1524 = vmatpush1.bf16.msra.mxu0 %v1152
    %1525 = vmatprep.subr.bf16.mxu0 %v1157
    %1526 = vmatpush1.bf16.msra.mxu0 %v1156
    %1527 = vmatprep.subr.bf16.mxu0 %v1161
    %1528 = vmatpush1.bf16.msra.mxu0 %v1160
    %1529 = vmatprep.subr.bf16.mxu0 %v1165
    %1530 = vmatpush1.bf16.msra.mxu0 %v1164
    %1531 = vmatprep.mubr.bf16.mxu0 %v156
    %1532 = vmatmul.mubr.bf16.gmra.mrb[0].mxu0 %v155
    %v1533 = vpop.f32.mrb[0].mxu0
    %v1534 = vadd.f32 %v1493, %v1533
    %v1535 = vpop.f32.mrb[0].mxu0
    %v1536 = vadd.f32 %v1495, %v1535
    %v1537 = vpop.f32.mrb[0].mxu0
    %v1538 = vpop.f32.mrb[0].mxu0
    %1539 = vdwg.mxu0
    %1540 = vmatprep.subr.bf16.mxu0 %v1169
    %1541 = vmatpush1.bf16.msra.mxu0 %v1168
    %1542 = vmatprep.subr.bf16.mxu0 %v1173
    %1543 = vmatpush1.bf16.msra.mxu0 %v1172
    %1544 = vmatprep.subr.bf16.mxu0 %v1177
    %1545 = vmatpush1.bf16.msra.mxu0 %v1176
    %1546 = vmatprep.subr.bf16.mxu0 %v1181
    %1547 = vmatpush1.bf16.msra.mxu0 %v1180
    %1548 = vmatprep.subr.bf16.mxu0 %v1185
    %1549 = vmatpush1.bf16.msra.mxu0 %v1184
    %1550 = vmatprep.subr.bf16.mxu0 %v1189
    %1551 = vmatpush1.bf16.msra.mxu0 %v1188
    %1552 = vmatprep.subr.bf16.mxu0 %v1193
    %1553 = vmatpush1.bf16.msra.mxu0 %v1192
    %1554 = vmatprep.subr.bf16.mxu0 %v1197
    %1555 = vmatpush1.bf16.msra.mxu0 %v1196
    %1556 = vmatprep.subr.bf16.mxu0 %v1201
    %1557 = vmatpush1.bf16.msra.mxu0 %v1200
    %1558 = vmatprep.subr.bf16.mxu0 %v1205
    %1559 = vmatpush1.bf16.msra.mxu0 %v1204
    %1560 = vmatprep.subr.bf16.mxu0 %v1209
    %1561 = vmatpush1.bf16.msra.mxu0 %v1208
    %1562 = vmatprep.subr.bf16.mxu0 %v1213
    %1563 = vmatpush1.bf16.msra.mxu0 %v1212
    %1564 = vmatprep.subr.bf16.mxu0 %v1217
    %1565 = vmatpush1.bf16.msra.mxu0 %v1216
    %1566 = vmatprep.subr.bf16.mxu0 %v1221
    %1567 = vmatpush1.bf16.msra.mxu0 %v1220
    %1568 = vmatprep.subr.bf16.mxu0 %v1225
    %1569 = vmatpush1.bf16.msra.mxu0 %v1224
    %1570 = vmatprep.subr.bf16.mxu0 %v1229
    %1571 = vmatpush1.bf16.msra.mxu0 %v1228
    %1572 = vmatprep.mubr.bf16.mxu0 %v158
    %1573 = vmatmul.mubr.bf16.gmra.mrb[0].mxu0 %v157
    %v1574 = vpop.f32.mrb[0].mxu0
    %v1575 = vadd.f32 %v1534, %v1574
    %v1576 = vpop.f32.mrb[0].mxu0
    %v1577 = vadd.f32 %v1536, %v1576
    %v1578 = vpop.f32.mrb[0].mxu0
    %v1579 = vpop.f32.mrb[0].mxu0
    %1580 = vdwg.mxu0
    %1581 = vmatprep.subr.bf16.mxu0 %v1233
    %1582 = vmatpush1.bf16.msra.mxu0 %v1232
    %1583 = vmatprep.subr.bf16.mxu0 %v1237
    %1584 = vmatpush1.bf16.msra.mxu0 %v1236
    %1585 = vmatprep.subr.bf16.mxu0 %v1241
    %1586 = vmatpush1.bf16.msra.mxu0 %v1240
    %1587 = vmatprep.subr.bf16.mxu0 %v1245
    %1588 = vmatpush1.bf16.msra.mxu0 %v1244
    %1589 = vmatprep.subr.bf16.mxu0 %v1249
    %1590 = vmatpush1.bf16.msra.mxu0 %v1248
    %1591 = vmatprep.subr.bf16.mxu0 %v1253
    %1592 = vmatpush1.bf16.msra.mxu0 %v1252
    %1593 = vmatprep.subr.bf16.mxu0 %v1257
    %1594 = vmatpush1.bf16.msra.mxu0 %v1256
    %1595 = vmatprep.subr.bf16.mxu0 %v1261
    %1596 = vmatpush1.bf16.msra.mxu0 %v1260
    %1597 = vmatprep.subr.bf16.mxu0 %v1265
    %1598 = vmatpush1.bf16.msra.mxu0 %v1264
    %1599 = vmatprep.subr.bf16.mxu0 %v1269
    %1600 = vmatpush1.bf16.msra.mxu0 %v1268
    %1601 = vmatprep.subr.bf16.mxu0 %v1273
    %1602 = vmatpush1.bf16.msra.mxu0 %v1272
    %1603 = vmatprep.subr.bf16.mxu0 %v1277
    %1604 = vmatpush1.bf16.msra.mxu0 %v1276
    %1605 = vmatprep.subr.bf16.mxu0 %v1281
    %1606 = vmatpush1.bf16.msra.mxu0 %v1280
    %1607 = vmatprep.subr.bf16.mxu0 %v1285
    %1608 = vmatpush1.bf16.msra.mxu0 %v1284
    %1609 = vmatprep.subr.bf16.mxu0 %v1289
    %1610 = vmatpush1.bf16.msra.mxu0 %v1288
    %1611 = vmatprep.subr.bf16.mxu0 %v1293
    %1612 = vmatpush1.bf16.msra.mxu0 %v1292
    %1613 = vmatprep.mubr.bf16.mxu0 %v160
    %1614 = vmatmul.mubr.bf16.gmra.mrb[0].mxu0 %v159
    %v1615 = vpop.f32.mrb[0].mxu0
    %v1616 = vadd.f32 %v1575, %v1615
    %v1617 = vpop.f32.mrb[0].mxu0
    %v1618 = vadd.f32 %v1577, %v1617
    %v1619 = vpop.f32.mrb[0].mxu0
    %v1620 = vpop.f32.mrb[0].mxu0
    %1621 = vdwg.mxu0
    %v1622 = vld [vmem:[%s6] sm:$0xf]
    %v1624 = vlaneseq
    %v1625 = vshrl.u32 %v1624, 7
    %v1626 = vsub.s32 0, %v1625
    %v1627 = vrot.slane %v1622, %v1626
    %v1628 = vlaneseq
    %v1629 = vshrl.u32 %v1628, 7
    %v1630 = vsub.s32 1, %v1629
    %v1631 = vrot.slane %v1622, %v1630
    %v1632 = vlaneseq
    %v1633 = vshrl.u32 %v1632, 7
    %v1634 = vsub.s32 2, %v1633
    %v1635 = vrot.slane %v1622, %v1634
    %v1636 = vlaneseq
    %v1637 = vshrl.u32 %v1636, 7
    %v1638 = vsub.s32 3, %v1637
    %v1639 = vrot.slane %v1622, %v1638
    %v1644 = vmul.f32 %v1452, %v1627
    %v1645 = vmul.f32 %v1454, %v1631
    %v1646 = vmul.f32 %v1616, %v1635
    %v1647 = vmul.f32 %v1618, %v1639
    %v1648 = vld [vmem:[%s10] sm:$0xf]
    %v1650 = vlaneseq
    %v1651 = vshrl.u32 %v1650, 7
    %v1652 = vsub.s32 0, %v1651
    %v1653 = vrot.slane %v1648, %v1652
    %v1654 = vlaneseq
    %v1655 = vshrl.u32 %v1654, 7
    %v1656 = vsub.s32 1, %v1655
    %v1657 = vrot.slane %v1648, %v1656
    %v1658 = vlaneseq
    %v1659 = vshrl.u32 %v1658, 7
    %v1660 = vsub.s32 2, %v1659
    %v1661 = vrot.slane %v1648, %v1660
    %v1662 = vlaneseq
    %v1663 = vshrl.u32 %v1662, 7
    %v1664 = vsub.s32 3, %v1663
    %v1665 = vrot.slane %v1648, %v1664
    %v1670 = vadd.f32 %v1644, %v1653
    %v1671 = vadd.f32 %v1645, %v1657
    %v1672 = vadd.f32 %v1646, %v1661
    %v1673 = vadd.f32 %v1647, %v1665
    %vm1674 = vcmp.gt.f32.partialorder %v1670, 0.0
    %vm1675 = vcmp.gt.f32.partialorder %v1671, 0.0
    %vm1676 = vcmp.gt.f32.partialorder %v1672, 0.0
    %vm1677 = vcmp.gt.f32.partialorder %v1673, 0.0
    %v1678 = vmin.f32 %v1670, 0.0
    %v1679 = vmin.f32 %v1671, 0.0
    %v1680 = vmin.f32 %v1672, 0.0
    %v1681 = vmin.f32 %v1673, 0.0
    %v1682 = vmul.f32 %v1678, 1.442695
    %v1683 = vpow.pop %v1682
    %v1684 = vmul.f32 %v1679, 1.442695
    %v1685 = vpow.pop %v1684
    %v1686 = vmul.f32 %v1680, 1.442695
    %v1687 = vpow.pop %v1686
    %v1688 = vmul.f32 %v1681, 1.442695
    %v1689 = vpow.pop %v1688
    %v1690 = vsub.f32 %v1683, 1.0
    %v1691 = vsub.f32 %v1685, 1.0
    %v1692 = vsub.f32 %v1687, 1.0
    %v1693 = vsub.f32 %v1689, 1.0
    %v1694 = vmul.f32 %v1690, 1.6732632
    %v1695 = vmul.f32 %v1691, 1.6732632
    %v1696 = vmul.f32 %v1692, 1.6732632
    %v1697 = vmul.f32 %v1693, 1.6732632
    %v1698 = vsel %vm1674, %v1670, %v1694
    %v1699 = vsel %vm1675, %v1671, %v1695
    %v1700 = vsel %vm1676, %v1672, %v1696
    %v1701 = vsel %vm1677, %v1673, %v1697
    %v1702 = vmul.f32 %v1698, 1.050701
    %v1703 = vmul.f32 %v1699, 1.050701
    %v1704 = vmul.f32 %v1700, 1.050701
    %v1705 = vmul.f32 %v1701, 1.050701
    %v1706 = vpack.c.bf16 %v1702, %v1702
    %v1707 = vpack.c.bf16 %v1703, %v1703
    %v1708 = vpack.c.bf16 %v1704, %v1704
    %v1709 = vpack.c.bf16 %v1705, %v1705
    %v1710 = vld [vmem:[%s15] sm:$0xf]
    %v1711 = vld [vmem:[%s15 + $0x4] sm:$0xf]
    %v1712 = vld [vmem:[%s15 + $0x8] sm:$0xf]
    %v1713 = vld [vmem:[%s15 + $0xc] sm:$0xf]
    %v1714 = vld [vmem:[%s15 + $0x10] sm:$0xf]
    %v1715 = vld [vmem:[%s15 + $0x14] sm:$0xf]
    %v1716 = vld [vmem:[%s15 + $0x18] sm:$0xf]
    %v1717 = vld [vmem:[%s15 + $0x1c] sm:$0xf]
    %v1718 = vld [vmem:[%s15 + $0x20] sm:$0xf]
    %v1719 = vld [vmem:[%s15 + $0x24] sm:$0xf]
    %v1720 = vld [vmem:[%s15 + $0x28] sm:$0xf]
    %v1721 = vld [vmem:[%s15 + $0x2c] sm:$0xf]
    %v1722 = vld [vmem:[%s15 + $0x30] sm:$0xf]
    %v1723 = vld [vmem:[%s15 + $0x34] sm:$0xf]
    %v1724 = vld [vmem:[%s15 + $0x38] sm:$0xf]
    %v1725 = vld [vmem:[%s15 + $0x3c] sm:$0xf]
    %v1726 = vld [vmem:[%s15 + $0x40] sm:$0xf]
    %v1727 = vld [vmem:[%s15 + $0x44] sm:$0xf]
    %v1728 = vld [vmem:[%s15 + $0x48] sm:$0xf]
    %v1729 = vld [vmem:[%s15 + $0x4c] sm:$0xf]
    %v1730 = vld [vmem:[%s15 + $0x50] sm:$0xf]
    %v1731 = vld [vmem:[%s15 + $0x54] sm:$0xf]
    %v1732 = vld [vmem:[%s15 + $0x58] sm:$0xf]
    %v1733 = vld [vmem:[%s15 + $0x5c] sm:$0xf]
    %v1734 = vld [vmem:[%s15 + $0x60] sm:$0xf]
    %v1735 = vld [vmem:[%s15 + $0x64] sm:$0xf]
    %v1736 = vld [vmem:[%s15 + $0x68] sm:$0xf]
    %v1737 = vld [vmem:[%s15 + $0x6c] sm:$0xf]
    %v1738 = vld [vmem:[%s15 + $0x70] sm:$0xf]
    %v1739 = vld [vmem:[%s15 + $0x74] sm:$0xf]
    %v1740 = vld [vmem:[%s15 + $0x78] sm:$0xf]
    %v1741 = vld [vmem:[%s15 + $0x7c] sm:$0xf]
    %v1742 = vld [vmem:[%s15 + $0x80] sm:$0xf]
    %v1743 = vld [vmem:[%s15 + $0x84] sm:$0xf]
    %v1744 = vld [vmem:[%s15 + $0x88] sm:$0xf]
    %v1745 = vld [vmem:[%s15 + $0x8c] sm:$0xf]
    %v1746 = vld [vmem:[%s15 + $0x90] sm:$0xf]
    %v1747 = vld [vmem:[%s15 + $0x94] sm:$0xf]
    %v1748 = vld [vmem:[%s15 + $0x98] sm:$0xf]
    %v1749 = vld [vmem:[%s15 + $0x9c] sm:$0xf]
    %v1750 = vld [vmem:[%s15 + $0xa0] sm:$0xf]
    %v1751 = vld [vmem:[%s15 + $0xa4] sm:$0xf]
    %v1752 = vld [vmem:[%s15 + $0xa8] sm:$0xf]
    %v1753 = vld [vmem:[%s15 + $0xac] sm:$0xf]
    %v1754 = vld [vmem:[%s15 + $0xb0] sm:$0xf]
    %v1755 = vld [vmem:[%s15 + $0xb4] sm:$0xf]
    %v1756 = vld [vmem:[%s15 + $0xb8] sm:$0xf]
    %v1757 = vld [vmem:[%s15 + $0xbc] sm:$0xf]
    %v1758 = vld [vmem:[%s15 + $0xc0] sm:$0xf]
    %v1759 = vld [vmem:[%s15 + $0xc4] sm:$0xf]
    %v1760 = vld [vmem:[%s15 + $0xc8] sm:$0xf]
    %v1761 = vld [vmem:[%s15 + $0xcc] sm:$0xf]
    %v1762 = vld [vmem:[%s15 + $0xd0] sm:$0xf]
    %v1763 = vld [vmem:[%s15 + $0xd4] sm:$0xf]
    %v1764 = vld [vmem:[%s15 + $0xd8] sm:$0xf]
    %v1765 = vld [vmem:[%s15 + $0xdc] sm:$0xf]
    %v1766 = vld [vmem:[%s15 + $0xe0] sm:$0xf]
    %v1767 = vld [vmem:[%s15 + $0xe4] sm:$0xf]
    %v1768 = vld [vmem:[%s15 + $0xe8] sm:$0xf]
    %v1769 = vld [vmem:[%s15 + $0xec] sm:$0xf]
    %v1770 = vld [vmem:[%s15 + $0xf0] sm:$0xf]
    %v1771 = vld [vmem:[%s15 + $0xf4] sm:$0xf]
    %v1772 = vld [vmem:[%s15 + $0xf8] sm:$0xf]
    %v1773 = vld [vmem:[%s15 + $0xfc] sm:$0xf]
    %v1838 = vunpack.c.l.b16 %v1710
    %v1839 = vunpack.c.l.b16 %v1711
    %v1840 = vunpack.c.l.b16 %v1712
    %v1841 = vunpack.c.l.b16 %v1713
    %v1842 = vunpack.c.l.b16 %v1714
    %v1843 = vunpack.c.l.b16 %v1715
    %v1844 = vunpack.c.l.b16 %v1716
    %v1845 = vunpack.c.l.b16 %v1717
    %v1846 = vunpack.c.l.b16 %v1718
    %v1847 = vunpack.c.l.b16 %v1719
    %v1848 = vunpack.c.l.b16 %v1720
    %v1849 = vunpack.c.l.b16 %v1721
    %v1850 = vunpack.c.l.b16 %v1722
    %v1851 = vunpack.c.l.b16 %v1723
    %v1852 = vunpack.c.l.b16 %v1724
    %v1853 = vunpack.c.l.b16 %v1725
    %v1854 = vunpack.c.l.b16 %v1726
    %v1855 = vunpack.c.l.b16 %v1727
    %v1856 = vunpack.c.l.b16 %v1728
    %v1857 = vunpack.c.l.b16 %v1729
    %v1858 = vunpack.c.l.b16 %v1730
    %v1859 = vunpack.c.l.b16 %v1731
    %v1860 = vunpack.c.l.b16 %v1732
    %v1861 = vunpack.c.l.b16 %v1733
    %v1862 = vunpack.c.l.b16 %v1734
    %v1863 = vunpack.c.l.b16 %v1735
    %v1864 = vunpack.c.l.b16 %v1736
    %v1865 = vunpack.c.l.b16 %v1737
    %v1866 = vunpack.c.l.b16 %v1738
    %v1867 = vunpack.c.l.b16 %v1739
    %v1868 = vunpack.c.l.b16 %v1740
    %v1869 = vunpack.c.l.b16 %v1741
    %v1870 = vunpack.c.l.b16 %v1742
    %v1871 = vunpack.c.l.b16 %v1743
    %v1872 = vunpack.c.l.b16 %v1744
    %v1873 = vunpack.c.l.b16 %v1745
    %v1874 = vunpack.c.l.b16 %v1746
    %v1875 = vunpack.c.l.b16 %v1747
    %v1876 = vunpack.c.l.b16 %v1748
    %v1877 = vunpack.c.l.b16 %v1749
    %v1878 = vunpack.c.l.b16 %v1750
    %v1879 = vunpack.c.l.b16 %v1751
    %v1880 = vunpack.c.l.b16 %v1752
    %v1881 = vunpack.c.l.b16 %v1753
    %v1882 = vunpack.c.l.b16 %v1754
    %v1883 = vunpack.c.l.b16 %v1755
    %v1884 = vunpack.c.l.b16 %v1756
    %v1885 = vunpack.c.l.b16 %v1757
    %v1886 = vunpack.c.l.b16 %v1758
    %v1887 = vunpack.c.l.b16 %v1759
    %v1888 = vunpack.c.l.b16 %v1760
    %v1889 = vunpack.c.l.b16 %v1761
    %v1890 = vunpack.c.l.b16 %v1762
    %v1891 = vunpack.c.l.b16 %v1763
    %v1892 = vunpack.c.l.b16 %v1764
    %v1893 = vunpack.c.l.b16 %v1765
    %v1894 = vunpack.c.l.b16 %v1766
    %v1895 = vunpack.c.l.b16 %v1767
    %v1896 = vunpack.c.l.b16 %v1768
    %v1897 = vunpack.c.l.b16 %v1769
    %v1898 = vunpack.c.l.b16 %v1770
    %v1899 = vunpack.c.l.b16 %v1771
    %v1900 = vunpack.c.l.b16 %v1772
    %v1901 = vunpack.c.l.b16 %v1773
    %v1902 = vpack.c.b16 %v1839, %v1838
    %v1903 = vpack.c.b16 %v1841, %v1840
    %v1904 = vpack.c.b16 %v1843, %v1842
    %v1905 = vpack.c.b16 %v1845, %v1844
    %v1906 = vpack.c.b16 %v1847, %v1846
    %v1907 = vpack.c.b16 %v1849, %v1848
    %v1908 = vpack.c.b16 %v1851, %v1850
    %v1909 = vpack.c.b16 %v1853, %v1852
    %v1910 = vpack.c.b16 %v1855, %v1854
    %v1911 = vpack.c.b16 %v1857, %v1856
    %v1912 = vpack.c.b16 %v1859, %v1858
    %v1913 = vpack.c.b16 %v1861, %v1860
    %v1914 = vpack.c.b16 %v1863, %v1862
    %v1915 = vpack.c.b16 %v1865, %v1864
    %v1916 = vpack.c.b16 %v1867, %v1866
    %v1917 = vpack.c.b16 %v1869, %v1868
    %v1918 = vpack.c.b16 %v1871, %v1870
    %v1919 = vpack.c.b16 %v1873, %v1872
    %v1920 = vpack.c.b16 %v1875, %v1874
    %v1921 = vpack.c.b16 %v1877, %v1876
    %v1922 = vpack.c.b16 %v1879, %v1878
    %v1923 = vpack.c.b16 %v1881, %v1880
    %v1924 = vpack.c.b16 %v1883, %v1882
    %v1925 = vpack.c.b16 %v1885, %v1884
    %v1926 = vpack.c.b16 %v1887, %v1886
    %v1927 = vpack.c.b16 %v1889, %v1888
    %v1928 = vpack.c.b16 %v1891, %v1890
    %v1929 = vpack.c.b16 %v1893, %v1892
    %v1930 = vpack.c.b16 %v1895, %v1894
    %v1931 = vpack.c.b16 %v1897, %v1896
    %v1932 = vpack.c.b16 %v1899, %v1898
    %v1933 = vpack.c.b16 %v1901, %v1900
    %1966 = vmatprep.subr.bf16.mxu0 0
    %1967 = vmatpush1.bf16.msra.mxu0 %v1902
    %1968 = vmatprep.subr.bf16.mxu0 0
    %1969 = vmatpush1.bf16.msra.mxu0 %v1903
    %1970 = vmatprep.subr.bf16.mxu0 0
    %1971 = vmatpush1.bf16.msra.mxu0 %v1904
    %1972 = vmatprep.subr.bf16.mxu0 0
    %1973 = vmatpush1.bf16.msra.mxu0 %v1905
    %1974 = vmatprep.subr.bf16.mxu0 0
    %1975 = vmatpush1.bf16.msra.mxu0 %v1906
    %1976 = vmatprep.subr.bf16.mxu0 0
    %1977 = vmatpush1.bf16.msra.mxu0 %v1907
    %1978 = vmatprep.subr.bf16.mxu0 0
    %1979 = vmatpush1.bf16.msra.mxu0 %v1908
    %1980 = vmatprep.subr.bf16.mxu0 0
    %1981 = vmatpush1.bf16.msra.mxu0 %v1909
    %1982 = vmatprep.subr.bf16.mxu0 0
    %1983 = vmatpush1.bf16.msra.mxu0 %v1910
    %1984 = vmatprep.subr.bf16.mxu0 0
    %1985 = vmatpush1.bf16.msra.mxu0 %v1911
    %1986 = vmatprep.subr.bf16.mxu0 0
    %1987 = vmatpush1.bf16.msra.mxu0 %v1912
    %1988 = vmatprep.subr.bf16.mxu0 0
    %1989 = vmatpush1.bf16.msra.mxu0 %v1913
    %1990 = vmatprep.subr.bf16.mxu0 0
    %1991 = vmatpush1.bf16.msra.mxu0 %v1914
    %1992 = vmatprep.subr.bf16.mxu0 0
    %1993 = vmatpush1.bf16.msra.mxu0 %v1915
    %1994 = vmatprep.subr.bf16.mxu0 0
    %1995 = vmatpush1.bf16.msra.mxu0 %v1916
    %1996 = vmatprep.subr.bf16.mxu0 0
    %1997 = vmatpush1.bf16.msra.mxu0 %v1917
    %1998 = vmatprep.mubr.bf16.mxu0 %v1707
    %1999 = vmatmul.mubr.bf16.gmra.mrb[0].mxu0 %v1706
    %v2000 = vpop.f32.mrb[0].mxu0
    %v2001 = vadd.f32 0.0, %v2000
    %v2002 = vpop.f32.mrb[0].mxu0
    %v2003 = vpop.f32.mrb[0].mxu0
    %v2004 = vpop.f32.mrb[0].mxu0
    %2005 = vdwg.mxu0
    %2006 = vmatprep.subr.bf16.mxu0 0
    %2007 = vmatpush1.bf16.msra.mxu0 %v1918
    %2008 = vmatprep.subr.bf16.mxu0 0
    %2009 = vmatpush1.bf16.msra.mxu0 %v1919
    %2010 = vmatprep.subr.bf16.mxu0 0
    %2011 = vmatpush1.bf16.msra.mxu0 %v1920
    %2012 = vmatprep.subr.bf16.mxu0 0
    %2013 = vmatpush1.bf16.msra.mxu0 %v1921
    %2014 = vmatprep.subr.bf16.mxu0 0
    %2015 = vmatpush1.bf16.msra.mxu0 %v1922
    %2016 = vmatprep.subr.bf16.mxu0 0
    %2017 = vmatpush1.bf16.msra.mxu0 %v1923
    %2018 = vmatprep.subr.bf16.mxu0 0
    %2019 = vmatpush1.bf16.msra.mxu0 %v1924
    %2020 = vmatprep.subr.bf16.mxu0 0
    %2021 = vmatpush1.bf16.msra.mxu0 %v1925
    %2022 = vmatprep.subr.bf16.mxu0 0
    %2023 = vmatpush1.bf16.msra.mxu0 %v1926
    %2024 = vmatprep.subr.bf16.mxu0 0
    %2025 = vmatpush1.bf16.msra.mxu0 %v1927
    %2026 = vmatprep.subr.bf16.mxu0 0
    %2027 = vmatpush1.bf16.msra.mxu0 %v1928
    %2028 = vmatprep.subr.bf16.mxu0 0
    %2029 = vmatpush1.bf16.msra.mxu0 %v1929
    %2030 = vmatprep.subr.bf16.mxu0 0
    %2031 = vmatpush1.bf16.msra.mxu0 %v1930
    %2032 = vmatprep.subr.bf16.mxu0 0
    %2033 = vmatpush1.bf16.msra.mxu0 %v1931
    %2034 = vmatprep.subr.bf16.mxu0 0
    %2035 = vmatpush1.bf16.msra.mxu0 %v1932
    %2036 = vmatprep.subr.bf16.mxu0 0
    %2037 = vmatpush1.bf16.msra.mxu0 %v1933
    %2038 = vmatprep.mubr.bf16.mxu0 %v1709
    %2039 = vmatmul.mubr.bf16.gmra.mrb[0].mxu0 %v1708
    %v2040 = vpop.f32.mrb[0].mxu0
    %v2041 = vadd.f32 %v2001, %v2040
    %v2042 = vpop.f32.mrb[0].mxu0
    %v2043 = vpop.f32.mrb[0].mxu0
    %v2044 = vpop.f32.mrb[0].mxu0
    %2045 = vdwg.mxu0
    %v2046 = vpack.c.bf16 %v2041, %v2041
    %v2047 = vld [vmem:[%s20] sm:$0xff]
    %v2049 = vunpack.c.l.b16 %v2047
    %v2050 = vunpack.c.h.b16 %v2047
    %v2051 = vpack.c.b16 %v2049, %v2049
    %v2052 = vpack.c.b16 %v2050, %v2050
    %vm2053 = vcmask 64512
    %v2055 = vsel %vm2053, %v2046, 0
    %vm2057 = vcmask 1043456
    %v2059 = vsel %vm2057, %v2051, 0
    %v2062 = vsel %vm2057, %v2052, 0
    %2064 = vmatprep.subr.bf16.mxu0 %v2062
    %2065 = vmatpush1.bf16.msra.mxu0 %v2059
    %2066 = vmatprep.subr.bf16.mxu0 0
    %2067 = vmatpush1.bf16.msra.mxu0 0
    %2068 = vmatprep.subr.bf16.mxu0 0
    %2069 = vmatpush1.bf16.msra.mxu0 0
    %2070 = vmatprep.subr.bf16.mxu0 0
    %2071 = vmatpush1.bf16.msra.mxu0 0
    %2072 = vmatprep.subr.bf16.mxu0 0
    %2073 = vmatpush1.bf16.msra.mxu0 0
    %2074 = vmatprep.subr.bf16.mxu0 0
    %2075 = vmatpush1.bf16.msra.mxu0 0
    %2076 = vmatprep.subr.bf16.mxu0 0
    %2077 = vmatpush1.bf16.msra.mxu0 0
    %2078 = vmatprep.subr.bf16.mxu0 0
    %2079 = vmatpush1.bf16.msra.mxu0 0
    %2080 = vmatprep.subr.bf16.mxu0 0
    %2081 = vmatpush1.bf16.msra.mxu0 0
    %2082 = vmatprep.subr.bf16.mxu0 0
    %2083 = vmatpush1.bf16.msra.mxu0 0
    %2084 = vmatprep.subr.bf16.mxu0 0
    %2085 = vmatpush1.bf16.msra.mxu0 0
    %2086 = vmatprep.subr.bf16.mxu0 0
    %2087 = vmatpush1.bf16.msra.mxu0 0
    %2088 = vmatprep.subr.bf16.mxu0 0
    %2089 = vmatpush1.bf16.msra.mxu0 0
    %2090 = vmatprep.subr.bf16.mxu0 0
    %2091 = vmatpush1.bf16.msra.mxu0 0
    %2092 = vmatprep.subr.bf16.mxu0 0
    %2093 = vmatpush1.bf16.msra.mxu0 0
    %2094 = vmatprep.subr.bf16.mxu0 0
    %2095 = vmatpush1.bf16.msra.mxu0 0
    %2096 = vmatprep.mubr.bf16.mxu0 0
    %2097 = vmatmul.mubr.bf16.gmra.mrb[0].mxu0 %v2055
    %v2098 = vpop.f32.mrb[0].mxu0
    %v2099 = vadd.f32 0.0, %v2098
    %v2100 = vpop.f32.mrb[0].mxu0
    %v2101 = vadd.f32 0.0, %v2100
    %v2102 = vpop.f32.mrb[0].mxu0
    %v2103 = vpop.f32.mrb[0].mxu0
    %2104 = vdwg.mxu0
    %v2105 = vadd.f32 %v908, %v2099
    %v2106 = vadd.f32 %v909, %v2101
    %v2107 = vld [vmem:[%s3] sm:$0xff]
    %v2108 = vld [vmem:[%s3 + $0x8] sm:$0xff]
    %v2109 = vld [vmem:[%s3 + $0x10] sm:$0xff]
    %v2110 = vld [vmem:[%s3 + $0x18] sm:$0xff]
    %v2111 = vld [vmem:[%s3 + $0x20] sm:$0xff]
    %v2112 = vld [vmem:[%s3 + $0x28] sm:$0xff]
    %v2113 = vld [vmem:[%s3 + $0x30] sm:$0xff]
    %v2114 = vld [vmem:[%s3 + $0x38] sm:$0xff]
    %v2115 = vld [vmem:[%s3 + $0x40] sm:$0xff]
    %v2116 = vld [vmem:[%s3 + $0x48] sm:$0xff]
    %v2117 = vld [vmem:[%s3 + $0x50] sm:$0xff]
    %v2118 = vld [vmem:[%s3 + $0x58] sm:$0xff]
    %v2119 = vld [vmem:[%s3 + $0x60] sm:$0xff]
    %v2120 = vld [vmem:[%s3 + $0x68] sm:$0xff]
    %v2121 = vld [vmem:[%s3 + $0x70] sm:$0xff]
    %v2122 = vld [vmem:[%s3 + $0x78] sm:$0xff]
    %v2123 = vld [vmem:[%s3 + $0x80] sm:$0xff]
    %v2124 = vld [vmem:[%s3 + $0x88] sm:$0xff]
    %v2125 = vld [vmem:[%s3 + $0x90] sm:$0xff]
    %v2126 = vld [vmem:[%s3 + $0x98] sm:$0xff]
    %v2127 = vld [vmem:[%s3 + $0xa0] sm:$0xff]
    %v2128 = vld [vmem:[%s3 + $0xa8] sm:$0xff]
    %v2129 = vld [vmem:[%s3 + $0xb0] sm:$0xff]
    %v2130 = vld [vmem:[%s3 + $0xb8] sm:$0xff]
    %v2131 = vld [vmem:[%s3 + $0xc0] sm:$0xff]
    %v2132 = vld [vmem:[%s3 + $0xc8] sm:$0xff]
    %v2133 = vld [vmem:[%s3 + $0xd0] sm:$0xff]
    %v2134 = vld [vmem:[%s3 + $0xd8] sm:$0xff]
    %v2135 = vld [vmem:[%s3 + $0xe0] sm:$0xff]
    %v2136 = vld [vmem:[%s3 + $0xe8] sm:$0xff]
    %v2137 = vld [vmem:[%s3 + $0xf0] sm:$0xff]
    %v2138 = vld [vmem:[%s3 + $0xf8] sm:$0xff]
    %v2139 = vunpack.c.l.s8.bf16 %v2107
    %v2140 = vunpack.c.l.s8.bf16 %v2108
    %v2141 = vunpack.c.h.s8.bf16 %v2107
    %v2142 = vunpack.c.h.s8.bf16 %v2108
    %v2143 = vunpack.c.l.s8.bf16 %v2109
    %v2144 = vunpack.c.l.s8.bf16 %v2110
    %v2145 = vunpack.c.h.s8.bf16 %v2109
    %v2146 = vunpack.c.h.s8.bf16 %v2110
    %v2147 = vunpack.c.l.s8.bf16 %v2111
    %v2148 = vunpack.c.l.s8.bf16 %v2112
    %v2149 = vunpack.c.h.s8.bf16 %v2111
    %v2150 = vunpack.c.h.s8.bf16 %v2112
    %v2151 = vunpack.c.l.s8.bf16 %v2113
    %v2152 = vunpack.c.l.s8.bf16 %v2114
    %v2153 = vunpack.c.h.s8.bf16 %v2113
    %v2154 = vunpack.c.h.s8.bf16 %v2114
    %v2155 = vunpack.c.l.s8.bf16 %v2115
    %v2156 = vunpack.c.l.s8.bf16 %v2116
    %v2157 = vunpack.c.h.s8.bf16 %v2115
    %v2158 = vunpack.c.h.s8.bf16 %v2116
    %v2159 = vunpack.c.l.s8.bf16 %v2117
    %v2160 = vunpack.c.l.s8.bf16 %v2118
    %v2161 = vunpack.c.h.s8.bf16 %v2117
    %v2162 = vunpack.c.h.s8.bf16 %v2118
    %v2163 = vunpack.c.l.s8.bf16 %v2119
    %v2164 = vunpack.c.l.s8.bf16 %v2120
    %v2165 = vunpack.c.h.s8.bf16 %v2119
    %v2166 = vunpack.c.h.s8.bf16 %v2120
    %v2167 = vunpack.c.l.s8.bf16 %v2121
    %v2168 = vunpack.c.l.s8.bf16 %v2122
    %v2169 = vunpack.c.h.s8.bf16 %v2121
    %v2170 = vunpack.c.h.s8.bf16 %v2122
    %v2171 = vunpack.c.l.s8.bf16 %v2123
    %v2172 = vunpack.c.l.s8.bf16 %v2124
    %v2173 = vunpack.c.h.s8.bf16 %v2123
    %v2174 = vunpack.c.h.s8.bf16 %v2124
    %v2175 = vunpack.c.l.s8.bf16 %v2125
    %v2176 = vunpack.c.l.s8.bf16 %v2126
    %v2177 = vunpack.c.h.s8.bf16 %v2125
    %v2178 = vunpack.c.h.s8.bf16 %v2126
    %v2179 = vunpack.c.l.s8.bf16 %v2127
    %v2180 = vunpack.c.l.s8.bf16 %v2128
    %v2181 = vunpack.c.h.s8.bf16 %v2127
    %v2182 = vunpack.c.h.s8.bf16 %v2128
    %v2183 = vunpack.c.l.s8.bf16 %v2129
    %v2184 = vunpack.c.l.s8.bf16 %v2130
    %v2185 = vunpack.c.h.s8.bf16 %v2129
    %v2186 = vunpack.c.h.s8.bf16 %v2130
    %v2187 = vunpack.c.l.s8.bf16 %v2131
    %v2188 = vunpack.c.l.s8.bf16 %v2132
    %v2189 = vunpack.c.h.s8.bf16 %v2131
    %v2190 = vunpack.c.h.s8.bf16 %v2132
    %v2191 = vunpack.c.l.s8.bf16 %v2133
    %v2192 = vunpack.c.l.s8.bf16 %v2134
    %v2193 = vunpack.c.h.s8.bf16 %v2133
    %v2194 = vunpack.c.h.s8.bf16 %v2134
    %v2195 = vunpack.c.l.s8.bf16 %v2135
    %v2196 = vunpack.c.l.s8.bf16 %v2136
    %v2197 = vunpack.c.h.s8.bf16 %v2135
    %v2198 = vunpack.c.h.s8.bf16 %v2136
    %v2199 = vunpack.c.l.s8.bf16 %v2137
    %v2200 = vunpack.c.l.s8.bf16 %v2138
    %v2201 = vunpack.c.h.s8.bf16 %v2137
    %v2202 = vunpack.c.h.s8.bf16 %v2138
    %2203 = vmatprep.subr.bf16.mxu0 %v2140
    %2204 = vmatpush1.bf16.msra.mxu0 %v2139
    %2205 = vmatprep.subr.bf16.mxu0 %v2142
    %2206 = vmatpush1.bf16.msra.mxu0 %v2141
    %2207 = vmatprep.subr.bf16.mxu0 %v2144
    %2208 = vmatpush1.bf16.msra.mxu0 %v2143
    %2209 = vmatprep.subr.bf16.mxu0 %v2146
    %2210 = vmatpush1.bf16.msra.mxu0 %v2145
    %2211 = vmatprep.subr.bf16.mxu0 %v2148
    %2212 = vmatpush1.bf16.msra.mxu0 %v2147
    %2213 = vmatprep.subr.bf16.mxu0 %v2150
    %2214 = vmatpush1.bf16.msra.mxu0 %v2149
    %2215 = vmatprep.subr.bf16.mxu0 %v2152
    %2216 = vmatpush1.bf16.msra.mxu0 %v2151
    %2217 = vmatprep.subr.bf16.mxu0 %v2154
    %2218 = vmatpush1.bf16.msra.mxu0 %v2153
    %2219 = vmatprep.subr.bf16.mxu0 %v2156
    %2220 = vmatpush1.bf16.msra.mxu0 %v2155
    %2221 = vmatprep.subr.bf16.mxu0 %v2158
    %2222 = vmatpush1.bf16.msra.mxu0 %v2157
    %2223 = vmatprep.subr.bf16.mxu0 %v2160
    %2224 = vmatpush1.bf16.msra.mxu0 %v2159
    %2225 = vmatprep.subr.bf16.mxu0 %v2162
    %2226 = vmatpush1.bf16.msra.mxu0 %v2161
    %2227 = vmatprep.subr.bf16.mxu0 %v2164
    %2228 = vmatpush1.bf16.msra.mxu0 %v2163
    %2229 = vmatprep.subr.bf16.mxu0 %v2166
    %2230 = vmatpush1.bf16.msra.mxu0 %v2165
    %2231 = vmatprep.subr.bf16.mxu0 %v2168
    %2232 = vmatpush1.bf16.msra.mxu0 %v2167
    %2233 = vmatprep.subr.bf16.mxu0 %v2170
    %2234 = vmatpush1.bf16.msra.mxu0 %v2169
    %2235 = vmatprep.mubr.bf16.mxu0 %v1707
    %2236 = vmatmul.mubr.bf16.gmra.mrb[0].mxu0 %v1706
    %v2237 = vpop.f32.mrb[0].mxu0
    %v2238 = vadd.f32 0.0, %v2237
    %v2239 = vpop.f32.mrb[0].mxu0
    %v2240 = vadd.f32 0.0, %v2239
    %v2241 = vpop.f32.mrb[0].mxu0
    %v2242 = vpop.f32.mrb[0].mxu0
    %2243 = vdwg.mxu0
    %2244 = vmatprep.subr.bf16.mxu0 %v2172
    %2245 = vmatpush1.bf16.msra.mxu0 %v2171
    %2246 = vmatprep.subr.bf16.mxu0 %v2174
    %2247 = vmatpush1.bf16.msra.mxu0 %v2173
    %2248 = vmatprep.subr.bf16.mxu0 %v2176
    %2249 = vmatpush1.bf16.msra.mxu0 %v2175
    %2250 = vmatprep.subr.bf16.mxu0 %v2178
    %2251 = vmatpush1.bf16.msra.mxu0 %v2177
    %2252 = vmatprep.subr.bf16.mxu0 %v2180
    %2253 = vmatpush1.bf16.msra.mxu0 %v2179
    %2254 = vmatprep.subr.bf16.mxu0 %v2182
    %2255 = vmatpush1.bf16.msra.mxu0 %v2181
    %2256 = vmatprep.subr.bf16.mxu0 %v2184
    %2257 = vmatpush1.bf16.msra.mxu0 %v2183
    %2258 = vmatprep.subr.bf16.mxu0 %v2186
    %2259 = vmatpush1.bf16.msra.mxu0 %v2185
    %2260 = vmatprep.subr.bf16.mxu0 %v2188
    %2261 = vmatpush1.bf16.msra.mxu0 %v2187
    %2262 = vmatprep.subr.bf16.mxu0 %v2190
    %2263 = vmatpush1.bf16.msra.mxu0 %v2189
    %2264 = vmatprep.subr.bf16.mxu0 %v2192
    %2265 = vmatpush1.bf16.msra.mxu0 %v2191
    %2266 = vmatprep.subr.bf16.mxu0 %v2194
    %2267 = vmatpush1.bf16.msra.mxu0 %v2193
    %2268 = vmatprep.subr.bf16.mxu0 %v2196
    %2269 = vmatpush1.bf16.msra.mxu0 %v2195
    %2270 = vmatprep.subr.bf16.mxu0 %v2198
    %2271 = vmatpush1.bf16.msra.mxu0 %v2197
    %2272 = vmatprep.subr.bf16.mxu0 %v2200
    %2273 = vmatpush1.bf16.msra.mxu0 %v2199
    %2274 = vmatprep.subr.bf16.mxu0 %v2202
    %2275 = vmatpush1.bf16.msra.mxu0 %v2201
    %2276 = vmatprep.mubr.bf16.mxu0 %v1709
    %2277 = vmatmul.mubr.bf16.gmra.mrb[0].mxu0 %v1708
    %v2278 = vpop.f32.mrb[0].mxu0
    %v2279 = vadd.f32 %v2238, %v2278
    %v2280 = vpop.f32.mrb[0].mxu0
    %v2281 = vadd.f32 %v2240, %v2280
    %v2282 = vpop.f32.mrb[0].mxu0
    %v2283 = vpop.f32.mrb[0].mxu0
    %2284 = vdwg.mxu0
    %v2285 = vld [vmem:[%s7] sm:$0x3]
    %v2287 = vlaneseq
    %v2288 = vshrl.u32 %v2287, 7
    %v2289 = vsub.s32 0, %v2288
    %v2290 = vrot.slane %v2285, %v2289
    %v2291 = vlaneseq
    %v2292 = vshrl.u32 %v2291, 7
    %v2293 = vsub.s32 1, %v2292
    %v2294 = vrot.slane %v2285, %v2293
    %v2297 = vmul.f32 %v2279, %v2290
    %v2298 = vmul.f32 %v2281, %v2294
    %v2299 = vld [vmem:[%s11] sm:$0x3]
    %v2301 = vlaneseq
    %v2302 = vshrl.u32 %v2301, 7
    %v2303 = vsub.s32 0, %v2302
    %v2304 = vrot.slane %v2299, %v2303
    %v2305 = vlaneseq
    %v2306 = vshrl.u32 %v2305, 7
    %v2307 = vsub.s32 1, %v2306
    %v2308 = vrot.slane %v2299, %v2307
    %v2311 = vadd.f32 %v2297, %v2304
    %v2312 = vadd.f32 %v2298, %v2308
    %vm2313 = vcmp.gt.f32.partialorder %v2311, 0.0
    %vm2314 = vcmp.gt.f32.partialorder %v2312, 0.0
    %v2315 = vmin.f32 %v2311, 0.0
    %v2316 = vmin.f32 %v2312, 0.0
    %v2317 = vmul.f32 %v2315, 1.442695
    %v2318 = vpow.pop %v2317
    %v2319 = vmul.f32 %v2316, 1.442695
    %v2320 = vpow.pop %v2319
    %v2321 = vsub.f32 %v2318, 1.0
    %v2322 = vsub.f32 %v2320, 1.0
    %v2323 = vmul.f32 %v2321, 1.6732632
    %v2324 = vmul.f32 %v2322, 1.6732632
    %v2325 = vsel %vm2313, %v2311, %v2323
    %v2326 = vsel %vm2314, %v2312, %v2324
    %v2327 = vmul.f32 %v2325, 1.050701
    %v2328 = vmul.f32 %v2326, 1.050701
    %v2329 = vpack.c.bf16 %v2327, %v2327
    %v2330 = vpack.c.bf16 %v2328, %v2328
    %v2331 = vld [vmem:[%s16] sm:$0xf]
    %v2332 = vld [vmem:[%s16 + $0x4] sm:$0xf]
    %v2333 = vld [vmem:[%s16 + $0x8] sm:$0xf]
    %v2334 = vld [vmem:[%s16 + $0xc] sm:$0xf]
    %v2335 = vld [vmem:[%s16 + $0x10] sm:$0xf]
    %v2336 = vld [vmem:[%s16 + $0x14] sm:$0xf]
    %v2337 = vld [vmem:[%s16 + $0x18] sm:$0xf]
    %v2338 = vld [vmem:[%s16 + $0x1c] sm:$0xf]
    %v2339 = vld [vmem:[%s16 + $0x20] sm:$0xf]
    %v2340 = vld [vmem:[%s16 + $0x24] sm:$0xf]
    %v2341 = vld [vmem:[%s16 + $0x28] sm:$0xf]
    %v2342 = vld [vmem:[%s16 + $0x2c] sm:$0xf]
    %v2343 = vld [vmem:[%s16 + $0x30] sm:$0xf]
    %v2344 = vld [vmem:[%s16 + $0x34] sm:$0xf]
    %v2345 = vld [vmem:[%s16 + $0x38] sm:$0xf]
    %v2346 = vld [vmem:[%s16 + $0x3c] sm:$0xf]
    %v2347 = vld [vmem:[%s16 + $0x40] sm:$0xf]
    %v2348 = vld [vmem:[%s16 + $0x44] sm:$0xf]
    %v2349 = vld [vmem:[%s16 + $0x48] sm:$0xf]
    %v2350 = vld [vmem:[%s16 + $0x4c] sm:$0xf]
    %v2351 = vld [vmem:[%s16 + $0x50] sm:$0xf]
    %v2352 = vld [vmem:[%s16 + $0x54] sm:$0xf]
    %v2353 = vld [vmem:[%s16 + $0x58] sm:$0xf]
    %v2354 = vld [vmem:[%s16 + $0x5c] sm:$0xf]
    %v2355 = vld [vmem:[%s16 + $0x60] sm:$0xf]
    %v2356 = vld [vmem:[%s16 + $0x64] sm:$0xf]
    %v2357 = vld [vmem:[%s16 + $0x68] sm:$0xf]
    %v2358 = vld [vmem:[%s16 + $0x6c] sm:$0xf]
    %v2359 = vld [vmem:[%s16 + $0x70] sm:$0xf]
    %v2360 = vld [vmem:[%s16 + $0x74] sm:$0xf]
    %v2361 = vld [vmem:[%s16 + $0x78] sm:$0xf]
    %v2362 = vld [vmem:[%s16 + $0x7c] sm:$0xf]
    %v2395 = vunpack.c.l.b16 %v2331
    %v2396 = vunpack.c.l.b16 %v2332
    %v2397 = vunpack.c.l.b16 %v2333
    %v2398 = vunpack.c.l.b16 %v2334
    %v2399 = vunpack.c.l.b16 %v2335
    %v2400 = vunpack.c.l.b16 %v2336
    %v2401 = vunpack.c.l.b16 %v2337
    %v2402 = vunpack.c.l.b16 %v2338
    %v2403 = vunpack.c.l.b16 %v2339
    %v2404 = vunpack.c.l.b16 %v2340
    %v2405 = vunpack.c.l.b16 %v2341
    %v2406 = vunpack.c.l.b16 %v2342
    %v2407 = vunpack.c.l.b16 %v2343
    %v2408 = vunpack.c.l.b16 %v2344
    %v2409 = vunpack.c.l.b16 %v2345
    %v2410 = vunpack.c.l.b16 %v2346
    %v2411 = vunpack.c.l.b16 %v2347
    %v2412 = vunpack.c.l.b16 %v2348
    %v2413 = vunpack.c.l.b16 %v2349
    %v2414 = vunpack.c.l.b16 %v2350
    %v2415 = vunpack.c.l.b16 %v2351
    %v2416 = vunpack.c.l.b16 %v2352
    %v2417 = vunpack.c.l.b16 %v2353
    %v2418 = vunpack.c.l.b16 %v2354
    %v2419 = vunpack.c.l.b16 %v2355
    %v2420 = vunpack.c.l.b16 %v2356
    %v2421 = vunpack.c.l.b16 %v2357
    %v2422 = vunpack.c.l.b16 %v2358
    %v2423 = vunpack.c.l.b16 %v2359
    %v2424 = vunpack.c.l.b16 %v2360
    %v2425 = vunpack.c.l.b16 %v2361
    %v2426 = vunpack.c.l.b16 %v2362
    %v2427 = vpack.c.b16 %v2396, %v2395
    %v2428 = vpack.c.b16 %v2398, %v2397
    %v2429 = vpack.c.b16 %v2400, %v2399
    %v2430 = vpack.c.b16 %v2402, %v2401
    %v2431 = vpack.c.b16 %v2404, %v2403
    %v2432 = vpack.c.b16 %v2406, %v2405
    %v2433 = vpack.c.b16 %v2408, %v2407
    %v2434 = vpack.c.b16 %v2410, %v2409
    %v2435 = vpack.c.b16 %v2412, %v2411
    %v2436 = vpack.c.b16 %v2414, %v2413
    %v2437 = vpack.c.b16 %v2416, %v2415
    %v2438 = vpack.c.b16 %v2418, %v2417
    %v2439 = vpack.c.b16 %v2420, %v2419
    %v2440 = vpack.c.b16 %v2422, %v2421
    %v2441 = vpack.c.b16 %v2424, %v2423
    %v2442 = vpack.c.b16 %v2426, %v2425
    %2459 = vmatprep.subr.bf16.mxu0 0
    %2460 = vmatpush1.bf16.msra.mxu0 %v2427
    %2461 = vmatprep.subr.bf16.mxu0 0
    %2462 = vmatpush1.bf16.msra.mxu0 %v2428
    %2463 = vmatprep.subr.bf16.mxu0 0
    %2464 = vmatpush1.bf16.msra.mxu0 %v2429
    %2465 = vmatprep.subr.bf16.mxu0 0
    %2466 = vmatpush1.bf16.msra.mxu0 %v2430
    %2467 = vmatprep.subr.bf16.mxu0 0
    %2468 = vmatpush1.bf16.msra.mxu0 %v2431
    %2469 = vmatprep.subr.bf16.mxu0 0
    %2470 = vmatpush1.bf16.msra.mxu0 %v2432
    %2471 = vmatprep.subr.bf16.mxu0 0
    %2472 = vmatpush1.bf16.msra.mxu0 %v2433
    %2473 = vmatprep.subr.bf16.mxu0 0
    %2474 = vmatpush1.bf16.msra.mxu0 %v2434
    %2475 = vmatprep.subr.bf16.mxu0 0
    %2476 = vmatpush1.bf16.msra.mxu0 %v2435
    %2477 = vmatprep.subr.bf16.mxu0 0
    %2478 = vmatpush1.bf16.msra.mxu0 %v2436
    %2479 = vmatprep.subr.bf16.mxu0 0
    %2480 = vmatpush1.bf16.msra.mxu0 %v2437
    %2481 = vmatprep.subr.bf16.mxu0 0
    %2482 = vmatpush1.bf16.msra.mxu0 %v2438
    %2483 = vmatprep.subr.bf16.mxu0 0
    %2484 = vmatpush1.bf16.msra.mxu0 %v2439
    %2485 = vmatprep.subr.bf16.mxu0 0
    %2486 = vmatpush1.bf16.msra.mxu0 %v2440
    %2487 = vmatprep.subr.bf16.mxu0 0
    %2488 = vmatpush1.bf16.msra.mxu0 %v2441
    %2489 = vmatprep.subr.bf16.mxu0 0
    %2490 = vmatpush1.bf16.msra.mxu0 %v2442
    %2491 = vmatprep.mubr.bf16.mxu0 %v2330
    %2492 = vmatmul.mubr.bf16.gmra.mrb[0].mxu0 %v2329
    %v2493 = vpop.f32.mrb[0].mxu0
    %v2494 = vadd.f32 0.0, %v2493
    %v2495 = vpop.f32.mrb[0].mxu0
    %v2496 = vpop.f32.mrb[0].mxu0
    %v2497 = vpop.f32.mrb[0].mxu0
    %2498 = vdwg.mxu0
    %v2499 = vpack.c.bf16 %v2494, %v2494
    %v2500 = vld [vmem:[%s21] sm:$0xff]
    %v2501 = vld [vmem:[%s21 + $0x8] sm:$0xff]
    %v2504 = vunpack.c.l.b16 %v2500
    %v2505 = vunpack.c.h.b16 %v2500
    %v2506 = vunpack.c.l.b16 %v2501
    %v2507 = vunpack.c.h.b16 %v2501
    %v2508 = vpack.c.b16 %v2506, %v2504
    %v2509 = vpack.c.b16 %v2507, %v2505
    %vm2512 = vcmask 130048
    %v2514 = vsel %vm2512, %v2499, 0
    %2516 = vmatprep.subr.bf16.mxu0 %v2509
    %2517 = vmatpush1.bf16.msra.mxu0 %v2508
    %2518 = vmatprep.subr.bf16.mxu0 0
    %2519 = vmatpush1.bf16.msra.mxu0 0
    %2520 = vmatprep.subr.bf16.mxu0 0
    %2521 = vmatpush1.bf16.msra.mxu0 0
    %2522 = vmatprep.subr.bf16.mxu0 0
    %2523 = vmatpush1.bf16.msra.mxu0 0
    %2524 = vmatprep.subr.bf16.mxu0 0
    %2525 = vmatpush1.bf16.msra.mxu0 0
    %2526 = vmatprep.subr.bf16.mxu0 0
    %2527 = vmatpush1.bf16.msra.mxu0 0
    %2528 = vmatprep.subr.bf16.mxu0 0
    %2529 = vmatpush1.bf16.msra.mxu0 0
    %2530 = vmatprep.subr.bf16.mxu0 0
    %2531 = vmatpush1.bf16.msra.mxu0 0
    %2532 = vmatprep.subr.bf16.mxu0 0
    %2533 = vmatpush1.bf16.msra.mxu0 0
    %2534 = vmatprep.subr.bf16.mxu0 0
    %2535 = vmatpush1.bf16.msra.mxu0 0
    %2536 = vmatprep.subr.bf16.mxu0 0
    %2537 = vmatpush1.bf16.msra.mxu0 0
    %2538 = vmatprep.subr.bf16.mxu0 0
    %2539 = vmatpush1.bf16.msra.mxu0 0
    %2540 = vmatprep.subr.bf16.mxu0 0
    %2541 = vmatpush1.bf16.msra.mxu0 0
    %2542 = vmatprep.subr.bf16.mxu0 0
    %2543 = vmatpush1.bf16.msra.mxu0 0
    %2544 = vmatprep.subr.bf16.mxu0 0
    %2545 = vmatpush1.bf16.msra.mxu0 0
    %2546 = vmatprep.subr.bf16.mxu0 0
    %2547 = vmatpush1.bf16.msra.mxu0 0
    %2548 = vmatprep.mubr.bf16.mxu0 0
    %2549 = vmatmul.mubr.bf16.gmra.mrb[0].mxu0 %v2514
    %v2550 = vpop.f32.mrb[0].mxu0
    %v2551 = vadd.f32 0.0, %v2550
    %v2552 = vpop.f32.mrb[0].mxu0
    %v2553 = vadd.f32 0.0, %v2552
    %v2554 = vpop.f32.mrb[0].mxu0
    %v2555 = vpop.f32.mrb[0].mxu0
    %2556 = vdwg.mxu0
    %v2557 = vadd.f32 %v2105, %v2551
    %v2558 = vadd.f32 %v2106, %v2553
    %v2559 = vld [vmem:[%s4] sm:$0xff]
    %v2560 = vld [vmem:[%s4 + $0x8] sm:$0xff]
    %v2561 = vld [vmem:[%s4 + $0x10] sm:$0xff]
    %v2562 = vld [vmem:[%s4 + $0x18] sm:$0xff]
    %v2563 = vld [vmem:[%s4 + $0x20] sm:$0xff]
    %v2564 = vld [vmem:[%s4 + $0x28] sm:$0xff]
    %v2565 = vld [vmem:[%s4 + $0x30] sm:$0xff]
    %v2566 = vld [vmem:[%s4 + $0x38] sm:$0xff]
    %v2567 = vunpack.c.l.s8.bf16 %v2559
    %v2568 = vunpack.c.h.s8.bf16 %v2559
    %v2569 = vunpack.c.l.s8.bf16 %v2560
    %v2570 = vunpack.c.h.s8.bf16 %v2560
    %v2571 = vunpack.c.l.s8.bf16 %v2561
    %v2572 = vunpack.c.h.s8.bf16 %v2561
    %v2573 = vunpack.c.l.s8.bf16 %v2562
    %v2574 = vunpack.c.h.s8.bf16 %v2562
    %v2575 = vunpack.c.l.s8.bf16 %v2563
    %v2576 = vunpack.c.h.s8.bf16 %v2563
    %v2577 = vunpack.c.l.s8.bf16 %v2564
    %v2578 = vunpack.c.h.s8.bf16 %v2564
    %v2579 = vunpack.c.l.s8.bf16 %v2565
    %v2580 = vunpack.c.h.s8.bf16 %v2565
    %v2581 = vunpack.c.l.s8.bf16 %v2566
    %v2582 = vunpack.c.h.s8.bf16 %v2566
    %2583 = vmatprep.subr.bf16.mxu0 0
    %2584 = vmatpush1.bf16.msra.mxu0 %v2567
    %2585 = vmatprep.subr.bf16.mxu0 0
    %2586 = vmatpush1.bf16.msra.mxu0 %v2568
    %2587 = vmatprep.subr.bf16.mxu0 0
    %2588 = vmatpush1.bf16.msra.mxu0 %v2569
    %2589 = vmatprep.subr.bf16.mxu0 0
    %2590 = vmatpush1.bf16.msra.mxu0 %v2570
    %2591 = vmatprep.subr.bf16.mxu0 0
    %2592 = vmatpush1.bf16.msra.mxu0 %v2571
    %2593 = vmatprep.subr.bf16.mxu0 0
    %2594 = vmatpush1.bf16.msra.mxu0 %v2572
    %2595 = vmatprep.subr.bf16.mxu0 0
    %2596 = vmatpush1.bf16.msra.mxu0 %v2573
    %2597 = vmatprep.subr.bf16.mxu0 0
    %2598 = vmatpush1.bf16.msra.mxu0 %v2574
    %2599 = vmatprep.subr.bf16.mxu0 0
    %2600 = vmatpush1.bf16.msra.mxu0 %v2575
    %2601 = vmatprep.subr.bf16.mxu0 0
    %2602 = vmatpush1.bf16.msra.mxu0 %v2576
    %2603 = vmatprep.subr.bf16.mxu0 0
    %2604 = vmatpush1.bf16.msra.mxu0 %v2577
    %2605 = vmatprep.subr.bf16.mxu0 0
    %2606 = vmatpush1.bf16.msra.mxu0 %v2578
    %2607 = vmatprep.subr.bf16.mxu0 0
    %2608 = vmatpush1.bf16.msra.mxu0 %v2579
    %2609 = vmatprep.subr.bf16.mxu0 0
    %2610 = vmatpush1.bf16.msra.mxu0 %v2580
    %2611 = vmatprep.subr.bf16.mxu0 0
    %2612 = vmatpush1.bf16.msra.mxu0 %v2581
    %2613 = vmatprep.subr.bf16.mxu0 0
    %2614 = vmatpush1.bf16.msra.mxu0 %v2582
    %2615 = vmatprep.mubr.bf16.mxu0 %v2330
    %2616 = vmatmul.mubr.bf16.gmra.mrb[0].mxu0 %v2329
    %v2617 = vpop.f32.mrb[0].mxu0
    %v2618 = vadd.f32 0.0, %v2617
    %v2619 = vpop.f32.mrb[0].mxu0
    %v2620 = vpop.f32.mrb[0].mxu0
    %v2621 = vpop.f32.mrb[0].mxu0
    %2622 = vdwg.mxu0
    %v2623 = vld [vmem:[%s8] sm:$0x1]
    %v2625 = vlaneseq
    %v2626 = vshrl.u32 %v2625, 7
    %v2627 = vsub.s32 0, %v2626
    %v2628 = vrot.slane %v2623, %v2627
    %v2630 = vmul.f32 %v2618, %v2628
    %v2631 = vld [vmem:[%s12] sm:$0x1]
    %v2633 = vlaneseq
    %v2634 = vshrl.u32 %v2633, 7
    %v2635 = vsub.s32 0, %v2634
    %v2636 = vrot.slane %v2631, %v2635
    %v2638 = vadd.f32 %v2630, %v2636
    %vm2639 = vcmp.gt.f32.partialorder %v2638, 0.0
    %v2640 = vmin.f32 %v2638, 0.0
    %v2641 = vmul.f32 %v2640, 1.442695
    %v2642 = vpow.pop %v2641
    %v2643 = vsub.f32 %v2642, 1.0
    %v2644 = vmul.f32 %v2643, 1.6732632
    %v2645 = vsel %vm2639, %v2638, %v2644
    %v2646 = vmul.f32 %v2645, 1.050701
    %v2647 = vpack.c.bf16 %v2646, %v2646
    %v2648 = vld [vmem:[%s17] sm:$0xf]
    %v2649 = vld [vmem:[%s17 + $0x4] sm:$0xf]
    %v2650 = vld [vmem:[%s17 + $0x8] sm:$0xf]
    %v2651 = vld [vmem:[%s17 + $0xc] sm:$0xf]
    %v2652 = vld [vmem:[%s17 + $0x10] sm:$0xf]
    %v2653 = vld [vmem:[%s17 + $0x14] sm:$0xf]
    %v2654 = vld [vmem:[%s17 + $0x18] sm:$0xf]
    %v2655 = vld [vmem:[%s17 + $0x1c] sm:$0xf]
    %v2656 = vld [vmem:[%s17 + $0x20] sm:$0xf]
    %v2657 = vld [vmem:[%s17 + $0x24] sm:$0xf]
    %v2658 = vld [vmem:[%s17 + $0x28] sm:$0xf]
    %v2659 = vld [vmem:[%s17 + $0x2c] sm:$0xf]
    %v2660 = vld [vmem:[%s17 + $0x30] sm:$0xf]
    %v2661 = vld [vmem:[%s17 + $0x34] sm:$0xf]
    %v2662 = vld [vmem:[%s17 + $0x38] sm:$0xf]
    %v2663 = vld [vmem:[%s17 + $0x3c] sm:$0xf]
    %v2680 = vunpack.c.l.b16 %v2648
    %v2681 = vunpack.c.l.b16 %v2649
    %v2682 = vunpack.c.l.b16 %v2650
    %v2683 = vunpack.c.l.b16 %v2651
    %v2684 = vunpack.c.l.b16 %v2652
    %v2685 = vunpack.c.l.b16 %v2653
    %v2686 = vunpack.c.l.b16 %v2654
    %v2687 = vunpack.c.l.b16 %v2655
    %v2688 = vunpack.c.l.b16 %v2656
    %v2689 = vunpack.c.l.b16 %v2657
    %v2690 = vunpack.c.l.b16 %v2658
    %v2691 = vunpack.c.l.b16 %v2659
    %v2692 = vunpack.c.l.b16 %v2660
    %v2693 = vunpack.c.l.b16 %v2661
    %v2694 = vunpack.c.l.b16 %v2662
    %v2695 = vunpack.c.l.b16 %v2663
    %v2696 = vpack.c.b16 %v2681, %v2680
    %v2697 = vpack.c.b16 %v2683, %v2682
    %v2698 = vpack.c.b16 %v2685, %v2684
    %v2699 = vpack.c.b16 %v2687, %v2686
    %v2700 = vpack.c.b16 %v2689, %v2688
    %v2701 = vpack.c.b16 %v2691, %v2690
    %v2702 = vpack.c.b16 %v2693, %v2692
    %v2703 = vpack.c.b16 %v2695, %v2694
    %2712 = vmatprep.subr.bf16.mxu0 0
    %2713 = vmatpush1.bf16.msra.mxu0 %v2696
    %2714 = vmatprep.subr.bf16.mxu0 0
    %2715 = vmatpush1.bf16.msra.mxu0 %v2697
    %2716 = vmatprep.subr.bf16.mxu0 0
    %2717 = vmatpush1.bf16.msra.mxu0 %v2698
    %2718 = vmatprep.subr.bf16.mxu0 0
    %2719 = vmatpush1.bf16.msra.mxu0 %v2699
    %2720 = vmatprep.subr.bf16.mxu0 0
    %2721 = vmatpush1.bf16.msra.mxu0 %v2700
    %2722 = vmatprep.subr.bf16.mxu0 0
    %2723 = vmatpush1.bf16.msra.mxu0 %v2701
    %2724 = vmatprep.subr.bf16.mxu0 0
    %2725 = vmatpush1.bf16.msra.mxu0 %v2702
    %2726 = vmatprep.subr.bf16.mxu0 0
    %2727 = vmatpush1.bf16.msra.mxu0 %v2703
    %2728 = vmatprep.subr.bf16.mxu0 0
    %2729 = vmatpush1.bf16.msra.mxu0 0
    %2730 = vmatprep.subr.bf16.mxu0 0
    %2731 = vmatpush1.bf16.msra.mxu0 0
    %2732 = vmatprep.subr.bf16.mxu0 0
    %2733 = vmatpush1.bf16.msra.mxu0 0
    %2734 = vmatprep.subr.bf16.mxu0 0
    %2735 = vmatpush1.bf16.msra.mxu0 0
    %2736 = vmatprep.subr.bf16.mxu0 0
    %2737 = vmatpush1.bf16.msra.mxu0 0
    %2738 = vmatprep.subr.bf16.mxu0 0
    %2739 = vmatpush1.bf16.msra.mxu0 0
    %2740 = vmatprep.subr.bf16.mxu0 0
    %2741 = vmatpush1.bf16.msra.mxu0 0
    %2742 = vmatprep.subr.bf16.mxu0 0
    %2743 = vmatpush1.bf16.msra.mxu0 0
    %2744 = vmatprep.mubr.bf16.mxu0 0
    %2745 = vmatmul.mubr.bf16.gmra.mrb[0].mxu0 %v2647
    %v2746 = vpop.f32.mrb[0].mxu0
    %v2747 = vadd.f32 0.0, %v2746
    %v2748 = vpop.f32.mrb[0].mxu0
    %v2749 = vpop.f32.mrb[0].mxu0
    %v2750 = vpop.f32.mrb[0].mxu0
    %2751 = vdwg.mxu0
    %v2752 = vpack.c.bf16 %v2747, %v2747
    %v2753 = vld [vmem:[%s22] sm:$0xff]
    %v2754 = vld [vmem:[%s22 + $0x8] sm:$0xff]
    %v2755 = vld [vmem:[%s22 + $0x10] sm:$0xff]
    %v2756 = vld [vmem:[%s22 + $0x18] sm:$0xff]
    %v2761 = vunpack.c.l.b16 %v2753
    %v2762 = vunpack.c.h.b16 %v2753
    %v2763 = vunpack.c.l.b16 %v2754
    %v2764 = vunpack.c.h.b16 %v2754
    %v2765 = vunpack.c.l.b16 %v2755
    %v2766 = vunpack.c.h.b16 %v2755
    %v2767 = vunpack.c.l.b16 %v2756
    %v2768 = vunpack.c.h.b16 %v2756
    %v2769 = vpack.c.b16 %v2763, %v2761
    %v2770 = vpack.c.b16 %v2764, %v2762
    %v2771 = vpack.c.b16 %v2767, %v2765
    %v2772 = vpack.c.b16 %v2768, %v2766
    %vm2777 = vcmask 261120
    %v2779 = vsel %vm2777, %v2752, 0
    %2781 = vmatprep.subr.bf16.mxu0 %v2770
    %2782 = vmatpush1.bf16.msra.mxu0 %v2769
    %2783 = vmatprep.subr.bf16.mxu0 %v2772
    %2784 = vmatpush1.bf16.msra.mxu0 %v2771
    %2785 = vmatprep.subr.bf16.mxu0 0
    %2786 = vmatpush1.bf16.msra.mxu0 0
    %2787 = vmatprep.subr.bf16.mxu0 0
    %2788 = vmatpush1.bf16.msra.mxu0 0
    %2789 = vmatprep.subr.bf16.mxu0 0
    %2790 = vmatpush1.bf16.msra.mxu0 0
    %2791 = vmatprep.subr.bf16.mxu0 0
    %2792 = vmatpush1.bf16.msra.mxu0 0
    %2793 = vmatprep.subr.bf16.mxu0 0
    %2794 = vmatpush1.bf16.msra.mxu0 0
    %2795 = vmatprep.subr.bf16.mxu0 0
    %2796 = vmatpush1.bf16.msra.mxu0 0
    %2797 = vmatprep.subr.bf16.mxu0 0
    %2798 = vmatpush1.bf16.msra.mxu0 0
    %2799 = vmatprep.subr.bf16.mxu0 0
    %2800 = vmatpush1.bf16.msra.mxu0 0
    %2801 = vmatprep.subr.bf16.mxu0 0
    %2802 = vmatpush1.bf16.msra.mxu0 0
    %2803 = vmatprep.subr.bf16.mxu0 0
    %2804 = vmatpush1.bf16.msra.mxu0 0
    %2805 = vmatprep.subr.bf16.mxu0 0
    %2806 = vmatpush1.bf16.msra.mxu0 0
    %2807 = vmatprep.subr.bf16.mxu0 0
    %2808 = vmatpush1.bf16.msra.mxu0 0
    %2809 = vmatprep.subr.bf16.mxu0 0
    %2810 = vmatpush1.bf16.msra.mxu0 0
    %2811 = vmatprep.subr.bf16.mxu0 0
    %2812 = vmatpush1.bf16.msra.mxu0 0
    %2813 = vmatprep.mubr.bf16.mxu0 0
    %2814 = vmatmul.mubr.bf16.gmra.mrb[0].mxu0 %v2779
    %v2815 = vpop.f32.mrb[0].mxu0
    %v2816 = vadd.f32 0.0, %v2815
    %v2817 = vpop.f32.mrb[0].mxu0
    %v2818 = vadd.f32 0.0, %v2817
    %v2819 = vpop.f32.mrb[0].mxu0
    %v2820 = vpop.f32.mrb[0].mxu0
    %2821 = vdwg.mxu0
    %v2822 = vadd.f32 %v2557, %v2816
    %v2823 = vadd.f32 %v2558, %v2818
    %v2824 = vld [vmem:[%s5] sm:$0xff]
    %v2825 = vld [vmem:[%s5 + $0x8] sm:$0xff]
    %v2826 = vld [vmem:[%s5 + $0x10] sm:$0xff]
    %v2827 = vld [vmem:[%s5 + $0x18] sm:$0xff]
    %v2828 = vunpack.c.l.s8.bf16 %v2824
    %v2829 = vunpack.c.h.s8.bf16 %v2824
    %v2830 = vunpack.c.l.s8.bf16 %v2825
    %v2831 = vunpack.c.h.s8.bf16 %v2825
    %v2832 = vunpack.c.l.s8.bf16 %v2826
    %v2833 = vunpack.c.h.s8.bf16 %v2826
    %v2834 = vunpack.c.l.s8.bf16 %v2827
    %v2835 = vunpack.c.h.s8.bf16 %v2827
    %2836 = vmatprep.subr.bf16.mxu0 0
    %2837 = vmatpush1.bf16.msra.mxu0 %v2828
    %2838 = vmatprep.subr.bf16.mxu0 0
    %2839 = vmatpush1.bf16.msra.mxu0 %v2829
    %2840 = vmatprep.subr.bf16.mxu0 0
    %2841 = vmatpush1.bf16.msra.mxu0 %v2830
    %2842 = vmatprep.subr.bf16.mxu0 0
    %2843 = vmatpush1.bf16.msra.mxu0 %v2831
    %2844 = vmatprep.subr.bf16.mxu0 0
    %2845 = vmatpush1.bf16.msra.mxu0 %v2832
    %2846 = vmatprep.subr.bf16.mxu0 0
    %2847 = vmatpush1.bf16.msra.mxu0 %v2833
    %2848 = vmatprep.subr.bf16.mxu0 0
    %2849 = vmatpush1.bf16.msra.mxu0 %v2834
    %2850 = vmatprep.subr.bf16.mxu0 0
    %2851 = vmatpush1.bf16.msra.mxu0 %v2835
    %2852 = vmatprep.subr.bf16.mxu0 0
    %2853 = vmatpush1.bf16.msra.mxu0 0
    %2854 = vmatprep.subr.bf16.mxu0 0
    %2855 = vmatpush1.bf16.msra.mxu0 0
    %2856 = vmatprep.subr.bf16.mxu0 0
    %2857 = vmatpush1.bf16.msra.mxu0 0
    %2858 = vmatprep.subr.bf16.mxu0 0
    %2859 = vmatpush1.bf16.msra.mxu0 0
    %2860 = vmatprep.subr.bf16.mxu0 0
    %2861 = vmatpush1.bf16.msra.mxu0 0
    %2862 = vmatprep.subr.bf16.mxu0 0
    %2863 = vmatpush1.bf16.msra.mxu0 0
    %2864 = vmatprep.subr.bf16.mxu0 0
    %2865 = vmatpush1.bf16.msra.mxu0 0
    %2866 = vmatprep.subr.bf16.mxu0 0
    %2867 = vmatpush1.bf16.msra.mxu0 0
    %2868 = vmatprep.mubr.bf16.mxu0 0
    %2869 = vmatmul.mubr.bf16.gmra.mrb[0].mxu0 %v2647
    %v2870 = vpop.f32.mrb[0].mxu0
    %v2871 = vadd.f32 0.0, %v2870
    %v2872 = vpop.f32.mrb[0].mxu0
    %v2873 = vpop.f32.mrb[0].mxu0
    %v2874 = vpop.f32.mrb[0].mxu0
    %2875 = vdwg.mxu0
    %v2876 = vld [vmem:[%s9] sm:$0x1]
    %v2878 = vlaneseq
    %v2879 = vshrl.u32 %v2878, 7
    %v2880 = vsub.s32 0, %v2879
    %v2881 = vrot.slane %v2876, %v2880
    %v2883 = vmul.f32 %v2871, %v2881
    %v2884 = vld [vmem:[%s13] sm:$0x1]
    %v2886 = vlaneseq
    %v2887 = vshrl.u32 %v2886, 7
    %v2888 = vsub.s32 0, %v2887
    %v2889 = vrot.slane %v2884, %v2888
    %v2891 = vadd.f32 %v2883, %v2889
    %vm2892 = vcmp.gt.f32.partialorder %v2891, 0.0
    %v2893 = vmin.f32 %v2891, 0.0
    %v2894 = vmul.f32 %v2893, 1.442695
    %v2895 = vpow.pop %v2894
    %v2896 = vsub.f32 %v2895, 1.0
    %v2897 = vmul.f32 %v2896, 1.6732632
    %v2898 = vsel %vm2892, %v2891, %v2897
    %v2899 = vmul.f32 %v2898, 1.050701
    %v2900 = vpack.c.bf16 %v2899, %v2899
    %v2901 = vld [vmem:[%s18] sm:$0xf]
    %v2902 = vld [vmem:[%s18 + $0x4] sm:$0xf]
    %v2903 = vld [vmem:[%s18 + $0x8] sm:$0xf]
    %v2904 = vld [vmem:[%s18 + $0xc] sm:$0xf]
    %v2905 = vld [vmem:[%s18 + $0x10] sm:$0xf]
    %v2906 = vld [vmem:[%s18 + $0x14] sm:$0xf]
    %v2907 = vld [vmem:[%s18 + $0x18] sm:$0xf]
    %v2908 = vld [vmem:[%s18 + $0x1c] sm:$0xf]
    %v2917 = vunpack.c.l.b16 %v2901
    %v2918 = vunpack.c.l.b16 %v2902
    %v2919 = vunpack.c.l.b16 %v2903
    %v2920 = vunpack.c.l.b16 %v2904
    %v2921 = vunpack.c.l.b16 %v2905
    %v2922 = vunpack.c.l.b16 %v2906
    %v2923 = vunpack.c.l.b16 %v2907
    %v2924 = vunpack.c.l.b16 %v2908
    %v2925 = vpack.c.b16 %v2918, %v2917
    %v2926 = vpack.c.b16 %v2920, %v2919
    %v2927 = vpack.c.b16 %v2922, %v2921
    %v2928 = vpack.c.b16 %v2924, %v2923
    %vm2933 = vcmask 523264
    %v2935 = vsel %vm2933, %v2900, 0
    %2937 = vmatprep.subr.bf16.mxu0 0
    %2938 = vmatpush1.bf16.msra.mxu0 %v2925
    %2939 = vmatprep.subr.bf16.mxu0 0
    %2940 = vmatpush1.bf16.msra.mxu0 %v2926
    %2941 = vmatprep.subr.bf16.mxu0 0
    %2942 = vmatpush1.bf16.msra.mxu0 %v2927
    %2943 = vmatprep.subr.bf16.mxu0 0
    %2944 = vmatpush1.bf16.msra.mxu0 %v2928
    %2945 = vmatprep.subr.bf16.mxu0 0
    %2946 = vmatpush1.bf16.msra.mxu0 0
    %2947 = vmatprep.subr.bf16.mxu0 0
    %2948 = vmatpush1.bf16.msra.mxu0 0
    %2949 = vmatprep.subr.bf16.mxu0 0
    %2950 = vmatpush1.bf16.msra.mxu0 0
    %2951 = vmatprep.subr.bf16.mxu0 0
    %2952 = vmatpush1.bf16.msra.mxu0 0
    %2953 = vmatprep.subr.bf16.mxu0 0
    %2954 = vmatpush1.bf16.msra.mxu0 0
    %2955 = vmatprep.subr.bf16.mxu0 0
    %2956 = vmatpush1.bf16.msra.mxu0 0
    %2957 = vmatprep.subr.bf16.mxu0 0
    %2958 = vmatpush1.bf16.msra.mxu0 0
    %2959 = vmatprep.subr.bf16.mxu0 0
    %2960 = vmatpush1.bf16.msra.mxu0 0
    %2961 = vmatprep.subr.bf16.mxu0 0
    %2962 = vmatpush1.bf16.msra.mxu0 0
    %2963 = vmatprep.subr.bf16.mxu0 0
    %2964 = vmatpush1.bf16.msra.mxu0 0
    %2965 = vmatprep.subr.bf16.mxu0 0
    %2966 = vmatpush1.bf16.msra.mxu0 0
    %2967 = vmatprep.subr.bf16.mxu0 0
    %2968 = vmatpush1.bf16.msra.mxu0 0
    %2969 = vmatprep.mubr.bf16.mxu0 0
    %2970 = vmatmul.mubr.bf16.gmra.mrb[0].mxu0 %v2935
    %v2971 = vpop.f32.mrb[0].mxu0
    %v2972 = vadd.f32 0.0, %v2971
    %v2973 = vpop.f32.mrb[0].mxu0
    %v2974 = vpop.f32.mrb[0].mxu0
    %v2975 = vpop.f32.mrb[0].mxu0
    %2976 = vdwg.mxu0
    %v2977 = vpack.c.bf16 %v2972, %v2972
    %v2978 = vld [vmem:[%s23] sm:$0xff]
    %v2979 = vld [vmem:[%s23 + $0x8] sm:$0xff]
    %v2980 = vld [vmem:[%s23 + $0x10] sm:$0xff]
    %v2981 = vld [vmem:[%s23 + $0x18] sm:$0xff]
    %v2982 = vld [vmem:[%s23 + $0x20] sm:$0xff]
    %v2983 = vld [vmem:[%s23 + $0x28] sm:$0xff]
    %v2984 = vld [vmem:[%s23 + $0x30] sm:$0xff]
    %v2985 = vld [vmem:[%s23 + $0x38] sm:$0xff]
    %v2994 = vunpack.c.l.b16 %v2978
    %v2995 = vunpack.c.h.b16 %v2978
    %v2996 = vunpack.c.l.b16 %v2979
    %v2997 = vunpack.c.h.b16 %v2979
    %v2998 = vunpack.c.l.b16 %v2980
    %v2999 = vunpack.c.h.b16 %v2980
    %v3000 = vunpack.c.l.b16 %v2981
    %v3001 = vunpack.c.h.b16 %v2981
    %v3002 = vunpack.c.l.b16 %v2982
    %v3003 = vunpack.c.h.b16 %v2982
    %v3004 = vunpack.c.l.b16 %v2983
    %v3005 = vunpack.c.h.b16 %v2983
    %v3006 = vunpack.c.l.b16 %v2984
    %v3007 = vunpack.c.h.b16 %v2984
    %v3008 = vunpack.c.l.b16 %v2985
    %v3009 = vunpack.c.h.b16 %v2985
    %v3010 = vpack.c.b16 %v2996, %v2994
    %v3011 = vpack.c.b16 %v2997, %v2995
    %v3012 = vpack.c.b16 %v3000, %v2998
    %v3013 = vpack.c.b16 %v3001, %v2999
    %v3014 = vpack.c.b16 %v3004, %v3002
    %v3015 = vpack.c.b16 %v3005, %v3003
    %v3016 = vpack.c.b16 %v3008, %v3006
    %v3017 = vpack.c.b16 %v3009, %v3007
    %v3027 = vsel %vm2933, %v2977, 0
    %3029 = vmatprep.subr.bf16.mxu0 %v3011
    %3030 = vmatpush1.bf16.msra.mxu0 %v3010
    %3031 = vmatprep.subr.bf16.mxu0 %v3013
    %3032 = vmatpush1.bf16.msra.mxu0 %v3012
    %3033 = vmatprep.subr.bf16.mxu0 %v3015
    %3034 = vmatpush1.bf16.msra.mxu0 %v3014
    %3035 = vmatprep.subr.bf16.mxu0 %v3017
    %3036 = vmatpush1.bf16.msra.mxu0 %v3016
    %3037 = vmatprep.subr.bf16.mxu0 0
    %3038 = vmatpush1.bf16.msra.mxu0 0
    %3039 = vmatprep.subr.bf16.mxu0 0
    %3040 = vmatpush1.bf16.msra.mxu0 0
    %3041 = vmatprep.subr.bf16.mxu0 0
    %3042 = vmatpush1.bf16.msra.mxu0 0
    %3043 = vmatprep.subr.bf16.mxu0 0
    %3044 = vmatpush1.bf16.msra.mxu0 0
    %3045 = vmatprep.subr.bf16.mxu0 0
    %3046 = vmatpush1.bf16.msra.mxu0 0
    %3047 = vmatprep.subr.bf16.mxu0 0
    %3048 = vmatpush1.bf16.msra.mxu0 0
    %3049 = vmatprep.subr.bf16.mxu0 0
    %3050 = vmatpush1.bf16.msra.mxu0 0
    %3051 = vmatprep.subr.bf16.mxu0 0
    %3052 = vmatpush1.bf16.msra.mxu0 0
    %3053 = vmatprep.subr.bf16.mxu0 0
    %3054 = vmatpush1.bf16.msra.mxu0 0
    %3055 = vmatprep.subr.bf16.mxu0 0
    %3056 = vmatpush1.bf16.msra.mxu0 0
    %3057 = vmatprep.subr.bf16.mxu0 0
    %3058 = vmatpush1.bf16.msra.mxu0 0
    %3059 = vmatprep.subr.bf16.mxu0 0
    %3060 = vmatpush1.bf16.msra.mxu0 0
    %3061 = vmatprep.mubr.bf16.mxu0 0
    %3062 = vmatmul.mubr.bf16.gmra.mrb[0].mxu0 %v3027
    %v3063 = vpop.f32.mrb[0].mxu0
    %v3064 = vadd.f32 0.0, %v3063
    %v3065 = vpop.f32.mrb[0].mxu0
    %v3066 = vadd.f32 0.0, %v3065
    %v3067 = vpop.f32.mrb[0].mxu0
    %v3068 = vpop.f32.mrb[0].mxu0
    %3069 = vdwg.mxu0
    %v3070 = vadd.f32 %v2822, %v3064
    %v3071 = vadd.f32 %v2823, %v3066
    %v3072 = vld [vmem:[%s26] sm:$0x3]
    %v3073 = vld [vmem:[%s1] sm:$0x3]
    %v3074 = vpack.c.bf16 %v3073, %v3073
    %v3075 = vld [vmem:[%s25] sm:$0x77]
    %v3077 = vunpack.c.l.b16 %v3075
    %v3078 = vunpack.c.h.b16 %v3075
    %v3079 = vpack.c.b16 %v3077, %v3077
    %v3080 = vpack.c.b16 %v3078, %v3078
    %vm3081 = vcmask 48128
    %v3083 = vsel %vm3081, %v3074, 0
    %vm3085 = vcmask 1042432
    %v3087 = vsel %vm3085, %v3079, 0
    %v3090 = vsel %vm3085, %v3080, 0
    %3092 = vmatprep.subr.bf16.mxu0 %v3090
    %3093 = vmatpush1.bf16.msra.mxu0 %v3087
    %3094 = vmatprep.subr.bf16.mxu0 0
    %3095 = vmatpush1.bf16.msra.mxu0 0
    %3096 = vmatprep.subr.bf16.mxu0 0
    %3097 = vmatpush1.bf16.msra.mxu0 0
    %3098 = vmatprep.subr.bf16.mxu0 0
    %3099 = vmatpush1.bf16.msra.mxu0 0
    %3100 = vmatprep.subr.bf16.mxu0 0
    %3101 = vmatpush1.bf16.msra.mxu0 0
    %3102 = vmatprep.subr.bf16.mxu0 0
    %3103 = vmatpush1.bf16.msra.mxu0 0
    %3104 = vmatprep.subr.bf16.mxu0 0
    %3105 = vmatpush1.bf16.msra.mxu0 0
    %3106 = vmatprep.subr.bf16.mxu0 0
    %3107 = vmatpush1.bf16.msra.mxu0 0
    %3108 = vmatprep.subr.bf16.mxu0 0
    %3109 = vmatpush1.bf16.msra.mxu0 0
    %3110 = vmatprep.subr.bf16.mxu0 0
    %3111 = vmatpush1.bf16.msra.mxu0 0
    %3112 = vmatprep.subr.bf16.mxu0 0
    %3113 = vmatpush1.bf16.msra.mxu0 0
    %3114 = vmatprep.subr.bf16.mxu0 0
    %3115 = vmatpush1.bf16.msra.mxu0 0
    %3116 = vmatprep.subr.bf16.mxu0 0
    %3117 = vmatpush1.bf16.msra.mxu0 0
    %3118 = vmatprep.subr.bf16.mxu0 0
    %3119 = vmatpush1.bf16.msra.mxu0 0
    %3120 = vmatprep.subr.bf16.mxu0 0
    %3121 = vmatpush1.bf16.msra.mxu0 0
    %3122 = vmatprep.subr.bf16.mxu0 0
    %3123 = vmatpush1.bf16.msra.mxu0 0
    %3124 = vmatprep.mubr.bf16.mxu0 0
    %3125 = vmatmul.mubr.bf16.gmra.mrb[0].mxu0 %v3083
    %v3126 = vpop.f32.mrb[0].mxu0
    %v3127 = vadd.f32 0.0, %v3126
    %v3128 = vpop.f32.mrb[0].mxu0
    %v3129 = vadd.f32 0.0, %v3128
    %v3130 = vpop.f32.mrb[0].mxu0
    %v3131 = vpop.f32.mrb[0].mxu0
    %3132 = vdwg.mxu0
    %v3134 = vlaneseq
    %v3135 = vshrl.u32 %v3134, 7
    %v3136 = vsub.s32 0, %v3135
    %v3137 = vrot.slane %v3072, %v3136
    %v3138 = vlaneseq
    %v3139 = vshrl.u32 %v3138, 7
    %v3140 = vsub.s32 1, %v3139
    %v3141 = vrot.slane %v3072, %v3140
    %v3144 = vadd.f32 %v3137, %v3127
    %v3145 = vadd.f32 %v3141, %v3129
    %v3146 = vmul.f32 %v3070, %v3144
    %v3147 = vmul.f32 %v3071, %v3145
    %v3148 = vpack.c.bf16 %v3146, %v3146
    %v3149 = vpack.c.bf16 %v3147, %v3147
    %v3150 = vld [vmem:[%s27] sm:$0xf]
    %v3151 = vld [vmem:[%s27 + $0x4] sm:$0xf]
    %v3152 = vld [vmem:[%s27 + $0x8] sm:$0xf]
    %v3153 = vld [vmem:[%s27 + $0xc] sm:$0xf]
    %v3154 = vld [vmem:[%s27 + $0x10] sm:$0xf]
    %v3155 = vld [vmem:[%s27 + $0x14] sm:$0xf]
    %v3156 = vld [vmem:[%s27 + $0x18] sm:$0xf]
    %v3157 = vld [vmem:[%s27 + $0x1c] sm:$0xf]
    %v3158 = vld [vmem:[%s27 + $0x20] sm:$0xf]
    %v3159 = vld [vmem:[%s27 + $0x24] sm:$0xf]
    %v3160 = vld [vmem:[%s27 + $0x28] sm:$0xf]
    %v3161 = vld [vmem:[%s27 + $0x2c] sm:$0xf]
    %v3162 = vld [vmem:[%s27 + $0x30] sm:$0xf]
    %v3163 = vld [vmem:[%s27 + $0x34] sm:$0xf]
    %v3164 = vld [vmem:[%s27 + $0x38] sm:$0xf]
    %v3165 = vld [vmem:[%s27 + $0x3c] sm:$0xf]
    %v3166 = vld [vmem:[%s27 + $0x40] sm:$0xf]
    %v3167 = vld [vmem:[%s27 + $0x44] sm:$0xf]
    %v3168 = vld [vmem:[%s27 + $0x48] sm:$0xf]
    %v3169 = vld [vmem:[%s27 + $0x4c] sm:$0xf]
    %v3170 = vld [vmem:[%s27 + $0x50] sm:$0xf]
    %v3171 = vld [vmem:[%s27 + $0x54] sm:$0xf]
    %v3172 = vld [vmem:[%s27 + $0x58] sm:$0xf]
    %v3173 = vld [vmem:[%s27 + $0x5c] sm:$0xf]
    %v3174 = vld [vmem:[%s27 + $0x60] sm:$0xf]
    %v3175 = vld [vmem:[%s27 + $0x64] sm:$0xf]
    %v3176 = vld [vmem:[%s27 + $0x68] sm:$0xf]
    %v3177 = vld [vmem:[%s27 + $0x6c] sm:$0xf]
    %v3206 = vunpack.c.l.b16 %v3150
    %v3207 = vunpack.c.l.b16 %v3151
    %v3208 = vunpack.c.l.b16 %v3152
    %v3209 = vunpack.c.l.b16 %v3153
    %v3210 = vunpack.c.l.b16 %v3154
    %v3211 = vunpack.c.l.b16 %v3155
    %v3212 = vunpack.c.l.b16 %v3156
    %v3213 = vunpack.c.l.b16 %v3157
    %v3214 = vunpack.c.l.b16 %v3158
    %v3215 = vunpack.c.l.b16 %v3159
    %v3216 = vunpack.c.l.b16 %v3160
    %v3217 = vunpack.c.l.b16 %v3161
    %v3218 = vunpack.c.l.b16 %v3162
    %v3219 = vunpack.c.l.b16 %v3163
    %v3220 = vunpack.c.l.b16 %v3164
    %v3221 = vunpack.c.l.b16 %v3165
    %v3222 = vunpack.c.l.b16 %v3166
    %v3223 = vunpack.c.l.b16 %v3167
    %v3224 = vunpack.c.l.b16 %v3168
    %v3225 = vunpack.c.l.b16 %v3169
    %v3226 = vunpack.c.l.b16 %v3170
    %v3227 = vunpack.c.l.b16 %v3171
    %v3228 = vunpack.c.l.b16 %v3172
    %v3229 = vunpack.c.l.b16 %v3173
    %v3230 = vunpack.c.l.b16 %v3174
    %v3231 = vunpack.c.l.b16 %v3175
    %v3232 = vunpack.c.l.b16 %v3176
    %v3233 = vunpack.c.l.b16 %v3177
    %v3234 = vpack.c.b16 %v3207, %v3206
    %v3235 = vpack.c.b16 %v3209, %v3208
    %v3236 = vpack.c.b16 %v3211, %v3210
    %v3237 = vpack.c.b16 %v3213, %v3212
    %v3238 = vpack.c.b16 %v3215, %v3214
    %v3239 = vpack.c.b16 %v3217, %v3216
    %v3240 = vpack.c.b16 %v3219, %v3218
    %v3241 = vpack.c.b16 %v3221, %v3220
    %v3242 = vpack.c.b16 %v3223, %v3222
    %v3243 = vpack.c.b16 %v3225, %v3224
    %v3244 = vpack.c.b16 %v3227, %v3226
    %v3245 = vpack.c.b16 %v3229, %v3228
    %v3246 = vpack.c.b16 %v3231, %v3230
    %v3247 = vpack.c.b16 %v3233, %v3232
    %vm3262 = vcmask 785408
    %v3264 = vsel %vm3262, %v3149, 0
    %3266 = vmatprep.subr.bf16.mxu0 0
    %3267 = vmatpush1.bf16.msra.mxu0 %v3234
    %3268 = vmatprep.subr.bf16.mxu0 0
    %3269 = vmatpush1.bf16.msra.mxu0 %v3235
    %3270 = vmatprep.subr.bf16.mxu0 0
    %3271 = vmatpush1.bf16.msra.mxu0 %v3236
    %3272 = vmatprep.subr.bf16.mxu0 0
    %3273 = vmatpush1.bf16.msra.mxu0 %v3237
    %3274 = vmatprep.subr.bf16.mxu0 0
    %3275 = vmatpush1.bf16.msra.mxu0 %v3238
    %3276 = vmatprep.subr.bf16.mxu0 0
    %3277 = vmatpush1.bf16.msra.mxu0 %v3239
    %3278 = vmatprep.subr.bf16.mxu0 0
    %3279 = vmatpush1.bf16.msra.mxu0 %v3240
    %3280 = vmatprep.subr.bf16.mxu0 0
    %3281 = vmatpush1.bf16.msra.mxu0 %v3241
    %3282 = vmatprep.subr.bf16.mxu0 0
    %3283 = vmatpush1.bf16.msra.mxu0 %v3242
    %3284 = vmatprep.subr.bf16.mxu0 0
    %3285 = vmatpush1.bf16.msra.mxu0 %v3243
    %3286 = vmatprep.subr.bf16.mxu0 0
    %3287 = vmatpush1.bf16.msra.mxu0 %v3244
    %3288 = vmatprep.subr.bf16.mxu0 0
    %3289 = vmatpush1.bf16.msra.mxu0 %v3245
    %3290 = vmatprep.subr.bf16.mxu0 0
    %3291 = vmatpush1.bf16.msra.mxu0 %v3246
    %3292 = vmatprep.subr.bf16.mxu0 0
    %3293 = vmatpush1.bf16.msra.mxu0 %v3247
    %3294 = vmatprep.subr.bf16.mxu0 0
    %3295 = vmatpush1.bf16.msra.mxu0 0
    %3296 = vmatprep.subr.bf16.mxu0 0
    %3297 = vmatpush1.bf16.msra.mxu0 0
    %3298 = vmatprep.mubr.bf16.mxu0 %v3264
    %3299 = vmatmul.mubr.bf16.gmra.mrb[0].mxu0 %v3148
    %v3300 = vpop.f32.mrb[0].mxu0
    %v3301 = vadd.f32 0.0, %v3300
    %v3302 = vpop.f32.mrb[0].mxu0
    %v3303 = vpop.f32.mrb[0].mxu0
    %v3304 = vpop.f32.mrb[0].mxu0
    %3305 = vdwg.mxu0
    %vm3306 = vcmask 254976
    %3307 = vst.msk [vmem:[#allocation2] sm:$0x3] %vm3306, %v3301
    // Predicated region
    $region114: #{hradnet_forward.1} parent=1 // pred_check
      _
    $region115: #{hradnet_forward.1} parent=1 // pred_check_branch
      %3309 = sbr.rel (0) target = $region117
    $region116: #{hradnet_forward.1} parent=1 // pred_region
      %s3311 = ssub.s32 32, 32
      %3312 = vsyncadd [#allocation3], %s3311
      %s3314 = sshll.u32 [#allocation2], 4
      %s3315 = int_to_ptr.vmem [resolvable:$true] %s3314
      %3317 = dma.vmem_to_hbm [thread:$0]  %s3315, 32, %s28, [#allocation3]
    $region117: #{hradnet_forward.1} parent=1 // pred_fallthru
      _
    // Predicated region
    $region118: #{hradnet_forward.1} parent=1 // pred_check
      _
    $region119: #{hradnet_forward.1} parent=1 // pred_check_branch
      %3319 = sbr.rel (0) target = $region121
    $region120: #{hradnet_forward.1} parent=1 // pred_region
      %3320 = dma.done [#allocation3], 32
    $region121: #{hradnet_forward.1} parent=1 // pred_fallthru
      _
    %3321 = vsyncpa [#allocation3], 1

</llo_original>
